<compile_context>
chip_gen: v7x
topology: tpu7x:2x2x1
jax: 0.10.0
libtpu: 0.0.40
codegen_flags: <defaults>
</compile_context>

<pallas_src>
import functools

import jax
import jax.numpy as jnp
from jax import lax
from jax.experimental import pallas as pl
from jax.experimental.pallas import tpu as pltpu

EPS = 1e-5
_REF_PREC = jax.lax.Precision.HIGHEST  # only for the pure-JAX reference


def _round_up(x, m):
    return ((x + m - 1) // m) * m


def _nbytes(shape, dtype):
    size = 1
    for d in shape:
        size *= int(d)
    return size * jnp.dtype(dtype).itemsize


# ---------------------------------------------------------------------------
# Pallas kernels
# ---------------------------------------------------------------------------
def _front_kernel(*refs, stride, ho, wo, hq, has_shortcut):
    """conv1 as 3 kw-folded bf16 matmuls (+ per-channel sum/sumsq), optionally
    fused with the strided 1x1 shortcut matmul (+ its sum/sumsq). One sample
    per grid step."""
    if has_shortcut:
        (xph_ref, w1_ref, xs_ref, ws_ref,
         y1_ref, s1_ref, q1_ref, ys_ref, ss_ref, qs_ref) = refs
    else:
        xph_ref, w1_ref, y1_ref, s1_ref, q1_ref = refs

    s = stride
    cin_p = xph_ref.shape[-1]
    cp = y1_ref.shape[-1]
    m = ho * wo

    acc = None
    for kh in range(3):
        slabs = []
        for kw in range(3):
            ph = (kh % s) * s + (kw % s)            # phase of this tap
            r0 = ph * hq + kh // s                  # row offset inside that phase
            c0 = kw // s
            slabs.append(
                xph_ref[0, r0:r0 + ho, c0:c0 + wo, :].reshape(m, cin_p))
        slab = jnp.concatenate(slabs, axis=-1)      # (m, 3*cin_p): K fills the MXU
        part = jnp.dot(slab, w1_ref[kh], preferred_element_type=jnp.float32)
        acc = part if acc is None else acc + part

    y1_ref[...] = acc.reshape(1, m, cp).astype(y1_ref.dtype)
    s1_ref[...] = jnp.sum(acc, axis=0).reshape(1, 1, cp)
    q1_ref[...] = jnp.sum(acc * acc, axis=0).reshape(1, 1, cp)

    if has_shortcut:
        xs = xs_ref[...].reshape(m, cin_p)
        acc_s = jnp.dot(xs, ws_ref[...], preferred_element_type=jnp.float32)
        ys_ref[...] = acc_s.reshape(1, m, cp).astype(ys_ref.dtype)
        ss_ref[...] = jnp.sum(acc_s, axis=0).reshape(1, 1, cp)
        qs_ref[...] = jnp.sum(acc_s * acc_s, axis=0).reshape(1, 1, cp)


def _hstats_kernel(y1_ref, a1_ref, c1_ref, hs_ref, hq_ref):
    """Per-sample (sum, sum_sq) of h = relu(bn1(conv1(x))) -- needed for bn2."""
    m, cp = y1_ref.shape[1], y1_ref.shape[2]
    y = y1_ref[...].reshape(m, cp).astype(jnp.float32)
    h = jnp.maximum(y * a1_ref[...] + c1_ref[...], 0.0)
    hs_ref[...] = jnp.sum(h, axis=0).reshape(1, 1, cp)
    hq_ref[...] = jnp.sum(h * h, axis=0).reshape(1, 1, cp)


def _back_kernel(y1_ref, w2_ref, res_ref, a1_ref, c1_ref, a2_ref, c2_ref,
                 as_ref, cs_ref, o_ref, gpad_ref, *, ho, wo):
    """bn1 -> relu -> bn2 (per-channel scale/shift) applied on the fly, conv2
    as 3 kw-folded matmuls read from an in-VMEM halo scratch, shortcut-BN
    affine + residual add + relu. One sample per grid step."""
    cp = o_ref.shape[-1]
    m = ho * wo

    # Elementwise chain in f32; single cast to bf16 when written to the scratch
    # (keeps VPU work f32-only, important on v5e).
    y = y1_ref[...].reshape(m, cp).astype(jnp.float32)
    g = jnp.maximum(y * a1_ref[...] + c1_ref[...], 0.0) * a2_ref[...] + c2_ref[...]

    # conv2's pad=1 halo lives in a VMEM scratch: zero ring + interior store.
    gpad_ref[...] = jnp.zeros_like(gpad_ref)
    gpad_ref[1:1 + ho, 1:1 + wo, :] = g.reshape(ho, wo, cp).astype(gpad_ref.dtype)

    acc = None
    for kh in range(3):
        slab = jnp.concatenate(
            [gpad_ref[kh:kh + ho, kw:kw + wo, :].reshape(m, cp)
             for kw in range(3)], axis=-1)          # (m, 3*cp)
        part = jnp.dot(slab, w2_ref[kh], preferred_element_type=jnp.float32)
        acc = part if acc is None else acc + part

    res = res_ref[...].reshape(m, cp).astype(jnp.float32) * as_ref[...] + cs_ref[...]
    o_ref[...] = jnp.maximum(acc + res, 0.0).reshape(1, m, cp).astype(o_ref.dtype)


# ---------------------------------------------------------------------------
# Wrapper: layout plumbing (NHWC, channel padding, phase decomposition) + BN math
# ---------------------------------------------------------------------------
def _w_taps_kwfold(w, cin_pad, cout_pad):
    """(Cout, Cin, 3, 3) -> (3, 3*cin_pad, cout_pad) bf16; row = kh, contraction
    index = kw*cin_pad + cin (matches the in-kernel kw-slab concatenation)."""
    cout, cin = w.shape[0], w.shape[1]
    wm = jnp.transpose(w, (2, 3, 1, 0))                        # (kh, kw, cin, cout)
    wm = jnp.pad(wm, ((0, 0), (0, 0), (0, cin_pad - cin), (0, cout_pad - cout)))
    return wm.reshape(3, 3 * cin_pad, cout_pad).astype(jnp.bfloat16)


def _bn_affine(ssum, ssq, gamma, beta, mtot, cp):
    """Fold train-mode BN into per-channel (scale, shift) from sum / sum_sq.
    TODO(synk): single-pass E[x^2]-E[x]^2 in f32; switch to a pairwise/Welford
    combine if n*m ever gets large enough for cancellation to matter."""
    mean = jnp.sum(ssum, axis=0).reshape(1, cp) / mtot
    var = jnp.sum(ssq, axis=0).reshape(1, cp) / mtot - mean ** 2
    var = jnp.maximum(var, 0.0)
    gp = jnp.pad(gamma, (0, cp - gamma.shape[0])).reshape(1, cp)
    bp = jnp.pad(beta, (0, cp - beta.shape[0])).reshape(1, cp)
    scale = gp * lax.rsqrt(var + EPS)
    shift = bp - mean * scale
    return scale.astype(jnp.float32), shift.astype(jnp.float32)


@functools.partial(jax.jit, static_argnames=("stride",))
def basic_block_forward(x_nchw, params, stride):
    x = jnp.transpose(x_nchw, (0, 2, 3, 1)).astype(jnp.float32)   # NHWC
    n, h, w, cin = x.shape
    planes = params["w1"].shape[0]
    s = stride
    ho = (h - 1) // s + 1
    wo = (w - 1) // s + 1
    m = ho * wo
    cin_p = max(_round_up(cin, 128), 128)
    cp = max(_round_up(planes, 128), 128)
    has_shortcut = (s != 1)

    # Per-generation VMEM budget: <= ~48 MiB on v7x (64 MiB physical),
    # up to 96 MiB on v5e/v6e (128 MiB physical).
    try:
        vmem_cap = int(pltpu.get_tpu_info().vmem_capacity_bytes)
    except Exception:
        vmem_cap = 64 * 1024 * 1024
    cparams = pltpu.CompilerParams(
        dimension_semantics=("parallel",),
        vmem_limit_bytes=int(min(vmem_cap * 3 // 4, 96 * 1024 * 1024)))

    # --- conv1 input: spatial pad 1, channel pad, phase decomposition (stride) ---
    xpad = jnp.pad(x, ((0, 0), (1, 1), (1, 1), (0, cin_p - cin)))
    hq = (h + 2 + s - 1) // s
    wq = (w + 2 + s - 1) // s
    phases = []
    for ph_h in range(s):
        for ph_w in range(s):
            sub = xpad[:, ph_h::s, ph_w::s, :]
            sub = jnp.pad(sub, ((0, 0), (0, hq - sub.shape[1]),
                                (0, wq - sub.shape[2]), (0, 0)))
            phases.append(sub)
    xph = jnp.concatenate(phases, axis=1).astype(jnp.bfloat16)    # (n, s*s*hq, wq, cin_p)

    w1m = _w_taps_kwfold(params["w1"], cin_p, cp)                 # (3, 3*cin_p, cp)

    front_flops = n * (2 * 9 * m * cin_p * cp
                       + (2 * m * cin_p * cp if has_shortcut else 0))
    front_bytes = (_nbytes(xph.shape, jnp.bfloat16) + _nbytes(w1m.shape, jnp.bfloat16)
                   + n * m * cp * 2 + 2 * n * cp * 4)

    if has_shortcut:
        xs = x[:, ::s, ::s, :]
        xs = jnp.pad(xs, ((0, 0), (0, 0), (0, 0), (0, cin_p - cin)))
        xs = xs.reshape(n, m, cin_p).astype(jnp.bfloat16)
        wsm = jnp.pad(params["ws"][:, :, 0, 0].T,
                      ((0, cin_p - cin), (0, cp - planes))).astype(jnp.bfloat16)
        front_bytes += (_nbytes(xs.shape, jnp.bfloat16) + _nbytes(wsm.shape, jnp.bfloat16)
                        + n * m * cp * 2 + 2 * n * cp * 4)
        in_specs = [
            pl.BlockSpec((1, s * s * hq, wq, cin_p), lambda i: (i, 0, 0, 0)),
            pl.BlockSpec((3, 3 * cin_p, cp), lambda i: (0, 0, 0)),
            pl.BlockSpec((1, m, cin_p), lambda i: (i, 0, 0)),
            pl.BlockSpec((cin_p, cp), lambda i: (0, 0)),
        ]
        out_specs = [
            pl.BlockSpec((1, m, cp), lambda i: (i, 0, 0)),
            pl.BlockSpec((1, 1, cp), lambda i: (i, 0, 0)),
            pl.BlockSpec((1, 1, cp), lambda i: (i, 0, 0)),
            pl.BlockSpec((1, m, cp), lambda i: (i, 0, 0)),
            pl.BlockSpec((1, 1, cp), lambda i: (i, 0, 0)),
            pl.BlockSpec((1, 1, cp), lambda i: (i, 0, 0)),
        ]
        out_shape = [
            jax.ShapeDtypeStruct((n, m, cp), jnp.bfloat16),   # conv1 output
            jax.ShapeDtypeStruct((n, 1, cp), jnp.float32),    # sum
            jax.ShapeDtypeStruct((n, 1, cp), jnp.float32),    # sum_sq
            jax.ShapeDtypeStruct((n, m, cp), jnp.bfloat16),   # shortcut 1x1 output
            jax.ShapeDtypeStruct((n, 1, cp), jnp.float32),    # sum
            jax.ShapeDtypeStruct((n, 1, cp), jnp.float32),    # sum_sq
        ]
        front_args = (xph, w1m, xs, wsm)
    else:
        assert cin == planes, "identity shortcut requires inplanes == planes"
        in_specs = [
            pl.BlockSpec((1, s * s * hq, wq, cin_p), lambda i: (i, 0, 0, 0)),
            pl.BlockSpec((3, 3 * cin_p, cp), lambda i: (0, 0, 0)),
        ]
        out_specs = [
            pl.BlockSpec((1, m, cp), lambda i: (i, 0, 0)),
            pl.BlockSpec((1, 1, cp), lambda i: (i, 0, 0)),
            pl.BlockSpec((1, 1, cp), lambda i: (i, 0, 0)),
        ]
        out_shape = [
            jax.ShapeDtypeStruct((n, m, cp), jnp.bfloat16),
            jax.ShapeDtypeStruct((n, 1, cp), jnp.float32),
            jax.ShapeDtypeStruct((n, 1, cp), jnp.float32),
        ]
        front_args = (xph, w1m)

    # --- kernel 1: conv1 (+stats), optionally fused with the shortcut matmul ---
    front = pl.pallas_call(
        functools.partial(_front_kernel, stride=s, ho=ho, wo=wo, hq=hq,
                          has_shortcut=has_shortcut),
        grid=(n,),
        in_specs=in_specs,
        out_specs=out_specs,
        out_shape=out_shape,
        compiler_params=cparams,
        cost_estimate=pl.CostEstimate(flops=front_flops, transcendentals=0,
                                      bytes_accessed=front_bytes),
    )
    outs = front(*front_args)
    if has_shortcut:
        y1, y1_sum, y1_sq, ysc, ysc_sum, ysc_sq = outs
    else:
        y1, y1_sum, y1_sq = outs

    mtot = n * m
    a1, c1 = _bn_affine(y1_sum, y1_sq, params["g1"], params["b1"], mtot, cp)

    # --- kernel 2: global stats of h = relu(bn1(conv1(x))) for bn2 ---
    hstats = pl.pallas_call(
        _hstats_kernel,
        grid=(n,),
        in_specs=[pl.BlockSpec((1, m, cp), lambda i: (i, 0, 0)),
                  pl.BlockSpec((1, cp), lambda i: (0, 0)),
                  pl.BlockSpec((1, cp), lambda i: (0, 0))],
        out_specs=[pl.BlockSpec((1, 1, cp), lambda i: (i, 0, 0)),
                   pl.BlockSpec((1, 1, cp), lambda i: (i, 0, 0))],
        out_shape=[jax.ShapeDtypeStruct((n, 1, cp), jnp.float32),
                   jax.ShapeDtypeStruct((n, 1, cp), jnp.float32)],
        compiler_params=cparams,
        cost_estimate=pl.CostEstimate(
            flops=6 * n * m * cp, transcendentals=0,
            bytes_accessed=n * m * cp * 2 + 2 * n * cp * 4 + 2 * cp * 4),
    )
    h_sum, h_sq = hstats(y1, a1, c1)
    a2, c2 = _bn_affine(h_sum, h_sq, params["g2"], params["b2"], mtot, cp)

    if has_shortcut:
        asc, csc = _bn_affine(ysc_sum, ysc_sq, params["gs"], params["bs"], mtot, cp)
        res = ysc                                             # (n, m, cp) bf16
    else:
        # identity shortcut: pass x straight through (f32, no matmul, no rounding)
        res = jnp.pad(x, ((0, 0), (0, 0), (0, 0), (0, cp - cin))).reshape(n, m, cp)
        asc = jnp.ones((1, cp), jnp.float32)
        csc = jnp.zeros((1, cp), jnp.float32)

    # --- kernel 3: bn1/relu/bn2 on the fly + conv2 (halo in VMEM) + residual + relu ---
    w2m = _w_taps_kwfold(params["w2"], cp, cp)                # (3, 3*cp, cp)
    back = pl.pallas_call(
        functools.partial(_back_kernel, ho=ho, wo=wo),
        grid=(n,),
        in_specs=[pl.BlockSpec((1, m, cp), lambda i: (i, 0, 0)),
                  pl.BlockSpec((3, 3 * cp, cp), lambda i: (0, 0, 0)),
                  pl.BlockSpec((1, m, cp), lambda i: (i, 0, 0)),
                  pl.BlockSpec((1, cp), lambda i: (0, 0)),
                  pl.BlockSpec((1, cp), lambda i: (0, 0)),
                  pl.BlockSpec((1, cp), lambda i: (0, 0)),
                  pl.BlockSpec((1, cp), lambda i: (0, 0)),
                  pl.BlockSpec((1, cp), lambda i: (0, 0)),
                  pl.BlockSpec((1, cp), lambda i: (0, 0))],
        out_specs=pl.BlockSpec((1, m, cp), lambda i: (i, 0, 0)),
        out_shape=jax.ShapeDtypeStruct((n, m, cp), jnp.bfloat16),
        scratch_shapes=[pltpu.VMEM((ho + 2, wo + 2, cp), jnp.bfloat16)],
        compiler_params=cparams,
        cost_estimate=pl.CostEstimate(
            flops=n * (2 * 9 * m * cp * cp + 10 * m * cp), transcendentals=0,
            bytes_accessed=(2 * n * m * cp * 2 + _nbytes(w2m.shape, jnp.bfloat16)
                            + _nbytes(res.shape, res.dtype) + 6 * cp * 4)),
    )
    out = back(y1, w2m, res, a1, c1, a2, c2, asc, csc)

    out = out[:, :, :planes].reshape(n, ho, wo, planes)
    # NOTE: for chained BasicBlocks, keep NHWC between blocks; NCHW only here to
    # match the PyTorch module's interface.
    return jnp.transpose(out, (0, 3, 1, 2))                   # NCHW, bf16


# ---------------------------------------------------------------------------
# Pure-JAX reference (mirrors the PyTorch module, train-mode BN, f32 HIGHEST)
# ---------------------------------------------------------------------------
def _reference(x, params, stride):
    def conv(x, w, s, pad):
        return lax.conv_general_dilated(
            x, w, (s, s), ((pad, pad), (pad, pad)),
            dimension_numbers=("NCHW", "OIHW", "NCHW"), precision=_REF_PREC)

    def bn(x, g, b):
        m = jnp.mean(x, axis=(0, 2, 3), keepdims=True)
        v = jnp.var(x, axis=(0, 2, 3), keepdims=True)
        return (x - m) / jnp.sqrt(v + EPS) * g.reshape(1, -1, 1, 1) + b.reshape(1, -1, 1, 1)

    out = jax.nn.relu(bn(conv(x, params["w1"], stride, 1), params["g1"], params["b1"]))
    out = conv(bn(out, params["g2"], params["b2"]), params["w2"], 1, 1)
    sc = x if stride == 1 else bn(conv(x, params["ws"], stride, 0),
                                  params["gs"], params["bs"])
    return jax.nn.relu(out + sc)


# ---------------------------------------------------------------------------
if __name__ == "__main__":
    key = jax.random.PRNGKey(0)

    configs = [
        # (inplanes, planes, stride, n, h, w)
        (4, 8, 2, 2, 16, 16),   # downsampling block: 1x1-conv + BN shortcut
        (8, 8, 1, 2, 16, 16),   # identity-shortcut block
    ]
    for (inplanes, planes, stride, n, h, w) in configs:
        key, sub = jax.random.split(key)
        ks = jax.random.split(sub, 10)
        params = {
            "w1": jax.random.normal(ks[0], (planes, inplanes, 3, 3), jnp.float32) * 0.2,
            "g1": jax.random.uniform(ks[1], (planes,), jnp.float32, 0.5, 1.5),
            "b1": jax.random.normal(ks[2], (planes,), jnp.float32) * 0.1,
            "w2": jax.random.normal(ks[3], (planes, planes, 3, 3), jnp.float32) * 0.2,
            "g2": jax.random.uniform(ks[4], (planes,), jnp.float32, 0.5, 1.5),
            "b2": jax.random.normal(ks[5], (planes,), jnp.float32) * 0.1,
            "ws": jax.random.normal(ks[6], (planes, inplanes, 1, 1), jnp.float32) * 0.2,
            "gs": jax.random.uniform(ks[7], (planes,), jnp.float32, 0.5, 1.5),
            "bs": jax.random.normal(ks[8], (planes,), jnp.float32) * 0.1,
        }
        x = jax.random.normal(ks[9], (n, inplanes, h, w), jnp.float32)

        out = jax.block_until_ready(basic_block_forward(x, params, stride))
        ref = jax.block_until_ready(_reference(x, params, stride))

        assert out.shape == ref.shape, (out.shape, ref.shape)
        max_err = float(jnp.max(jnp.abs(out.astype(jnp.float32) - ref)))
        # tolerance scaled for bf16 MXU inputs (f32 accumulation) vs f32 HIGHEST reference
        tol = 1e-2 + 2e-2 * float(jnp.max(jnp.abs(ref)))
        assert max_err < tol, (
            f"stride={stride}: mismatch vs reference: max abs err = {max_err} (tol {tol})")

    print("KERNEL_OK")
</pallas_src>

<mosaic_0001>
module attributes {stable_mosaic.version = 11 : i64} {
  func.func @_hstats_kernel(%arg0: i32, %arg1: memref<1x64x128xbf16, #tpu.memory_space<vmem>>, %arg2: memref<1x128xf32, #tpu.memory_space<vmem>>, %arg3: memref<1x128xf32, #tpu.memory_space<vmem>>, %arg4: memref<1x1x128xf32, #tpu.memory_space<vmem>>, %arg5: memref<1x1x128xf32, #tpu.memory_space<vmem>>) attributes {dimension_semantics = [#tpu.dimension_semantics<parallel>], iteration_bounds = array<i64: 2>, scalar_prefetch = 0 : i64, scratch_operands = 0 : i64, tpu.core_type = #tpu.core_type<tc>, window_params = [{transform_indices = @transform_0, window_bounds = array<i64: 1, 64, 128>}, {pipeline_mode = #tpu.pipeline_mode<synchronous>, transform_indices = @transform_1, window_bounds = array<i64: 1, 128>}, {pipeline_mode = #tpu.pipeline_mode<synchronous>, transform_indices = @transform_2, window_bounds = array<i64: 1, 128>}, {transform_indices = @transform_3, window_bounds = array<i64: 1, 1, 128>}, {transform_indices = @transform_4, window_bounds = array<i64: 1, 1, 128>}]} {
    %c0 = arith.constant 0 : index
    %c0_0 = arith.constant 0 : index
    %c0_1 = arith.constant 0 : index
    %0 = vector.load %arg1[%c0, %c0_0, %c0_1] : memref<1x64x128xbf16, #tpu.memory_space<vmem>>, vector<1x64x128xbf16>
    %1 = vector.shape_cast %0 : vector<1x64x128xbf16> to vector<64x128xbf16>
    %2 = arith.extf %1 : vector<64x128xbf16> to vector<64x128xf32>
    %c0_2 = arith.constant 0 : index
    %c0_3 = arith.constant 0 : index
    %3 = vector.load %arg2[%c0_2, %c0_3] : memref<1x128xf32, #tpu.memory_space<vmem>>, vector<1x128xf32>
    %4 = vector.broadcast %3 : vector<1x128xf32> to vector<64x128xf32>
    %5 = arith.mulf %2, %4 : vector<64x128xf32>
    %c0_4 = arith.constant 0 : index
    %c0_5 = arith.constant 0 : index
    %6 = vector.load %arg3[%c0_4, %c0_5] : memref<1x128xf32, #tpu.memory_space<vmem>>, vector<1x128xf32>
    %7 = vector.broadcast %6 : vector<1x128xf32> to vector<64x128xf32>
    %8 = arith.addf %5, %7 : vector<64x128xf32>
    %cst = arith.constant 0.000000e+00 : f32
    %9 = vector.broadcast %cst : f32 to vector<64x128xf32>
    %10 = arith.maximumf %8, %9 : vector<64x128xf32>
    %cst_6 = arith.constant dense<0.000000e+00> : vector<128xf32>
    %11 = vector.multi_reduction <add>, %10, %cst_6 [0] : vector<64x128xf32> to vector<128xf32>
    %12 = vector.shape_cast %11 : vector<128xf32> to vector<1x1x128xf32>
    %c0_7 = arith.constant 0 : index
    %c0_8 = arith.constant 0 : index
    %c0_9 = arith.constant 0 : index
    %13 = vector.load %arg4[%c0_7, %c0_8, %c0_9] : memref<1x1x128xf32, #tpu.memory_space<vmem>>, vector<1x1x128xf32>
    tpu.vector_store %arg4[%c0_7, %c0_8, %c0_9], %12 {strides = array<i32>} : memref<1x1x128xf32, #tpu.memory_space<vmem>>, vector<1x1x128xf32>,
    %14 = arith.mulf %10, %10 : vector<64x128xf32>
    %cst_10 = arith.constant dense<0.000000e+00> : vector<128xf32>
    %15 = vector.multi_reduction <add>, %14, %cst_10 [0] : vector<64x128xf32> to vector<128xf32>
    %16 = vector.shape_cast %15 : vector<128xf32> to vector<1x1x128xf32>
    %c0_11 = arith.constant 0 : index
    %c0_12 = arith.constant 0 : index
    %c0_13 = arith.constant 0 : index
    %17 = vector.load %arg5[%c0_11, %c0_12, %c0_13] : memref<1x1x128xf32, #tpu.memory_space<vmem>>, vector<1x1x128xf32>
    tpu.vector_store %arg5[%c0_11, %c0_12, %c0_13], %16 {strides = array<i32>} : memref<1x1x128xf32, #tpu.memory_space<vmem>>, vector<1x1x128xf32>,
    return
  }
  func.func @transform_0(%arg0: i32) -> (i32, i32, i32) {
    %c0_i32 = arith.constant 0 : i32
    %c0_i32_0 = arith.constant 0 : i32
    %c0_i32_1 = arith.constant 0 : i32
    return %arg0, %c0_i32, %c0_i32_0 : i32, i32, i32
  }
  func.func @transform_1(%arg0: i32) -> (i32, i32) {
    %c0_i32 = arith.constant 0 : i32
    %c0_i32_0 = arith.constant 0 : i32
    %c0_i32_1 = arith.constant 0 : i32
    return %c0_i32, %c0_i32_0 : i32, i32
  }
  func.func @transform_2(%arg0: i32) -> (i32, i32) {
    %c0_i32 = arith.constant 0 : i32
    %c0_i32_0 = arith.constant 0 : i32
    %c0_i32_1 = arith.constant 0 : i32
    return %c0_i32, %c0_i32_0 : i32, i32
  }
  func.func @transform_3(%arg0: i32) -> (i32, i32, i32) {
    %c0_i32 = arith.constant 0 : i32
    %c0_i32_0 = arith.constant 0 : i32
    %c0_i32_1 = arith.constant 0 : i32
    return %arg0, %c0_i32, %c0_i32_0 : i32, i32, i32
  }
  func.func @transform_4(%arg0: i32) -> (i32, i32, i32) {
    %c0_i32 = arith.constant 0 : i32
    %c0_i32_0 = arith.constant 0 : i32
    %c0_i32_1 = arith.constant 0 : i32
    return %arg0, %c0_i32, %c0_i32_0 : i32, i32, i32
  }
}

module attributes {stable_mosaic.version = 11 : i64} {
  func.func @_front_kernel(%arg0: i32, %arg1: memref<1x36x9x128xbf16, #tpu.memory_space<vmem>>, %arg2: memref<3x384x128xbf16, #tpu.memory_space<vmem>>, %arg3: memref<1x64x128xbf16, #tpu.memory_space<vmem>>, %arg4: memref<128x128xbf16, #tpu.memory_space<vmem>>, %arg5: memref<1x64x128xbf16, #tpu.memory_space<vmem>>, %arg6: memref<1x1x128xf32, #tpu.memory_space<vmem>>, %arg7: memref<1x1x128xf32, #tpu.memory_space<vmem>>, %arg8: memref<1x64x128xbf16, #tpu.memory_space<vmem>>, %arg9: memref<1x1x128xf32, #tpu.memory_space<vmem>>, %arg10: memref<1x1x128xf32, #tpu.memory_space<vmem>>) attributes {dimension_semantics = [#tpu.dimension_semantics<parallel>], iteration_bounds = array<i64: 2>, scalar_prefetch = 0 : i64, scratch_operands = 0 : i64, tpu.core_type = #tpu.core_type<tc>, window_params = [{transform_indices = @transform_0, window_bounds = array<i64: 1, 36, 9, 128>}, {pipeline_mode = #tpu.pipeline_mode<synchronous>, transform_indices = @transform_1, window_bounds = array<i64: 3, 384, 128>}, {transform_indices = @transform_2, window_bounds = array<i64: 1, 64, 128>}, {pipeline_mode = #tpu.pipeline_mode<synchronous>, transform_indices = @transform_3, window_bounds = array<i64: 128, 128>}, {transform_indices = @transform_4, window_bounds = array<i64: 1, 64, 128>}, {transform_indices = @transform_5, window_bounds = array<i64: 1, 1, 128>}, {transform_indices = @transform_6, window_bounds = array<i64: 1, 1, 128>}, {transform_indices = @transform_7, window_bounds = array<i64: 1, 64, 128>}, {transform_indices = @transform_8, window_bounds = array<i64: 1, 1, 128>}, {transform_indices = @transform_9, window_bounds = array<i64: 1, 1, 128>}]} {
    %c0 = arith.constant 0 : index
    %c0_0 = arith.constant 0 : index
    %c0_1 = arith.constant 0 : index
    %c0_2 = arith.constant 0 : index
    %0 = vector.load %arg1[%c0, %c0_0, %c0_1, %c0_2] : memref<1x36x9x128xbf16, #tpu.memory_space<vmem>>, vector<1x8x8x128xbf16>
    %1 = vector.shape_cast %0 : vector<1x8x8x128xbf16> to vector<8x8x128xbf16>
    %2 = vector.shape_cast %1 : vector<8x8x128xbf16> to vector<64x128xbf16>
    %c0_3 = arith.constant 0 : index
    %c9 = arith.constant 9 : index
    %c0_4 = arith.constant 0 : index
    %c0_5 = arith.constant 0 : index
    %3 = vector.load %arg1[%c0_3, %c9, %c0_4, %c0_5] : memref<1x36x9x128xbf16, #tpu.memory_space<vmem>>, vector<1x8x8x128xbf16>
    %4 = vector.shape_cast %3 : vector<1x8x8x128xbf16> to vector<8x8x128xbf16>
    %5 = vector.shape_cast %4 : vector<8x8x128xbf16> to vector<64x128xbf16>
    %c0_6 = arith.constant 0 : index
    %c0_7 = arith.constant 0 : index
    %c1 = arith.constant 1 : index
    %c0_8 = arith.constant 0 : index
    %6 = vector.load %arg1[%c0_6, %c0_7, %c1, %c0_8] : memref<1x36x9x128xbf16, #tpu.memory_space<vmem>>, vector<1x8x8x128xbf16>
    %7 = vector.shape_cast %6 : vector<1x8x8x128xbf16> to vector<8x8x128xbf16>
    %8 = vector.shape_cast %7 : vector<8x8x128xbf16> to vector<64x128xbf16>
    %9 = tpu.concatenate %2, %5, %8 in 1 : vector<64x128xbf16>, vector<64x128xbf16>, vector<64x128xbf16> -> vector<64x384xbf16>
    %c0_9 = arith.constant 0 : index
    %c0_10 = arith.constant 0 : index
    %c0_11 = arith.constant 0 : index
    %10 = vector.load %arg2[%c0_9, %c0_10, %c0_11] : memref<3x384x128xbf16, #tpu.memory_space<vmem>>, vector<1x384x128xbf16>
    %11 = vector.shape_cast %10 : vector<1x384x128xbf16> to vector<384x128xbf16>
    %cst = arith.constant dense<0.000000e+00> : vector<64x128xf32>
    %12 = tpu.matmul %9, %11, %cst {dimension_numbers = #tpu.dot_dimension_numbers<[1], [0], [0], [1], [0, 0, 1, 1], [], []>} : vector<64x384xbf16>, vector<384x128xbf16>, vector<64x128xf32> -> vector<64x128xf32>
    %c0_12 = arith.constant 0 : index
    %c18 = arith.constant 18 : index
    %c0_13 = arith.constant 0 : index
    %c0_14 = arith.constant 0 : index
    %13 = vector.load %arg1[%c0_12, %c18, %c0_13, %c0_14] : memref<1x36x9x128xbf16, #tpu.memory_space<vmem>>, vector<1x8x8x128xbf16>
    %14 = vector.shape_cast %13 : vector<1x8x8x128xbf16> to vector<8x8x128xbf16>
    %15 = vector.shape_cast %14 : vector<8x8x128xbf16> to vector<64x128xbf16>
    %c0_15 = arith.constant 0 : index
    %c27 = arith.constant 27 : index
    %c0_16 = arith.constant 0 : index
    %c0_17 = arith.constant 0 : index
    %16 = vector.load %arg1[%c0_15, %c27, %c0_16, %c0_17] : memref<1x36x9x128xbf16, #tpu.memory_space<vmem>>, vector<1x8x8x128xbf16>
    %17 = vector.shape_cast %16 : vector<1x8x8x128xbf16> to vector<8x8x128xbf16>
    %18 = vector.shape_cast %17 : vector<8x8x128xbf16> to vector<64x128xbf16>
    %c0_18 = arith.constant 0 : index
    %c18_19 = arith.constant 18 : index
    %c1_20 = arith.constant 1 : index
    %c0_21 = arith.constant 0 : index
    %19 = vector.load %arg1[%c0_18, %c18_19, %c1_20, %c0_21] : memref<1x36x9x128xbf16, #tpu.memory_space<vmem>>, vector<1x8x8x128xbf16>
    %20 = vector.shape_cast %19 : vector<1x8x8x128xbf16> to vector<8x8x128xbf16>
    %21 = vector.shape_cast %20 : vector<8x8x128xbf16> to vector<64x128xbf16>
    %22 = tpu.concatenate %15, %18, %21 in 1 : vector<64x128xbf16>, vector<64x128xbf16>, vector<64x128xbf16> -> vector<64x384xbf16>
    %c1_22 = arith.constant 1 : index
    %c0_23 = arith.constant 0 : index
    %c0_24 = arith.constant 0 : index
    %23 = vector.load %arg2[%c1_22, %c0_23, %c0_24] : memref<3x384x128xbf16, #tpu.memory_space<vmem>>, vector<1x384x128xbf16>
    %24 = vector.shape_cast %23 : vector<1x384x128xbf16> to vector<384x128xbf16>
    %cst_25 = arith.constant dense<0.000000e+00> : vector<64x128xf32>
    %25 = tpu.matmul %22, %24, %cst_25 {dimension_numbers = #tpu.dot_dimension_numbers<[1], [0], [0], [1], [0, 0, 1, 1], [], []>} : vector<64x384xbf16>, vector<384x128xbf16>, vector<64x128xf32> -> vector<64x128xf32>
    %26 = arith.addf %12, %25 : vector<64x128xf32>
    %c0_26 = arith.constant 0 : index
    %c1_27 = arith.constant 1 : index
    %c0_28 = arith.constant 0 : index
    %c0_29 = arith.constant 0 : index
    %27 = vector.load %arg1[%c0_26, %c1_27, %c0_28, %c0_29] : memref<1x36x9x128xbf16, #tpu.memory_space<vmem>>, vector<1x8x8x128xbf16>
    %28 = vector.shape_cast %27 : vector<1x8x8x128xbf16> to vector<8x8x128xbf16>
    %29 = vector.shape_cast %28 : vector<8x8x128xbf16> to vector<64x128xbf16>
    %c0_30 = arith.constant 0 : index
    %c10 = arith.constant 10 : index
    %c0_31 = arith.constant 0 : index
    %c0_32 = arith.constant 0 : index
    %30 = vector.load %arg1[%c0_30, %c10, %c0_31, %c0_32] : memref<1x36x9x128xbf16, #tpu.memory_space<vmem>>, vector<1x8x8x128xbf16>
    %31 = vector.shape_cast %30 : vector<1x8x8x128xbf16> to vector<8x8x128xbf16>
    %32 = vector.shape_cast %31 : vector<8x8x128xbf16> to vector<64x128xbf16>
    %c0_33 = arith.constant 0 : index
    %c1_34 = arith.constant 1 : index
    %c1_35 = arith.constant 1 : index
    %c0_36 = arith.constant 0 : index
    %33 = vector.load %arg1[%c0_33, %c1_34, %c1_35, %c0_36] : memref<1x36x9x128xbf16, #tpu.memory_space<vmem>>, vector<1x8x8x128xbf16>
    %34 = vector.shape_cast %33 : vector<1x8x8x128xbf16> to vector<8x8x128xbf16>
    %35 = vector.shape_cast %34 : vector<8x8x128xbf16> to vector<64x128xbf16>
    %36 = tpu.concatenate %29, %32, %35 in 1 : vector<64x128xbf16>, vector<64x128xbf16>, vector<64x128xbf16> -> vector<64x384xbf16>
    %c2 = arith.constant 2 : index
    %c0_37 = arith.constant 0 : index
    %c0_38 = arith.constant 0 : index
    %37 = vector.load %arg2[%c2, %c0_37, %c0_38] : memref<3x384x128xbf16, #tpu.memory_space<vmem>>, vector<1x384x128xbf16>
    %38 = vector.shape_cast %37 : vector<1x384x128xbf16> to vector<384x128xbf16>
    %cst_39 = arith.constant dense<0.000000e+00> : vector<64x128xf32>
    %39 = tpu.matmul %36, %38, %cst_39 {dimension_numbers = #tpu.dot_dimension_numbers<[1], [0], [0], [1], [0, 0, 1, 1], [], []>} : vector<64x384xbf16>, vector<384x128xbf16>, vector<64x128xf32> -> vector<64x128xf32>
    %40 = arith.addf %26, %39 : vector<64x128xf32>
    %41 = vector.shape_cast %40 : vector<64x128xf32> to vector<1x64x128xf32>
    %42 = arith.truncf %41 : vector<1x64x128xf32> to vector<1x64x128xbf16>
    %c0_40 = arith.constant 0 : index
    %c0_41 = arith.constant 0 : index
    %c0_42 = arith.constant 0 : index
    %43 = vector.load %arg5[%c0_40, %c0_41, %c0_42] : memref<1x64x128xbf16, #tpu.memory_space<vmem>>, vector<1x64x128xbf16>
    tpu.vector_store %arg5[%c0_40, %c0_41, %c0_42], %42 {strides = array<i32>} : memref<1x64x128xbf16, #tpu.memory_space<vmem>>, vector<1x64x128xbf16>,
    %cst_43 = arith.constant dense<0.000000e+00> : vector<128xf32>
    %44 = vector.multi_reduction <add>, %40, %cst_43 [0] : vector<64x128xf32> to vector<128xf32>
    %45 = vector.shape_cast %44 : vector<128xf32> to vector<1x1x128xf32>
    %c0_44 = arith.constant 0 : index
    %c0_45 = arith.constant 0 : index
    %c0_46 = arith.constant 0 : index
    %46 = vector.load %arg6[%c0_44, %c0_45, %c0_46] : memref<1x1x128xf32, #tpu.memory_space<vmem>>, vector<1x1x128xf32>
    tpu.vector_store %arg6[%c0_44, %c0_45, %c0_46], %45 {strides = array<i32>} : memref<1x1x128xf32, #tpu.memory_space<vmem>>, vector<1x1x128xf32>,
    %47 = arith.mulf %40, %40 : vector<64x128xf32>
    %cst_47 = arith.constant dense<0.000000e+00> : vector<128xf32>
    %48 = vector.multi_reduction <add>, %47, %cst_47 [0] : vector<64x128xf32> to vector<128xf32>
    %49 = vector.shape_cast %48 : vector<128xf32> to vector<1x1x128xf32>
    %c0_48 = arith.constant 0 : index
    %c0_49 = arith.constant 0 : index
    %c0_50 = arith.constant 0 : index
    %50 = vector.load %arg7[%c0_48, %c0_49, %c0_50] : memref<1x1x128xf32, #tpu.memory_space<vmem>>, vector<1x1x128xf32>
    tpu.vector_store %arg7[%c0_48, %c0_49, %c0_50], %49 {strides = array<i32>} : memref<1x1x128xf32, #tpu.memory_space<vmem>>, vector<1x1x128xf32>,
    %c0_51 = arith.constant 0 : index
    %c0_52 = arith.constant 0 : index
    %c0_53 = arith.constant 0 : index
    %51 = vector.load %arg3[%c0_51, %c0_52, %c0_53] : memref<1x64x128xbf16, #tpu.memory_space<vmem>>, vector<1x64x128xbf16>
    %52 = vector.shape_cast %51 : vector<1x64x128xbf16> to vector<64x128xbf16>
    %c0_54 = arith.constant 0 : index
    %c0_55 = arith.constant 0 : index
    %53 = vector.load %arg4[%c0_54, %c0_55] : memref<128x128xbf16, #tpu.memory_space<vmem>>, vector<128x128xbf16>
    %cst_56 = arith.constant dense<0.000000e+00> : vector<64x128xf32>
    %54 = tpu.matmul %52, %53, %cst_56 {dimension_numbers = #tpu.dot_dimension_numbers<[1], [0], [0], [1], [0, 0, 1, 1], [], []>} : vector<64x128xbf16>, vector<128x128xbf16>, vector<64x128xf32> -> vector<64x128xf32>
    %55 = vector.shape_cast %54 : vector<64x128xf32> to vector<1x64x128xf32>
    %56 = arith.truncf %55 : vector<1x64x128xf32> to vector<1x64x128xbf16>
    %c0_57 = arith.constant 0 : index
    %c0_58 = arith.constant 0 : index
    %c0_59 = arith.constant 0 : index
    %57 = vector.load %arg8[%c0_57, %c0_58, %c0_59] : memref<1x64x128xbf16, #tpu.memory_space<vmem>>, vector<1x64x128xbf16>
    tpu.vector_store %arg8[%c0_57, %c0_58, %c0_59], %56 {strides = array<i32>} : memref<1x64x128xbf16, #tpu.memory_space<vmem>>, vector<1x64x128xbf16>,
    %cst_60 = arith.constant dense<0.000000e+00> : vector<128xf32>
    %58 = vector.multi_reduction <add>, %54, %cst_60 [0] : vector<64x128xf32> to vector<128xf32>
    %59 = vector.shape_cast %58 : vector<128xf32> to vector<1x1x128xf32>
    %c0_61 = arith.constant 0 : index
    %c0_62 = arith.constant 0 : index
    %c0_63 = arith.constant 0 : index
    %60 = vector.load %arg9[%c0_61, %c0_62, %c0_63] : memref<1x1x128xf32, #tpu.memory_space<vmem>>, vector<1x1x128xf32>
    tpu.vector_store %arg9[%c0_61, %c0_62, %c0_63], %59 {strides = array<i32>} : memref<1x1x128xf32, #tpu.memory_space<vmem>>, vector<1x1x128xf32>,
    %61 = arith.mulf %54, %54 : vector<64x128xf32>
    %cst_64 = arith.constant dense<0.000000e+00> : vector<128xf32>
    %62 = vector.multi_reduction <add>, %61, %cst_64 [0] : vector<64x128xf32> to vector<128xf32>
    %63 = vector.shape_cast %62 : vector<128xf32> to vector<1x1x128xf32>
    %c0_65 = arith.constant 0 : index
    %c0_66 = arith.constant 0 : index
    %c0_67 = arith.constant 0 : index
    %64 = vector.load %arg10[%c0_65, %c0_66, %c0_67] : memref<1x1x128xf32, #tpu.memory_space<vmem>>, vector<1x1x128xf32>
    tpu.vector_store %arg10[%c0_65, %c0_66, %c0_67], %63 {strides = array<i32>} : memref<1x1x128xf32, #tpu.memory_space<vmem>>, vector<1x1x128xf32>,
    return
  }
  func.func @transform_0(%arg0: i32) -> (i32, i32, i32, i32) {
    %c0_i32 = arith.constant 0 : i32
    %c0_i32_0 = arith.constant 0 : i32
    %c0_i32_1 = arith.constant 0 : i32
    %c0_i32_2 = arith.constant 0 : i32
    return %arg0, %c0_i32, %c0_i32_0, %c0_i32_1 : i32, i32, i32, i32
  }
  func.func @transform_1(%arg0: i32) -> (i32, i32, i32) {
    %c0_i32 = arith.constant 0 : i32
    %c0_i32_0 = arith.constant 0 : i32
    %c0_i32_1 = arith.constant 0 : i32
    %c0_i32_2 = arith.constant 0 : i32
    return %c0_i32, %c0_i32_0, %c0_i32_1 : i32, i32, i32
  }
  func.func @transform_2(%arg0: i32) -> (i32, i32, i32) {
    %c0_i32 = arith.constant 0 : i32
    %c0_i32_0 = arith.constant 0 : i32
    %c0_i32_1 = arith.constant 0 : i32
    return %arg0, %c0_i32, %c0_i32_0 : i32, i32, i32
  }
  func.func @transform_3(%arg0: i32) -> (i32, i32) {
    %c0_i32 = arith.constant 0 : i32
    %c0_i32_0 = arith.constant 0 : i32
    %c0_i32_1 = arith.constant 0 : i32
    return %c0_i32, %c0_i32_0 : i32, i32
  }
  func.func @transform_4(%arg0: i32) -> (i32, i32, i32) {
    %c0_i32 = arith.constant 0 : i32
    %c0_i32_0 = arith.constant 0 : i32
    %c0_i32_1 = arith.constant 0 : i32
    return %arg0, %c0_i32, %c0_i32_0 : i32, i32, i32
  }
  func.func @transform_5(%arg0: i32) -> (i32, i32, i32) {
    %c0_i32 = arith.constant 0 : i32
    %c0_i32_0 = arith.constant 0 : i32
    %c0_i32_1 = arith.constant 0 : i32
    return %arg0, %c0_i32, %c0_i32_0 : i32, i32, i32
  }
  func.func @transform_6(%arg0: i32) -> (i32, i32, i32) {
    %c0_i32 = arith.constant 0 : i32
    %c0_i32_0 = arith.constant 0 : i32
    %c0_i32_1 = arith.constant 0 : i32
    return %arg0, %c0_i32, %c0_i32_0 : i32, i32, i32
  }
  func.func @transform_7(%arg0: i32) -> (i32, i32, i32) {
    %c0_i32 = arith.constant 0 : i32
    %c0_i32_0 = arith.constant 0 : i32
    %c0_i32_1 = arith.constant 0 : i32
    return %arg0, %c0_i32, %c0_i32_0 : i32, i32, i32
  }
  func.func @transform_8(%arg0: i32) -> (i32, i32, i32) {
    %c0_i32 = arith.constant 0 : i32
    %c0_i32_0 = arith.constant 0 : i32
    %c0_i32_1 = arith.constant 0 : i32
    return %arg0, %c0_i32, %c0_i32_0 : i32, i32, i32
  }
  func.func @transform_9(%arg0: i32) -> (i32, i32, i32) {
    %c0_i32 = arith.constant 0 : i32
    %c0_i32_0 = arith.constant 0 : i32
    %c0_i32_1 = arith.constant 0 : i32
    return %arg0, %c0_i32, %c0_i32_0 : i32, i32, i32
  }
}

module attributes {stable_mosaic.version = 11 : i64} {
  func.func @_back_kernel(%arg0: i32, %arg1: memref<1x64x128xbf16, #tpu.memory_space<vmem>>, %arg2: memref<3x384x128xbf16, #tpu.memory_space<vmem>>, %arg3: memref<1x64x128xbf16, #tpu.memory_space<vmem>>, %arg4: memref<1x128xf32, #tpu.memory_space<vmem>>, %arg5: memref<1x128xf32, #tpu.memory_space<vmem>>, %arg6: memref<1x128xf32, #tpu.memory_space<vmem>>, %arg7: memref<1x128xf32, #tpu.memory_space<vmem>>, %arg8: memref<1x128xf32, #tpu.memory_space<vmem>>, %arg9: memref<1x128xf32, #tpu.memory_space<vmem>>, %arg10: memref<1x64x128xbf16, #tpu.memory_space<vmem>>, %arg11: memref<10x10x128xbf16, #tpu.memory_space<vmem>>) attributes {dimension_semantics = [#tpu.dimension_semantics<parallel>], iteration_bounds = array<i64: 2>, scalar_prefetch = 0 : i64, scratch_operands = 1 : i64, tpu.core_type = #tpu.core_type<tc>, window_params = [{transform_indices = @transform_0, window_bounds = array<i64: 1, 64, 128>}, {pipeline_mode = #tpu.pipeline_mode<synchronous>, transform_indices = @transform_1, window_bounds = array<i64: 3, 384, 128>}, {transform_indices = @transform_2, window_bounds = array<i64: 1, 64, 128>}, {pipeline_mode = #tpu.pipeline_mode<synchronous>, transform_indices = @transform_3, window_bounds = array<i64: 1, 128>}, {pipeline_mode = #tpu.pipeline_mode<synchronous>, transform_indices = @transform_4, window_bounds = array<i64: 1, 128>}, {pipeline_mode = #tpu.pipeline_mode<synchronous>, transform_indices = @transform_5, window_bounds = array<i64: 1, 128>}, {pipeline_mode = #tpu.pipeline_mode<synchronous>, transform_indices = @transform_6, window_bounds = array<i64: 1, 128>}, {pipeline_mode = #tpu.pipeline_mode<synchronous>, transform_indices = @transform_7, window_bounds = array<i64: 1, 128>}, {pipeline_mode = #tpu.pipeline_mode<synchronous>, transform_indices = @transform_8, window_bounds = array<i64: 1, 128>}, {transform_indices = @transform_9, window_bounds = array<i64: 1, 64, 128>}]} {
    %c0 = arith.constant 0 : index
    %c0_0 = arith.constant 0 : index
    %c0_1 = arith.constant 0 : index
    %0 = vector.load %arg1[%c0, %c0_0, %c0_1] : memref<1x64x128xbf16, #tpu.memory_space<vmem>>, vector<1x64x128xbf16>
    %1 = vector.shape_cast %0 : vector<1x64x128xbf16> to vector<64x128xbf16>
    %2 = arith.extf %1 : vector<64x128xbf16> to vector<64x128xf32>
    %c0_2 = arith.constant 0 : index
    %c0_3 = arith.constant 0 : index
    %3 = vector.load %arg4[%c0_2, %c0_3] : memref<1x128xf32, #tpu.memory_space<vmem>>, vector<1x128xf32>
    %4 = vector.broadcast %3 : vector<1x128xf32> to vector<64x128xf32>
    %5 = arith.mulf %2, %4 : vector<64x128xf32>
    %c0_4 = arith.constant 0 : index
    %c0_5 = arith.constant 0 : index
    %6 = vector.load %arg5[%c0_4, %c0_5] : memref<1x128xf32, #tpu.memory_space<vmem>>, vector<1x128xf32>
    %7 = vector.broadcast %6 : vector<1x128xf32> to vector<64x128xf32>
    %8 = arith.addf %5, %7 : vector<64x128xf32>
    %cst = arith.constant 0.000000e+00 : f32
    %9 = vector.broadcast %cst : f32 to vector<64x128xf32>
    %10 = arith.maximumf %8, %9 : vector<64x128xf32>
    %c0_6 = arith.constant 0 : index
    %c0_7 = arith.constant 0 : index
    %11 = vector.load %arg6[%c0_6, %c0_7] : memref<1x128xf32, #tpu.memory_space<vmem>>, vector<1x128xf32>
    %12 = vector.broadcast %11 : vector<1x128xf32> to vector<64x128xf32>
    %13 = arith.mulf %10, %12 : vector<64x128xf32>
    %c0_8 = arith.constant 0 : index
    %c0_9 = arith.constant 0 : index
    %14 = vector.load %arg7[%c0_8, %c0_9] : memref<1x128xf32, #tpu.memory_space<vmem>>, vector<1x128xf32>
    %15 = vector.broadcast %14 : vector<1x128xf32> to vector<64x128xf32>
    %16 = arith.addf %13, %15 : vector<64x128xf32>
    %cst_10 = arith.constant 0.000000e+00 : bf16
    %17 = vector.broadcast %cst_10 : bf16 to vector<10x10x128xbf16>
    %c0_11 = arith.constant 0 : index
    %c0_12 = arith.constant 0 : index
    %c0_13 = arith.constant 0 : index
    %18 = vector.load %arg11[%c0_11, %c0_12, %c0_13] : memref<10x10x128xbf16, #tpu.memory_space<vmem>>, vector<10x10x128xbf16>
    tpu.vector_store %arg11[%c0_11, %c0_12, %c0_13], %17 {strides = array<i32>} : memref<10x10x128xbf16, #tpu.memory_space<vmem>>, vector<10x10x128xbf16>,
    %19 = vector.shape_cast %16 : vector<64x128xf32> to vector<8x8x128xf32>
    %20 = arith.truncf %19 : vector<8x8x128xf32> to vector<8x8x128xbf16>
    %c1 = arith.constant 1 : index
    %c1_14 = arith.constant 1 : index
    %c0_15 = arith.constant 0 : index
    %21 = vector.load %arg11[%c1, %c1_14, %c0_15] : memref<10x10x128xbf16, #tpu.memory_space<vmem>>, vector<8x8x128xbf16>
    tpu.vector_store %arg11[%c1, %c1_14, %c0_15], %20 {strides = array<i32>} : memref<10x10x128xbf16, #tpu.memory_space<vmem>>, vector<8x8x128xbf16>,
    %c0_16 = arith.constant 0 : index
    %c0_17 = arith.constant 0 : index
    %c0_18 = arith.constant 0 : index
    %22 = vector.load %arg11[%c0_16, %c0_17, %c0_18] : memref<10x10x128xbf16, #tpu.memory_space<vmem>>, vector<8x8x128xbf16>
    %23 = vector.shape_cast %22 : vector<8x8x128xbf16> to vector<64x128xbf16>
    %c0_19 = arith.constant 0 : index
    %c1_20 = arith.constant 1 : index
    %c0_21 = arith.constant 0 : index
    %24 = vector.load %arg11[%c0_19, %c1_20, %c0_21] : memref<10x10x128xbf16, #tpu.memory_space<vmem>>, vector<8x8x128xbf16>
    %25 = vector.shape_cast %24 : vector<8x8x128xbf16> to vector<64x128xbf16>
    %c0_22 = arith.constant 0 : index
    %c2 = arith.constant 2 : index
    %c0_23 = arith.constant 0 : index
    %26 = vector.load %arg11[%c0_22, %c2, %c0_23] : memref<10x10x128xbf16, #tpu.memory_space<vmem>>, vector<8x8x128xbf16>
    %27 = vector.shape_cast %26 : vector<8x8x128xbf16> to vector<64x128xbf16>
    %28 = tpu.concatenate %23, %25, %27 in 1 : vector<64x128xbf16>, vector<64x128xbf16>, vector<64x128xbf16> -> vector<64x384xbf16>
    %c0_24 = arith.constant 0 : index
    %c0_25 = arith.constant 0 : index
    %c0_26 = arith.constant 0 : index
    %29 = vector.load %arg2[%c0_24, %c0_25, %c0_26] : memref<3x384x128xbf16, #tpu.memory_space<vmem>>, vector<1x384x128xbf16>
    %30 = vector.shape_cast %29 : vector<1x384x128xbf16> to vector<384x128xbf16>
    %cst_27 = arith.constant dense<0.000000e+00> : vector<64x128xf32>
    %31 = tpu.matmul %28, %30, %cst_27 {dimension_numbers = #tpu.dot_dimension_numbers<[1], [0], [0], [1], [0, 0, 1, 1], [], []>} : vector<64x384xbf16>, vector<384x128xbf16>, vector<64x128xf32> -> vector<64x128xf32>
    %c1_28 = arith.constant 1 : index
    %c0_29 = arith.constant 0 : index
    %c0_30 = arith.constant 0 : index
    %32 = vector.load %arg11[%c1_28, %c0_29, %c0_30] : memref<10x10x128xbf16, #tpu.memory_space<vmem>>, vector<8x8x128xbf16>
    %33 = vector.shape_cast %32 : vector<8x8x128xbf16> to vector<64x128xbf16>
    %c1_31 = arith.constant 1 : index
    %c1_32 = arith.constant 1 : index
    %c0_33 = arith.constant 0 : index
    %34 = vector.load %arg11[%c1_31, %c1_32, %c0_33] : memref<10x10x128xbf16, #tpu.memory_space<vmem>>, vector<8x8x128xbf16>
    %35 = vector.shape_cast %34 : vector<8x8x128xbf16> to vector<64x128xbf16>
    %c1_34 = arith.constant 1 : index
    %c2_35 = arith.constant 2 : index
    %c0_36 = arith.constant 0 : index
    %36 = vector.load %arg11[%c1_34, %c2_35, %c0_36] : memref<10x10x128xbf16, #tpu.memory_space<vmem>>, vector<8x8x128xbf16>
    %37 = vector.shape_cast %36 : vector<8x8x128xbf16> to vector<64x128xbf16>
    %38 = tpu.concatenate %33, %35, %37 in 1 : vector<64x128xbf16>, vector<64x128xbf16>, vector<64x128xbf16> -> vector<64x384xbf16>
    %c1_37 = arith.constant 1 : index
    %c0_38 = arith.constant 0 : index
    %c0_39 = arith.constant 0 : index
    %39 = vector.load %arg2[%c1_37, %c0_38, %c0_39] : memref<3x384x128xbf16, #tpu.memory_space<vmem>>, vector<1x384x128xbf16>
    %40 = vector.shape_cast %39 : vector<1x384x128xbf16> to vector<384x128xbf16>
    %cst_40 = arith.constant dense<0.000000e+00> : vector<64x128xf32>
    %41 = tpu.matmul %38, %40, %cst_40 {dimension_numbers = #tpu.dot_dimension_numbers<[1], [0], [0], [1], [0, 0, 1, 1], [], []>} : vector<64x384xbf16>, vector<384x128xbf16>, vector<64x128xf32> -> vector<64x128xf32>
    %42 = arith.addf %31, %41 : vector<64x128xf32>
    %c2_41 = arith.constant 2 : index
    %c0_42 = arith.constant 0 : index
    %c0_43 = arith.constant 0 : index
    %43 = vector.load %arg11[%c2_41, %c0_42, %c0_43] : memref<10x10x128xbf16, #tpu.memory_space<vmem>>, vector<8x8x128xbf16>
    %44 = vector.shape_cast %43 : vector<8x8x128xbf16> to vector<64x128xbf16>
    %c2_44 = arith.constant 2 : index
    %c1_45 = arith.constant 1 : index
    %c0_46 = arith.constant 0 : index
    %45 = vector.load %arg11[%c2_44, %c1_45, %c0_46] : memref<10x10x128xbf16, #tpu.memory_space<vmem>>, vector<8x8x128xbf16>
    %46 = vector.shape_cast %45 : vector<8x8x128xbf16> to vector<64x128xbf16>
    %c2_47 = arith.constant 2 : index
    %c2_48 = arith.constant 2 : index
    %c0_49 = arith.constant 0 : index
    %47 = vector.load %arg11[%c2_47, %c2_48, %c0_49] : memref<10x10x128xbf16, #tpu.memory_space<vmem>>, vector<8x8x128xbf16>
    %48 = vector.shape_cast %47 : vector<8x8x128xbf16> to vector<64x128xbf16>
    %49 = tpu.concatenate %44, %46, %48 in 1 : vector<64x128xbf16>, vector<64x128xbf16>, vector<64x128xbf16> -> vector<64x384xbf16>
    %c2_50 = arith.constant 2 : index
    %c0_51 = arith.constant 0 : index
    %c0_52 = arith.constant 0 : index
    %50 = vector.load %arg2[%c2_50, %c0_51, %c0_52] : memref<3x384x128xbf16, #tpu.memory_space<vmem>>, vector<1x384x128xbf16>
    %51 = vector.shape_cast %50 : vector<1x384x128xbf16> to vector<384x128xbf16>
    %cst_53 = arith.constant dense<0.000000e+00> : vector<64x128xf32>
    %52 = tpu.matmul %49, %51, %cst_53 {dimension_numbers = #tpu.dot_dimension_numbers<[1], [0], [0], [1], [0, 0, 1, 1], [], []>} : vector<64x384xbf16>, vector<384x128xbf16>, vector<64x128xf32> -> vector<64x128xf32>
    %53 = arith.addf %42, %52 : vector<64x128xf32>
    %c0_54 = arith.constant 0 : index
    %c0_55 = arith.constant 0 : index
    %c0_56 = arith.constant 0 : index
    %54 = vector.load %arg3[%c0_54, %c0_55, %c0_56] : memref<1x64x128xbf16, #tpu.memory_space<vmem>>, vector<1x64x128xbf16>
    %55 = vector.shape_cast %54 : vector<1x64x128xbf16> to vector<64x128xbf16>
    %56 = arith.extf %55 : vector<64x128xbf16> to vector<64x128xf32>
    %c0_57 = arith.constant 0 : index
    %c0_58 = arith.constant 0 : index
    %57 = vector.load %arg8[%c0_57, %c0_58] : memref<1x128xf32, #tpu.memory_space<vmem>>, vector<1x128xf32>
    %58 = vector.broadcast %57 : vector<1x128xf32> to vector<64x128xf32>
    %59 = arith.mulf %56, %58 : vector<64x128xf32>
    %c0_59 = arith.constant 0 : index
    %c0_60 = arith.constant 0 : index
    %60 = vector.load %arg9[%c0_59, %c0_60] : memref<1x128xf32, #tpu.memory_space<vmem>>, vector<1x128xf32>
    %61 = vector.broadcast %60 : vector<1x128xf32> to vector<64x128xf32>
    %62 = arith.addf %59, %61 : vector<64x128xf32>
    %63 = arith.addf %53, %62 : vector<64x128xf32>
    %cst_61 = arith.constant 0.000000e+00 : f32
    %64 = vector.broadcast %cst_61 : f32 to vector<64x128xf32>
    %65 = arith.maximumf %63, %64 : vector<64x128xf32>
    %66 = vector.shape_cast %65 : vector<64x128xf32> to vector<1x64x128xf32>
    %67 = arith.truncf %66 : vector<1x64x128xf32> to vector<1x64x128xbf16>
    %c0_62 = arith.constant 0 : index
    %c0_63 = arith.constant 0 : index
    %c0_64 = arith.constant 0 : index
    %68 = vector.load %arg10[%c0_62, %c0_63, %c0_64] : memref<1x64x128xbf16, #tpu.memory_space<vmem>>, vector<1x64x128xbf16>
    tpu.vector_store %arg10[%c0_62, %c0_63, %c0_64], %67 {strides = array<i32>} : memref<1x64x128xbf16, #tpu.memory_space<vmem>>, vector<1x64x128xbf16>,
    return
  }
  func.func @transform_0(%arg0: i32) -> (i32, i32, i32) {
    %c0_i32 = arith.constant 0 : i32
    %c0_i32_0 = arith.constant 0 : i32
    %c0_i32_1 = arith.constant 0 : i32
    return %arg0, %c0_i32, %c0_i32_0 : i32, i32, i32
  }
  func.func @transform_1(%arg0: i32) -> (i32, i32, i32) {
    %c0_i32 = arith.constant 0 : i32
    %c0_i32_0 = arith.constant 0 : i32
    %c0_i32_1 = arith.constant 0 : i32
    %c0_i32_2 = arith.constant 0 : i32
    return %c0_i32, %c0_i32_0, %c0_i32_1 : i32, i32, i32
  }
  func.func @transform_2(%arg0: i32) -> (i32, i32, i32) {
    %c0_i32 = arith.constant 0 : i32
    %c0_i32_0 = arith.constant 0 : i32
    %c0_i32_1 = arith.constant 0 : i32
    return %arg0, %c0_i32, %c0_i32_0 : i32, i32, i32
  }
  func.func @transform_3(%arg0: i32) -> (i32, i32) {
    %c0_i32 = arith.constant 0 : i32
    %c0_i32_0 = arith.constant 0 : i32
    %c0_i32_1 = arith.constant 0 : i32
    return %c0_i32, %c0_i32_0 : i32, i32
  }
  func.func @transform_4(%arg0: i32) -> (i32, i32) {
    %c0_i32 = arith.constant 0 : i32
    %c0_i32_0 = arith.constant 0 : i32
    %c0_i32_1 = arith.constant 0 : i32
    return %c0_i32, %c0_i32_0 : i32, i32
  }
  func.func @transform_5(%arg0: i32) -> (i32, i32) {
    %c0_i32 = arith.constant 0 : i32
    %c0_i32_0 = arith.constant 0 : i32
    %c0_i32_1 = arith.constant 0 : i32
    return %c0_i32, %c0_i32_0 : i32, i32
  }
  func.func @transform_6(%arg0: i32) -> (i32, i32) {
    %c0_i32 = arith.constant 0 : i32
    %c0_i32_0 = arith.constant 0 : i32
    %c0_i32_1 = arith.constant 0 : i32
    return %c0_i32, %c0_i32_0 : i32, i32
  }
  func.func @transform_7(%arg0: i32) -> (i32, i32) {
    %c0_i32 = arith.constant 0 : i32
    %c0_i32_0 = arith.constant 0 : i32
    %c0_i32_1 = arith.constant 0 : i32
    return %c0_i32, %c0_i32_0 : i32, i32
  }
  func.func @transform_8(%arg0: i32) -> (i32, i32) {
    %c0_i32 = arith.constant 0 : i32
    %c0_i32_0 = arith.constant 0 : i32
    %c0_i32_1 = arith.constant 0 : i32
    return %c0_i32, %c0_i32_0 : i32, i32
  }
  func.func @transform_9(%arg0: i32) -> (i32, i32, i32) {
    %c0_i32 = arith.constant 0 : i32
    %c0_i32_0 = arith.constant 0 : i32
    %c0_i32_1 = arith.constant 0 : i32
    return %arg0, %c0_i32, %c0_i32_0 : i32, i32, i32
  }
}

</mosaic_0001>

<llo_original>
// kernel: basic_block_forward.4
$region0: #{basic_block_forward.4}
  #allocation0 [shape = 'u32[]', space=smem, size = 0x4, offset = 0x4, fixed_abs, tag = 'smem constant byte address 0x4 - core index']
  #allocation1 [shape = 'u32[144,128]{1,0:T(1,128)}', space=vmem, size = 0x12000, scoped, tag = 'internal scratch']
  %s0 = inlined_call_operand.vmem [shape: bf16[2,64,128], index: 0, kind: input, shape index: {}]
  %s1 = inlined_call_operand.vmem [shape: f32[1,128], index: 1, kind: input, shape index: {}]
  %s2 = inlined_call_operand.vmem [shape: f32[1,128], index: 2, kind: input, shape index: {}]
  %s3 = inlined_call_operand.vmem [shape: f32[2,1,128], index: 3, kind: output, shape index: {0}]
  %s4 = inlined_call_operand.vmem [shape: f32[2,1,128], index: 4, kind: output, shape index: {1}]
  %5 = xla_tuple %s3, %s4
  %s6 = sld [smem:[#allocation0]]
  $region53: #{basic_block_forward.4} parent=0
    _
  %s8 = ssub.s32 1, %s6
  %s9 = scalar_select 0, %s8, %s6
  loop: start=0, step=1, limit=4
  $region2: #{basic_block_forward.4} parent=0 // loop_pre_header
    _
  $region3: #{basic_block_forward.4} parent=0 // loop_header
    %s11 = sphi 0, %s15
    %p12 = scmp.ge.s32.totalorder %s11, 4
    %s21 = sphi 0, %s23
    %s24 = sphi 0, %s21
    %s25 = sphi 0, %s24
    %s41 = sphi 0, %s25
    %s45 = sphi 0, %s45
    %s47 = sphi 0, %s45
    %s48 = sphi 0, %s47
    %s62 = sphi 0, %s48
    %s66 = sphi 0, %s66
    %s68 = sphi 0, %s66
    %s69 = sphi 0, %s68
    %s83 = sphi 0, %s69
    %s89 = sphi 0, %s91
    %s92 = sphi 0, %s89
    %s93 = sphi 0, %s92
    %s109 = sphi 0, %s93
    %s115 = sphi 0, %s117
    %s118 = sphi 0, %s115
    %s119 = sphi 0, %s118
    %s135 = sphi 0, %s119
  $region4: #{basic_block_forward.4} parent=0 // loop_header_branch
    %14 = sbr.rel (%p12) target = $region8
  $region5: #{basic_block_forward.4} parent=0 // loop_body
    %s16 = ssub.s32 %s11, 1
    %s17 = ssub.s32 %s11, 2
    %s18 = sadd.s32 %s11, 1
    %s19 = ssub.s32 %s11, %s18
    %p20 = scmp.eq.s32.totalorder %s19, 0
    %s22 = sadd.s32 %s21, 1
    %s23 = scalar_select %p20, %s21, %s22
    %p26 = pneg %p20
    %p27 = scmp.eq.s32.totalorder %s11, 1
    %p28 = por %p26, %p27
    %p29 = scmp.ne.s32.totalorder %s21, %s24
    %p30 = scmp.eq.s32.totalorder %s11, 0
    %p31 = por %p29, %p30
    %p32 = scmp.ne.s32.totalorder %s21, %s24
    %p33 = scmp.eq.s32.totalorder %s16, 1
    %p34 = por %p32, %p33
    %p35 = scmp.ne.s32.totalorder %s24, %s25
    %p36 = scmp.eq.s32.totalorder %s16, 0
    %p37 = por %p35, %p36
    %p38 = scmp.ne.s32.totalorder %s24, %s25
    %p39 = scmp.eq.s32.totalorder %s17, 1
    %p40 = por %p38, %p39
    %p42 = scmp.ne.s32.totalorder %s25, %s41
    %p43 = scmp.eq.s32.totalorder %s17, 0
    %p44 = por %p42, %p43
    %s46 = sadd.s32 %s45, 1
    %p49 = scmp.eq.s32.totalorder %s11, 1
    %p50 = scmp.ne.s32.totalorder %s45, %s47
    %p51 = scmp.eq.s32.totalorder %s11, 0
    %p52 = por %p50, %p51
    %p53 = scmp.ne.s32.totalorder %s45, %s47
    %p54 = scmp.eq.s32.totalorder %s16, 1
    %p55 = por %p53, %p54
    %p56 = scmp.ne.s32.totalorder %s47, %s48
    %p57 = scmp.eq.s32.totalorder %s16, 0
    %p58 = por %p56, %p57
    %p59 = scmp.ne.s32.totalorder %s47, %s48
    %p60 = scmp.eq.s32.totalorder %s17, 1
    %p61 = por %p59, %p60
    %p63 = scmp.ne.s32.totalorder %s48, %s62
    %p64 = scmp.eq.s32.totalorder %s17, 0
    %p65 = por %p63, %p64
    %s67 = sadd.s32 %s66, 1
    %p70 = scmp.eq.s32.totalorder %s11, 1
    %p71 = scmp.ne.s32.totalorder %s66, %s68
    %p72 = scmp.eq.s32.totalorder %s11, 0
    %p73 = por %p71, %p72
    %p74 = scmp.ne.s32.totalorder %s66, %s68
    %p75 = scmp.eq.s32.totalorder %s16, 1
    %p76 = por %p74, %p75
    %p77 = scmp.ne.s32.totalorder %s68, %s69
    %p78 = scmp.eq.s32.totalorder %s16, 0
    %p79 = por %p77, %p78
    %p80 = scmp.ne.s32.totalorder %s68, %s69
    %p81 = scmp.eq.s32.totalorder %s17, 1
    %p82 = por %p80, %p81
    %p84 = scmp.ne.s32.totalorder %s69, %s83
    %p85 = scmp.eq.s32.totalorder %s17, 0
    %p86 = por %p84, %p85
    %s87 = ssub.s32 %s11, %s18
    %p88 = scmp.eq.s32.totalorder %s87, 0
    %s90 = sadd.s32 %s89, 1
    %s91 = scalar_select %p88, %s89, %s90
    %p94 = pneg %p88
    %p95 = scmp.eq.s32.totalorder %s11, 1
    %p96 = por %p94, %p95
    %p97 = scmp.ne.s32.totalorder %s89, %s92
    %p98 = scmp.eq.s32.totalorder %s11, 0
    %p99 = por %p97, %p98
    %p100 = scmp.ne.s32.totalorder %s89, %s92
    %p101 = scmp.eq.s32.totalorder %s16, 1
    %p102 = por %p100, %p101
    %p103 = scmp.ne.s32.totalorder %s92, %s93
    %p104 = scmp.eq.s32.totalorder %s16, 0
    %p105 = por %p103, %p104
    %p106 = scmp.ne.s32.totalorder %s92, %s93
    %p107 = scmp.eq.s32.totalorder %s17, 1
    %p108 = por %p106, %p107
    %p110 = scmp.ne.s32.totalorder %s93, %s109
    %p111 = scmp.eq.s32.totalorder %s17, 0
    %p112 = por %p110, %p111
    %s113 = ssub.s32 %s11, %s18
    %p114 = scmp.eq.s32.totalorder %s113, 0
    %s116 = sadd.s32 %s115, 1
    %s117 = scalar_select %p114, %s115, %s116
    %p120 = pneg %p114
    %p121 = scmp.eq.s32.totalorder %s11, 1
    %p122 = por %p120, %p121
    %p123 = scmp.ne.s32.totalorder %s115, %s118
    %p124 = scmp.eq.s32.totalorder %s11, 0
    %p125 = por %p123, %p124
    %p126 = scmp.ne.s32.totalorder %s115, %s118
    %p127 = scmp.eq.s32.totalorder %s16, 1
    %p128 = por %p126, %p127
    %p129 = scmp.ne.s32.totalorder %s118, %s119
    %p130 = scmp.eq.s32.totalorder %s16, 0
    %p131 = por %p129, %p130
    %p132 = scmp.ne.s32.totalorder %s118, %s119
    %p133 = scmp.eq.s32.totalorder %s17, 1
    %p134 = por %p132, %p133
    %p136 = scmp.ne.s32.totalorder %s119, %s135
    %p137 = scmp.eq.s32.totalorder %s17, 0
    %p138 = por %p136, %p137
    %p139 = scmp.le.s32.totalorder 1, %s11
    %p140 = scmp.lt.s32.totalorder %s11, 3
    %p141 = pnand %p139, %p140
    %p142 = pneg %p141
    // Predicated region
    $region9: #{basic_block_forward.4} parent=5 // pred_check
      _
    $region10: #{basic_block_forward.4} parent=5 // pred_check_branch
      %144 = sbr.rel (%p141) target = $region12
    $region11: #{basic_block_forward.4} parent=5 // pred_region
      %s145 = ssub.s32 %s11, 1
      // Predicated region
      $region13: #{basic_block_forward.4} parent=11 // pred_check
        %p146 = pneg %p58
      $region14: #{basic_block_forward.4} parent=11 // pred_check_branch
        %148 = sbr.rel (%p146) target = $region16
      $region15: #{basic_block_forward.4} parent=11 // pred_region
        _
      $region16: #{basic_block_forward.4} parent=11 // pred_fallthru
        _
      // Predicated region
      $region17: #{basic_block_forward.4} parent=11 // pred_check
        %p149 = pneg %p79
      $region18: #{basic_block_forward.4} parent=11 // pred_check_branch
        %151 = sbr.rel (%p149) target = $region20
      $region19: #{basic_block_forward.4} parent=11 // pred_region
        _
      $region20: #{basic_block_forward.4} parent=11 // pred_fallthru
        _
    $region12: #{basic_block_forward.4} parent=5 // pred_fallthru
      _
    %p152 = scmp.lt.s32.totalorder %s11, 2
    // Predicated region
    $region21: #{basic_block_forward.4} parent=5 // pred_check
      %p153 = pneg %p152
    $region22: #{basic_block_forward.4} parent=5 // pred_check_branch
      %155 = sbr.rel (%p153) target = $region24
    $region23: #{basic_block_forward.4} parent=5 // pred_region
      // Predicated region
      $region25: #{basic_block_forward.4} parent=23 // pred_check
        %p156 = pneg %p31
      $region26: #{basic_block_forward.4} parent=23 // pred_check_branch
        %158 = sbr.rel (%p156) target = $region28
      $region27: #{basic_block_forward.4} parent=23 // pred_region
        %p159 = scmp.lt.s32.totalorder %s11, 1
        %s160 = scalar_select %p159, %s11, 1
        %s161 = smul.addr %s160, 8
        %s162 = smul.addr %s161, 4
        %s163 = scalar_lea.vmem %s0, %s162
      $region28: #{basic_block_forward.4} parent=23 // pred_fallthru
        _
    $region24: #{basic_block_forward.4} parent=5 // pred_fallthru
      _
    %p164 = scmp.le.s32.totalorder 1, %s11
    %p165 = scmp.lt.s32.totalorder %s11, 3
    %p166 = pnand %p164, %p165
    %p167 = pneg %p166
    // Predicated region
    $region29: #{basic_block_forward.4} parent=5 // pred_check
      _
    $region30: #{basic_block_forward.4} parent=5 // pred_check_branch
      %169 = sbr.rel (%p166) target = $region32
    $region31: #{basic_block_forward.4} parent=5 // pred_region
      %s170 = ssub.s32 %s11, 1
      %p171 = scmp.lt.s32.totalorder %s16, 1
      %s172 = scalar_select %p171, %s16, 1
      %s173 = smul.addr %s172, 8
      %s174 = smul.addr %s173, 4
      %s175 = scalar_lea.vmem %s0, %s174
      %p176 = pneg %p37
      %p177 = pneg %p34
      %p178 = pneg %p58
      %p179 = pneg %p55
      %p180 = pneg %p79
      %p181 = pneg %p76
      %p182 = pneg %p105
      %p183 = pneg %p102
      %p184 = scmp.lt.s32.totalorder %s16, 1
      %s185 = scalar_select %p184, %s16, 1
      %s186 = scalar_lea.vmem %s3, %s185
      %p187 = pneg %p131
      %p188 = pneg %p128
      %p189 = scmp.lt.s32.totalorder %s16, 1
      %s190 = scalar_select %p189, %s16, 1
      %s191 = scalar_lea.vmem %s4, %s190
      %p192 = scmp.lt.s32.totalorder %s16, 1
      %s193 = scalar_select %p192, %s16, 1
      %s194 = smul.addr %s193, 8
      %s195 = smul.addr %s194, 4
      %s196 = scalar_lea.vmem %s0, %s195
      %p197 = scmp.lt.s32.totalorder %s16, 1
      %s198 = scalar_select %p197, %s16, 1
      %s199 = scalar_lea.vmem %s3, %s198
      %p200 = scmp.lt.s32.totalorder %s16, 1
      %s201 = scalar_select %p200, %s16, 1
      %s202 = scalar_lea.vmem %s4, %s201
      %v203 = vld [vmem:[%s196] sm:$0xf]
      %v204 = vld [vmem:[%s196 + $0x4] sm:$0xf]
      %v205 = vld [vmem:[%s196 + $0x8] sm:$0xf]
      %v206 = vld [vmem:[%s196 + $0xc] sm:$0xf]
      %v207 = vld [vmem:[%s196 + $0x10] sm:$0xf]
      %v208 = vld [vmem:[%s196 + $0x14] sm:$0xf]
      %v209 = vld [vmem:[%s196 + $0x18] sm:$0xf]
      %v210 = vld [vmem:[%s196 + $0x1c] sm:$0xf]
      %v211 = vunpack.c.l.bf16 %v203
      %v212 = vunpack.c.l.bf16 %v204
      %v213 = vunpack.c.l.bf16 %v205
      %v214 = vunpack.c.l.bf16 %v206
      %v215 = vunpack.c.l.bf16 %v207
      %v216 = vunpack.c.l.bf16 %v208
      %v217 = vunpack.c.l.bf16 %v209
      %v218 = vunpack.c.l.bf16 %v210
      %v219 = vld [vmem:[%s1] sm:$0x1]
      %v221 = vlaneseq
      %v222 = vshrl.u32 %v221, 7
      %v223 = vsub.s32 0, %v222
      %v224 = vrot.slane %v219, %v223
      %v226 = vmul.f32 %v211, %v224
      %v227 = vmul.f32 %v212, %v224
      %v228 = vmul.f32 %v213, %v224
      %v229 = vmul.f32 %v214, %v224
      %v230 = vmul.f32 %v215, %v224
      %v231 = vmul.f32 %v216, %v224
      %v232 = vmul.f32 %v217, %v224
      %v233 = vmul.f32 %v218, %v224
      %v234 = vld [vmem:[%s2] sm:$0x1]
      %v236 = vlaneseq
      %v237 = vshrl.u32 %v236, 7
      %v238 = vsub.s32 0, %v237
      %v239 = vrot.slane %v234, %v238
      %v241 = vadd.f32 %v226, %v239
      %v242 = vadd.f32 %v227, %v239
      %v243 = vadd.f32 %v228, %v239
      %v244 = vadd.f32 %v229, %v239
      %v245 = vadd.f32 %v230, %v239
      %v246 = vadd.f32 %v231, %v239
      %v247 = vadd.f32 %v232, %v239
      %v248 = vadd.f32 %v233, %v239
      %v249 = vmax.f32 %v241, 0.0
      %v250 = vmax.f32 %v242, 0.0
      %v251 = vmax.f32 %v243, 0.0
      %v252 = vmax.f32 %v244, 0.0
      %v253 = vmax.f32 %v245, 0.0
      %v254 = vmax.f32 %v246, 0.0
      %v255 = vmax.f32 %v247, 0.0
      %v256 = vmax.f32 %v248, 0.0
      %v257 = vadd.f32 %v249, %v250
      %v258 = vadd.f32 %v257, %v251
      %v259 = vadd.f32 %v258, %v252
      %v260 = vadd.f32 %v259, %v253
      %v261 = vadd.f32 %v260, %v254
      %v262 = vadd.f32 %v261, %v255
      %v263 = vadd.f32 %v262, %v256
      %v264 = vrot.slane %v263, 4
      %v265 = vadd.f32 %v263, %v264
      %v266 = vrot.slane %v265, 2
      %v267 = vadd.f32 %v265, %v266
      %v268 = vrot.slane %v267, 1
      %v269 = vadd.f32 %v267, %v268
      %270 = vst [vmem:[%s199] sm:$0x1] %v269
      %v271 = vmul.f32 %v249, %v249
      %v272 = vmul.f32 %v250, %v250
      %v273 = vmul.f32 %v251, %v251
      %v274 = vmul.f32 %v252, %v252
      %v275 = vmul.f32 %v253, %v253
      %v276 = vmul.f32 %v254, %v254
      %v277 = vmul.f32 %v255, %v255
      %v278 = vmul.f32 %v256, %v256
      %v279 = vadd.f32 %v271, %v272
      %v280 = vadd.f32 %v279, %v273
      %v281 = vadd.f32 %v280, %v274
      %v282 = vadd.f32 %v281, %v275
      %v283 = vadd.f32 %v282, %v276
      %v284 = vadd.f32 %v283, %v277
      %v285 = vadd.f32 %v284, %v278
      %v286 = vrot.slane %v285, 4
      %v287 = vadd.f32 %v285, %v286
      %v288 = vrot.slane %v287, 2
      %v289 = vadd.f32 %v287, %v288
      %v290 = vrot.slane %v289, 1
      %v291 = vadd.f32 %v289, %v290
      %292 = vst [vmem:[%s202] sm:$0x1] %v291
      %p293 = scmp.lt.s32.totalorder %s16, 1
      %s294 = scalar_select %p293, %s16, 1
      %s295 = scalar_lea.vmem %s3, %s294
      %p296 = scmp.lt.s32.totalorder %s16, 1
      %s297 = scalar_select %p296, %s16, 1
      %s298 = scalar_lea.vmem %s4, %s297
      // Predicated region
      $region33: #{basic_block_forward.4} parent=31 // pred_check
        %p299 = pneg %p102
      $region34: #{basic_block_forward.4} parent=31 // pred_check_branch
        %301 = sbr.rel (%p299) target = $region36
      $region35: #{basic_block_forward.4} parent=31 // pred_region
        _
      $region36: #{basic_block_forward.4} parent=31 // pred_fallthru
        _
      // Predicated region
      $region37: #{basic_block_forward.4} parent=31 // pred_check
        %p302 = pneg %p128
      $region38: #{basic_block_forward.4} parent=31 // pred_check_branch
        %304 = sbr.rel (%p302) target = $region40
      $region39: #{basic_block_forward.4} parent=31 // pred_region
        _
      $region40: #{basic_block_forward.4} parent=31 // pred_fallthru
        _
    $region32: #{basic_block_forward.4} parent=5 // pred_fallthru
      _
    %p305 = scmp.le.s32.totalorder 2, %s11
    // Predicated region
    $region41: #{basic_block_forward.4} parent=5 // pred_check
      %p306 = pneg %p305
    $region42: #{basic_block_forward.4} parent=5 // pred_check_branch
      %308 = sbr.rel (%p306) target = $region44
    $region43: #{basic_block_forward.4} parent=5 // pred_region
      %s309 = ssub.s32 %s11, 2
      // Predicated region
      $region45: #{basic_block_forward.4} parent=43 // pred_check
        %p310 = pneg %p108
      $region46: #{basic_block_forward.4} parent=43 // pred_check_branch
        %312 = sbr.rel (%p310) target = $region48
      $region47: #{basic_block_forward.4} parent=43 // pred_region
        %p313 = scmp.lt.s32.totalorder %s17, 1
        %s314 = scalar_select %p313, %s17, 1
        %s315 = scalar_lea.vmem %s3, %s314
      $region48: #{basic_block_forward.4} parent=43 // pred_fallthru
        _
      // Predicated region
      $region49: #{basic_block_forward.4} parent=43 // pred_check
        %p316 = pneg %p134
      $region50: #{basic_block_forward.4} parent=43 // pred_check_branch
        %318 = sbr.rel (%p316) target = $region52
      $region51: #{basic_block_forward.4} parent=43 // pred_region
        %p319 = scmp.lt.s32.totalorder %s17, 1
        %s320 = scalar_select %p319, %s17, 1
        %s321 = scalar_lea.vmem %s4, %s320
      $region52: #{basic_block_forward.4} parent=43 // pred_fallthru
        _
    $region44: #{basic_block_forward.4} parent=5 // pred_fallthru
      _
  $region6: #{basic_block_forward.4} parent=0 // loop_footer
    %s15 = sadd.s32 1, %s11
  $region7: #{basic_block_forward.4} parent=0 // loop_footer_branch
    %10 = sbr.rel target = $region3
  $region8: #{basic_block_forward.4} parent=0 // loop_exit
    _

// kernel: basic_block_forward.3
$region0: #{basic_block_forward.3}
  #allocation0 [shape = 'u32[]', space=smem, size = 0x4, offset = 0x4, fixed_abs, tag = 'smem constant byte address 0x4 - core index']
  #allocation1 [shape = 'u32[144,128]{1,0:T(1,128)}', space=vmem, size = 0x12000, scoped, tag = 'internal scratch']
  %s0 = inlined_call_operand.vmem [shape: bf16[2,36,9,128], index: 0, kind: input, shape index: {}]
  %s1 = inlined_call_operand.vmem [shape: bf16[3,384,128], index: 1, kind: input, shape index: {}]
  %s2 = inlined_call_operand.vmem [shape: bf16[2,64,128], index: 2, kind: input, shape index: {}]
  %s3 = inlined_call_operand.vmem [shape: bf16[128,128], index: 3, kind: input, shape index: {}]
  %s4 = inlined_call_operand.vmem [shape: bf16[2,64,128], index: 4, kind: output, shape index: {0}]
  %s5 = inlined_call_operand.vmem [shape: f32[2,1,128], index: 5, kind: output, shape index: {1}]
  %s6 = inlined_call_operand.vmem [shape: f32[2,1,128], index: 6, kind: output, shape index: {2}]
  %s7 = inlined_call_operand.vmem [shape: bf16[2,64,128], index: 7, kind: output, shape index: {3}]
  %s8 = inlined_call_operand.vmem [shape: f32[2,1,128], index: 8, kind: output, shape index: {4}]
  %s9 = inlined_call_operand.vmem [shape: f32[2,1,128], index: 9, kind: output, shape index: {5}]
  %10 = xla_tuple %s4, %s5, %s6, %s7, %s8, %s9
  %s11 = sld [smem:[#allocation0]]
  $region89: #{basic_block_forward.3} parent=0
    _
  %s13 = ssub.s32 1, %s11
  %s14 = scalar_select 0, %s13, %s11
  loop: start=0, step=1, limit=4
  $region2: #{basic_block_forward.3} parent=0 // loop_pre_header
    _
  $region3: #{basic_block_forward.3} parent=0 // loop_header
    %s16 = sphi 0, %s20
    %p17 = scmp.ge.s32.totalorder %s16, 4
    %s26 = sphi 0, %s28
    %s29 = sphi 0, %s26
    %s30 = sphi 0, %s29
    %s46 = sphi 0, %s30
    %s50 = sphi 0, %s50
    %s52 = sphi 0, %s50
    %s53 = sphi 0, %s52
    %s67 = sphi 0, %s53
    %s73 = sphi 0, %s75
    %s76 = sphi 0, %s73
    %s77 = sphi 0, %s76
    %s93 = sphi 0, %s77
    %s97 = sphi 0, %s97
    %s99 = sphi 0, %s97
    %s100 = sphi 0, %s99
    %s114 = sphi 0, %s100
    %s120 = sphi 0, %s122
    %s123 = sphi 0, %s120
    %s124 = sphi 0, %s123
    %s140 = sphi 0, %s124
    %s146 = sphi 0, %s148
    %s149 = sphi 0, %s146
    %s150 = sphi 0, %s149
    %s166 = sphi 0, %s150
    %s172 = sphi 0, %s174
    %s175 = sphi 0, %s172
    %s176 = sphi 0, %s175
    %s192 = sphi 0, %s176
    %s198 = sphi 0, %s200
    %s201 = sphi 0, %s198
    %s202 = sphi 0, %s201
    %s218 = sphi 0, %s202
    %s224 = sphi 0, %s226
    %s227 = sphi 0, %s224
    %s228 = sphi 0, %s227
    %s244 = sphi 0, %s228
    %s250 = sphi 0, %s252
    %s253 = sphi 0, %s250
    %s254 = sphi 0, %s253
    %s270 = sphi 0, %s254
  $region4: #{basic_block_forward.3} parent=0 // loop_header_branch
    %19 = sbr.rel (%p17) target = $region8
  $region5: #{basic_block_forward.3} parent=0 // loop_body
    %s21 = ssub.s32 %s16, 1
    %s22 = ssub.s32 %s16, 2
    %s23 = sadd.s32 %s16, 1
    %s24 = ssub.s32 %s16, %s23
    %p25 = scmp.eq.s32.totalorder %s24, 0
    %s27 = sadd.s32 %s26, 1
    %s28 = scalar_select %p25, %s26, %s27
    %p31 = pneg %p25
    %p32 = scmp.eq.s32.totalorder %s16, 1
    %p33 = por %p31, %p32
    %p34 = scmp.ne.s32.totalorder %s26, %s29
    %p35 = scmp.eq.s32.totalorder %s16, 0
    %p36 = por %p34, %p35
    %p37 = scmp.ne.s32.totalorder %s26, %s29
    %p38 = scmp.eq.s32.totalorder %s21, 1
    %p39 = por %p37, %p38
    %p40 = scmp.ne.s32.totalorder %s29, %s30
    %p41 = scmp.eq.s32.totalorder %s21, 0
    %p42 = por %p40, %p41
    %p43 = scmp.ne.s32.totalorder %s29, %s30
    %p44 = scmp.eq.s32.totalorder %s22, 1
    %p45 = por %p43, %p44
    %p47 = scmp.ne.s32.totalorder %s30, %s46
    %p48 = scmp.eq.s32.totalorder %s22, 0
    %p49 = por %p47, %p48
    %s51 = sadd.s32 %s50, 1
    %p54 = scmp.eq.s32.totalorder %s16, 1
    %p55 = scmp.ne.s32.totalorder %s50, %s52
    %p56 = scmp.eq.s32.totalorder %s16, 0
    %p57 = por %p55, %p56
    %p58 = scmp.ne.s32.totalorder %s50, %s52
    %p59 = scmp.eq.s32.totalorder %s21, 1
    %p60 = por %p58, %p59
    %p61 = scmp.ne.s32.totalorder %s52, %s53
    %p62 = scmp.eq.s32.totalorder %s21, 0
    %p63 = por %p61, %p62
    %p64 = scmp.ne.s32.totalorder %s52, %s53
    %p65 = scmp.eq.s32.totalorder %s22, 1
    %p66 = por %p64, %p65
    %p68 = scmp.ne.s32.totalorder %s53, %s67
    %p69 = scmp.eq.s32.totalorder %s22, 0
    %p70 = por %p68, %p69
    %s71 = ssub.s32 %s16, %s23
    %p72 = scmp.eq.s32.totalorder %s71, 0
    %s74 = sadd.s32 %s73, 1
    %s75 = scalar_select %p72, %s73, %s74
    %p78 = pneg %p72
    %p79 = scmp.eq.s32.totalorder %s16, 1
    %p80 = por %p78, %p79
    %p81 = scmp.ne.s32.totalorder %s73, %s76
    %p82 = scmp.eq.s32.totalorder %s16, 0
    %p83 = por %p81, %p82
    %p84 = scmp.ne.s32.totalorder %s73, %s76
    %p85 = scmp.eq.s32.totalorder %s21, 1
    %p86 = por %p84, %p85
    %p87 = scmp.ne.s32.totalorder %s76, %s77
    %p88 = scmp.eq.s32.totalorder %s21, 0
    %p89 = por %p87, %p88
    %p90 = scmp.ne.s32.totalorder %s76, %s77
    %p91 = scmp.eq.s32.totalorder %s22, 1
    %p92 = por %p90, %p91
    %p94 = scmp.ne.s32.totalorder %s77, %s93
    %p95 = scmp.eq.s32.totalorder %s22, 0
    %p96 = por %p94, %p95
    %s98 = sadd.s32 %s97, 1
    %p101 = scmp.eq.s32.totalorder %s16, 1
    %p102 = scmp.ne.s32.totalorder %s97, %s99
    %p103 = scmp.eq.s32.totalorder %s16, 0
    %p104 = por %p102, %p103
    %p105 = scmp.ne.s32.totalorder %s97, %s99
    %p106 = scmp.eq.s32.totalorder %s21, 1
    %p107 = por %p105, %p106
    %p108 = scmp.ne.s32.totalorder %s99, %s100
    %p109 = scmp.eq.s32.totalorder %s21, 0
    %p110 = por %p108, %p109
    %p111 = scmp.ne.s32.totalorder %s99, %s100
    %p112 = scmp.eq.s32.totalorder %s22, 1
    %p113 = por %p111, %p112
    %p115 = scmp.ne.s32.totalorder %s100, %s114
    %p116 = scmp.eq.s32.totalorder %s22, 0
    %p117 = por %p115, %p116
    %s118 = ssub.s32 %s16, %s23
    %p119 = scmp.eq.s32.totalorder %s118, 0
    %s121 = sadd.s32 %s120, 1
    %s122 = scalar_select %p119, %s120, %s121
    %p125 = pneg %p119
    %p126 = scmp.eq.s32.totalorder %s16, 1
    %p127 = por %p125, %p126
    %p128 = scmp.ne.s32.totalorder %s120, %s123
    %p129 = scmp.eq.s32.totalorder %s16, 0
    %p130 = por %p128, %p129
    %p131 = scmp.ne.s32.totalorder %s120, %s123
    %p132 = scmp.eq.s32.totalorder %s21, 1
    %p133 = por %p131, %p132
    %p134 = scmp.ne.s32.totalorder %s123, %s124
    %p135 = scmp.eq.s32.totalorder %s21, 0
    %p136 = por %p134, %p135
    %p137 = scmp.ne.s32.totalorder %s123, %s124
    %p138 = scmp.eq.s32.totalorder %s22, 1
    %p139 = por %p137, %p138
    %p141 = scmp.ne.s32.totalorder %s124, %s140
    %p142 = scmp.eq.s32.totalorder %s22, 0
    %p143 = por %p141, %p142
    %s144 = ssub.s32 %s16, %s23
    %p145 = scmp.eq.s32.totalorder %s144, 0
    %s147 = sadd.s32 %s146, 1
    %s148 = scalar_select %p145, %s146, %s147
    %p151 = pneg %p145
    %p152 = scmp.eq.s32.totalorder %s16, 1
    %p153 = por %p151, %p152
    %p154 = scmp.ne.s32.totalorder %s146, %s149
    %p155 = scmp.eq.s32.totalorder %s16, 0
    %p156 = por %p154, %p155
    %p157 = scmp.ne.s32.totalorder %s146, %s149
    %p158 = scmp.eq.s32.totalorder %s21, 1
    %p159 = por %p157, %p158
    %p160 = scmp.ne.s32.totalorder %s149, %s150
    %p161 = scmp.eq.s32.totalorder %s21, 0
    %p162 = por %p160, %p161
    %p163 = scmp.ne.s32.totalorder %s149, %s150
    %p164 = scmp.eq.s32.totalorder %s22, 1
    %p165 = por %p163, %p164
    %p167 = scmp.ne.s32.totalorder %s150, %s166
    %p168 = scmp.eq.s32.totalorder %s22, 0
    %p169 = por %p167, %p168
    %s170 = ssub.s32 %s16, %s23
    %p171 = scmp.eq.s32.totalorder %s170, 0
    %s173 = sadd.s32 %s172, 1
    %s174 = scalar_select %p171, %s172, %s173
    %p177 = pneg %p171
    %p178 = scmp.eq.s32.totalorder %s16, 1
    %p179 = por %p177, %p178
    %p180 = scmp.ne.s32.totalorder %s172, %s175
    %p181 = scmp.eq.s32.totalorder %s16, 0
    %p182 = por %p180, %p181
    %p183 = scmp.ne.s32.totalorder %s172, %s175
    %p184 = scmp.eq.s32.totalorder %s21, 1
    %p185 = por %p183, %p184
    %p186 = scmp.ne.s32.totalorder %s175, %s176
    %p187 = scmp.eq.s32.totalorder %s21, 0
    %p188 = por %p186, %p187
    %p189 = scmp.ne.s32.totalorder %s175, %s176
    %p190 = scmp.eq.s32.totalorder %s22, 1
    %p191 = por %p189, %p190
    %p193 = scmp.ne.s32.totalorder %s176, %s192
    %p194 = scmp.eq.s32.totalorder %s22, 0
    %p195 = por %p193, %p194
    %s196 = ssub.s32 %s16, %s23
    %p197 = scmp.eq.s32.totalorder %s196, 0
    %s199 = sadd.s32 %s198, 1
    %s200 = scalar_select %p197, %s198, %s199
    %p203 = pneg %p197
    %p204 = scmp.eq.s32.totalorder %s16, 1
    %p205 = por %p203, %p204
    %p206 = scmp.ne.s32.totalorder %s198, %s201
    %p207 = scmp.eq.s32.totalorder %s16, 0
    %p208 = por %p206, %p207
    %p209 = scmp.ne.s32.totalorder %s198, %s201
    %p210 = scmp.eq.s32.totalorder %s21, 1
    %p211 = por %p209, %p210
    %p212 = scmp.ne.s32.totalorder %s201, %s202
    %p213 = scmp.eq.s32.totalorder %s21, 0
    %p214 = por %p212, %p213
    %p215 = scmp.ne.s32.totalorder %s201, %s202
    %p216 = scmp.eq.s32.totalorder %s22, 1
    %p217 = por %p215, %p216
    %p219 = scmp.ne.s32.totalorder %s202, %s218
    %p220 = scmp.eq.s32.totalorder %s22, 0
    %p221 = por %p219, %p220
    %s222 = ssub.s32 %s16, %s23
    %p223 = scmp.eq.s32.totalorder %s222, 0
    %s225 = sadd.s32 %s224, 1
    %s226 = scalar_select %p223, %s224, %s225
    %p229 = pneg %p223
    %p230 = scmp.eq.s32.totalorder %s16, 1
    %p231 = por %p229, %p230
    %p232 = scmp.ne.s32.totalorder %s224, %s227
    %p233 = scmp.eq.s32.totalorder %s16, 0
    %p234 = por %p232, %p233
    %p235 = scmp.ne.s32.totalorder %s224, %s227
    %p236 = scmp.eq.s32.totalorder %s21, 1
    %p237 = por %p235, %p236
    %p238 = scmp.ne.s32.totalorder %s227, %s228
    %p239 = scmp.eq.s32.totalorder %s21, 0
    %p240 = por %p238, %p239
    %p241 = scmp.ne.s32.totalorder %s227, %s228
    %p242 = scmp.eq.s32.totalorder %s22, 1
    %p243 = por %p241, %p242
    %p245 = scmp.ne.s32.totalorder %s228, %s244
    %p246 = scmp.eq.s32.totalorder %s22, 0
    %p247 = por %p245, %p246
    %s248 = ssub.s32 %s16, %s23
    %p249 = scmp.eq.s32.totalorder %s248, 0
    %s251 = sadd.s32 %s250, 1
    %s252 = scalar_select %p249, %s250, %s251
    %p255 = pneg %p249
    %p256 = scmp.eq.s32.totalorder %s16, 1
    %p257 = por %p255, %p256
    %p258 = scmp.ne.s32.totalorder %s250, %s253
    %p259 = scmp.eq.s32.totalorder %s16, 0
    %p260 = por %p258, %p259
    %p261 = scmp.ne.s32.totalorder %s250, %s253
    %p262 = scmp.eq.s32.totalorder %s21, 1
    %p263 = por %p261, %p262
    %p264 = scmp.ne.s32.totalorder %s253, %s254
    %p265 = scmp.eq.s32.totalorder %s21, 0
    %p266 = por %p264, %p265
    %p267 = scmp.ne.s32.totalorder %s253, %s254
    %p268 = scmp.eq.s32.totalorder %s22, 1
    %p269 = por %p267, %p268
    %p271 = scmp.ne.s32.totalorder %s254, %s270
    %p272 = scmp.eq.s32.totalorder %s22, 0
    %p273 = por %p271, %p272
    %p274 = scmp.le.s32.totalorder 1, %s16
    %p275 = scmp.lt.s32.totalorder %s16, 3
    %p276 = pnand %p274, %p275
    %p277 = pneg %p276
    // Predicated region
    $region9: #{basic_block_forward.3} parent=5 // pred_check
      _
    $region10: #{basic_block_forward.3} parent=5 // pred_check_branch
      %279 = sbr.rel (%p276) target = $region12
    $region11: #{basic_block_forward.3} parent=5 // pred_region
      %s280 = ssub.s32 %s16, 1
      // Predicated region
      $region13: #{basic_block_forward.3} parent=11 // pred_check
        %p281 = pneg %p63
      $region14: #{basic_block_forward.3} parent=11 // pred_check_branch
        %283 = sbr.rel (%p281) target = $region16
      $region15: #{basic_block_forward.3} parent=11 // pred_region
        _
      $region16: #{basic_block_forward.3} parent=11 // pred_fallthru
        _
      // Predicated region
      $region17: #{basic_block_forward.3} parent=11 // pred_check
        %p284 = pneg %p110
      $region18: #{basic_block_forward.3} parent=11 // pred_check_branch
        %286 = sbr.rel (%p284) target = $region20
      $region19: #{basic_block_forward.3} parent=11 // pred_region
        _
      $region20: #{basic_block_forward.3} parent=11 // pred_fallthru
        _
    $region12: #{basic_block_forward.3} parent=5 // pred_fallthru
      _
    %p287 = scmp.lt.s32.totalorder %s16, 2
    // Predicated region
    $region21: #{basic_block_forward.3} parent=5 // pred_check
      %p288 = pneg %p287
    $region22: #{basic_block_forward.3} parent=5 // pred_check_branch
      %290 = sbr.rel (%p288) target = $region24
    $region23: #{basic_block_forward.3} parent=5 // pred_region
      // Predicated region
      $region25: #{basic_block_forward.3} parent=23 // pred_check
        %p291 = pneg %p36
      $region26: #{basic_block_forward.3} parent=23 // pred_check_branch
        %293 = sbr.rel (%p291) target = $region28
      $region27: #{basic_block_forward.3} parent=23 // pred_region
        %p294 = scmp.lt.s32.totalorder %s16, 1
        %s295 = scalar_select %p294, %s16, 1
        %s296 = smul.addr %s295, 72
        %s297 = smul.addr %s296, 4
        %s298 = scalar_lea.vmem %s0, %s297
      $region28: #{basic_block_forward.3} parent=23 // pred_fallthru
        _
      // Predicated region
      $region29: #{basic_block_forward.3} parent=23 // pred_check
        %p299 = pneg %p83
      $region30: #{basic_block_forward.3} parent=23 // pred_check_branch
        %301 = sbr.rel (%p299) target = $region32
      $region31: #{basic_block_forward.3} parent=23 // pred_region
        %p302 = scmp.lt.s32.totalorder %s16, 1
        %s303 = scalar_select %p302, %s16, 1
        %s304 = smul.addr %s303, 8
        %s305 = smul.addr %s304, 4
        %s306 = scalar_lea.vmem %s2, %s305
      $region32: #{basic_block_forward.3} parent=23 // pred_fallthru
        _
    $region24: #{basic_block_forward.3} parent=5 // pred_fallthru
      _
    %p307 = scmp.le.s32.totalorder 1, %s16
    %p308 = scmp.lt.s32.totalorder %s16, 3
    %p309 = pnand %p307, %p308
    %p310 = pneg %p309
    // Predicated region
    $region33: #{basic_block_forward.3} parent=5 // pred_check
      _
    $region34: #{basic_block_forward.3} parent=5 // pred_check_branch
      %312 = sbr.rel (%p309) target = $region36
    $region35: #{basic_block_forward.3} parent=5 // pred_region
      %s313 = ssub.s32 %s16, 1
      %p314 = scmp.lt.s32.totalorder %s21, 1
      %s315 = scalar_select %p314, %s21, 1
      %s316 = smul.addr %s315, 72
      %s317 = smul.addr %s316, 4
      %s318 = scalar_lea.vmem %s0, %s317
      %p319 = pneg %p42
      %p320 = pneg %p39
      %p321 = pneg %p63
      %p322 = pneg %p60
      %p323 = scmp.lt.s32.totalorder %s21, 1
      %s324 = scalar_select %p323, %s21, 1
      %s325 = smul.addr %s324, 8
      %s326 = smul.addr %s325, 4
      %s327 = scalar_lea.vmem %s2, %s326
      %p328 = pneg %p89
      %p329 = pneg %p86
      %p330 = pneg %p110
      %p331 = pneg %p107
      %p332 = pneg %p136
      %p333 = pneg %p133
      %p334 = scmp.lt.s32.totalorder %s21, 1
      %s335 = scalar_select %p334, %s21, 1
      %s336 = smul.addr %s335, 8
      %s337 = smul.addr %s336, 4
      %s338 = scalar_lea.vmem %s4, %s337
      %p339 = pneg %p162
      %p340 = pneg %p159
      %p341 = scmp.lt.s32.totalorder %s21, 1
      %s342 = scalar_select %p341, %s21, 1
      %s343 = scalar_lea.vmem %s5, %s342
      %p344 = pneg %p188
      %p345 = pneg %p185
      %p346 = scmp.lt.s32.totalorder %s21, 1
      %s347 = scalar_select %p346, %s21, 1
      %s348 = scalar_lea.vmem %s6, %s347
      %p349 = pneg %p214
      %p350 = pneg %p211
      %p351 = scmp.lt.s32.totalorder %s21, 1
      %s352 = scalar_select %p351, %s21, 1
      %s353 = smul.addr %s352, 8
      %s354 = smul.addr %s353, 4
      %s355 = scalar_lea.vmem %s7, %s354
      %p356 = pneg %p240
      %p357 = pneg %p237
      %p358 = scmp.lt.s32.totalorder %s21, 1
      %s359 = scalar_select %p358, %s21, 1
      %s360 = scalar_lea.vmem %s8, %s359
      %p361 = pneg %p266
      %p362 = pneg %p263
      %p363 = scmp.lt.s32.totalorder %s21, 1
      %s364 = scalar_select %p363, %s21, 1
      %s365 = scalar_lea.vmem %s9, %s364
      %p366 = scmp.lt.s32.totalorder %s21, 1
      %s367 = scalar_select %p366, %s21, 1
      %s368 = smul.addr %s367, 72
      %s369 = smul.addr %s368, 4
      %s370 = scalar_lea.vmem %s0, %s369
      %p371 = scmp.lt.s32.totalorder %s21, 1
      %s372 = scalar_select %p371, %s21, 1
      %s373 = smul.addr %s372, 8
      %s374 = smul.addr %s373, 4
      %s375 = scalar_lea.vmem %s2, %s374
      %p376 = scmp.lt.s32.totalorder %s21, 1
      %s377 = scalar_select %p376, %s21, 1
      %s378 = smul.addr %s377, 8
      %s379 = smul.addr %s378, 4
      %s380 = scalar_lea.vmem %s4, %s379
      %p381 = scmp.lt.s32.totalorder %s21, 1
      %s382 = scalar_select %p381, %s21, 1
      %s383 = scalar_lea.vmem %s5, %s382
      %p384 = scmp.lt.s32.totalorder %s21, 1
      %s385 = scalar_select %p384, %s21, 1
      %s386 = scalar_lea.vmem %s6, %s385
      %p387 = scmp.lt.s32.totalorder %s21, 1
      %s388 = scalar_select %p387, %s21, 1
      %s389 = smul.addr %s388, 8
      %s390 = smul.addr %s389, 4
      %s391 = scalar_lea.vmem %s7, %s390
      %p392 = scmp.lt.s32.totalorder %s21, 1
      %s393 = scalar_select %p392, %s21, 1
      %s394 = scalar_lea.vmem %s8, %s393
      %p395 = scmp.lt.s32.totalorder %s21, 1
      %s396 = scalar_select %p395, %s21, 1
      %s397 = scalar_lea.vmem %s9, %s396
      %v399 = vld [vmem:[%s370] sm:$0xf]
      %v400 = vld [vmem:[%s370 + $0x8] sm:$0xf]
      %v401 = vld [vmem:[%s370 + $0x10] sm:$0xf]
      %v402 = vld [vmem:[%s370 + $0x18] sm:$0xf]
      %v403 = vld [vmem:[%s370 + $0x20] sm:$0xf]
      %v404 = vld [vmem:[%s370 + $0x28] sm:$0xf]
      %v405 = vld [vmem:[%s370 + $0x30] sm:$0xf]
      %v406 = vld [vmem:[%s370 + $0x38] sm:$0xf]
      %s407 = scalar_lea.vmem %s370, 72
      %v408 = vld [vmem:[%s407] sm:$0xf]
      %v409 = vld [vmem:[%s407 + $0x8] sm:$0xf]
      %v410 = vld [vmem:[%s407 + $0x10] sm:$0xf]
      %v411 = vld [vmem:[%s407 + $0x18] sm:$0xf]
      %v412 = vld [vmem:[%s407 + $0x20] sm:$0xf]
      %v413 = vld [vmem:[%s407 + $0x28] sm:$0xf]
      %v414 = vld [vmem:[%s407 + $0x30] sm:$0xf]
      %v415 = vld [vmem:[%s407 + $0x38] sm:$0xf]
      %v416 = vld [vmem:[%s370 + $0x4] sm:$0x1]
      %v417 = vld [vmem:[%s370 + $0xc] sm:$0x1]
      %v418 = vld [vmem:[%s370 + $0x14] sm:$0x1]
      %v419 = vld [vmem:[%s370 + $0x1c] sm:$0x1]
      %v420 = vld [vmem:[%s370 + $0x24] sm:$0x1]
      %v421 = vld [vmem:[%s370 + $0x2c] sm:$0x1]
      %v422 = vld [vmem:[%s370 + $0x34] sm:$0x1]
      %v423 = vld [vmem:[%s370 + $0x3c] sm:$0x1]
      %vm424 = vsmask.f32 3328
      %vm425 = vsmask.f32 7440
      %vm426 = vmor %vm424, %vm425
      %v428 = vshrl.u32 %v399, 16
      %v430 = vrot.slane %v428, 4
      %v431 = vshll.u32 %v399, 16
      %v433 = vrot.slane %v431, 5
      %v434 = vor.u32 %v430, %v433
      %v435 = vrot.slane %v434, 4
      %v437 = vshll.u32 %v416, 16
      %v439 = vrot.slane %v437, 5
      %v440 = vsel %vm426, %v435, %v439
      %v442 = vshrl.u32 %v400, 16
      %v444 = vrot.slane %v442, 4
      %v445 = vshll.u32 %v400, 16
      %v447 = vrot.slane %v445, 5
      %v448 = vor.u32 %v444, %v447
      %v449 = vrot.slane %v448, 4
      %v451 = vshll.u32 %v417, 16
      %v453 = vrot.slane %v451, 5
      %v454 = vsel %vm426, %v449, %v453
      %v456 = vshrl.u32 %v401, 16
      %v458 = vrot.slane %v456, 4
      %v459 = vshll.u32 %v401, 16
      %v461 = vrot.slane %v459, 5
      %v462 = vor.u32 %v458, %v461
      %v463 = vrot.slane %v462, 4
      %v465 = vshll.u32 %v418, 16
      %v467 = vrot.slane %v465, 5
      %v468 = vsel %vm426, %v463, %v467
      %v470 = vshrl.u32 %v402, 16
      %v472 = vrot.slane %v470, 4
      %v473 = vshll.u32 %v402, 16
      %v475 = vrot.slane %v473, 5
      %v476 = vor.u32 %v472, %v475
      %v477 = vrot.slane %v476, 4
      %v479 = vshll.u32 %v419, 16
      %v481 = vrot.slane %v479, 5
      %v482 = vsel %vm426, %v477, %v481
      %v484 = vshrl.u32 %v403, 16
      %v486 = vrot.slane %v484, 4
      %v487 = vshll.u32 %v403, 16
      %v489 = vrot.slane %v487, 5
      %v490 = vor.u32 %v486, %v489
      %v491 = vrot.slane %v490, 4
      %v493 = vshll.u32 %v420, 16
      %v495 = vrot.slane %v493, 5
      %v496 = vsel %vm426, %v491, %v495
      %v498 = vshrl.u32 %v404, 16
      %v500 = vrot.slane %v498, 4
      %v501 = vshll.u32 %v404, 16
      %v503 = vrot.slane %v501, 5
      %v504 = vor.u32 %v500, %v503
      %v505 = vrot.slane %v504, 4
      %v507 = vshll.u32 %v421, 16
      %v509 = vrot.slane %v507, 5
      %v510 = vsel %vm426, %v505, %v509
      %v512 = vshrl.u32 %v405, 16
      %v514 = vrot.slane %v512, 4
      %v515 = vshll.u32 %v405, 16
      %v517 = vrot.slane %v515, 5
      %v518 = vor.u32 %v514, %v517
      %v519 = vrot.slane %v518, 4
      %v521 = vshll.u32 %v422, 16
      %v523 = vrot.slane %v521, 5
      %v524 = vsel %vm426, %v519, %v523
      %v526 = vshrl.u32 %v406, 16
      %v528 = vrot.slane %v526, 4
      %v529 = vshll.u32 %v406, 16
      %v531 = vrot.slane %v529, 5
      %v532 = vor.u32 %v528, %v531
      %v533 = vrot.slane %v532, 4
      %v535 = vshll.u32 %v423, 16
      %v537 = vrot.slane %v535, 5
      %v538 = vsel %vm426, %v533, %v537
      %v547 = vunpack.c.l.b16 %v399
      %v548 = vunpack.c.l.b16 %v400
      %v549 = vunpack.c.l.b16 %v401
      %v550 = vunpack.c.l.b16 %v402
      %v551 = vunpack.c.l.b16 %v403
      %v552 = vunpack.c.l.b16 %v404
      %v553 = vunpack.c.l.b16 %v405
      %v554 = vunpack.c.l.b16 %v406
      %v555 = vpack.c.b16 %v548, %v547
      %v556 = vpack.c.b16 %v550, %v549
      %v557 = vpack.c.b16 %v552, %v551
      %v558 = vpack.c.b16 %v554, %v553
      %v571 = vunpack.c.l.b16 %v408
      %v572 = vunpack.c.l.b16 %v409
      %v573 = vunpack.c.l.b16 %v410
      %v574 = vunpack.c.l.b16 %v411
      %v575 = vunpack.c.l.b16 %v412
      %v576 = vunpack.c.l.b16 %v413
      %v577 = vunpack.c.l.b16 %v414
      %v578 = vunpack.c.l.b16 %v415
      %v579 = vpack.c.b16 %v572, %v571
      %v580 = vpack.c.b16 %v574, %v573
      %v581 = vpack.c.b16 %v576, %v575
      %v582 = vpack.c.b16 %v578, %v577
      %v587 = vunpack.c.l.b16 %v440
      %v588 = vunpack.c.l.b16 %v454
      %v589 = vunpack.c.l.b16 %v468
      %v590 = vunpack.c.l.b16 %v482
      %v591 = vunpack.c.l.b16 %v496
      %v592 = vunpack.c.l.b16 %v510
      %v593 = vunpack.c.l.b16 %v524
      %v594 = vunpack.c.l.b16 %v538
      %v595 = vpack.c.b16 %v588, %v587
      %v596 = vpack.c.b16 %v590, %v589
      %v597 = vpack.c.b16 %v592, %v591
      %v598 = vpack.c.b16 %v594, %v593
      %v603 = vld [vmem:[%s1] sm:$0xf]
      %v604 = vld [vmem:[%s1 + $0x4] sm:$0xf]
      %v605 = vld [vmem:[%s1 + $0x8] sm:$0xf]
      %v606 = vld [vmem:[%s1 + $0xc] sm:$0xf]
      %v607 = vld [vmem:[%s1 + $0x10] sm:$0xf]
      %v608 = vld [vmem:[%s1 + $0x14] sm:$0xf]
      %v609 = vld [vmem:[%s1 + $0x18] sm:$0xf]
      %v610 = vld [vmem:[%s1 + $0x1c] sm:$0xf]
      %v611 = vld [vmem:[%s1 + $0x20] sm:$0xf]
      %v612 = vld [vmem:[%s1 + $0x24] sm:$0xf]
      %v613 = vld [vmem:[%s1 + $0x28] sm:$0xf]
      %v614 = vld [vmem:[%s1 + $0x2c] sm:$0xf]
      %v615 = vld [vmem:[%s1 + $0x30] sm:$0xf]
      %v616 = vld [vmem:[%s1 + $0x34] sm:$0xf]
      %v617 = vld [vmem:[%s1 + $0x38] sm:$0xf]
      %v618 = vld [vmem:[%s1 + $0x3c] sm:$0xf]
      %v619 = vld [vmem:[%s1 + $0x40] sm:$0xf]
      %v620 = vld [vmem:[%s1 + $0x44] sm:$0xf]
      %v621 = vld [vmem:[%s1 + $0x48] sm:$0xf]
      %v622 = vld [vmem:[%s1 + $0x4c] sm:$0xf]
      %v623 = vld [vmem:[%s1 + $0x50] sm:$0xf]
      %v624 = vld [vmem:[%s1 + $0x54] sm:$0xf]
      %v625 = vld [vmem:[%s1 + $0x58] sm:$0xf]
      %v626 = vld [vmem:[%s1 + $0x5c] sm:$0xf]
      %v627 = vld [vmem:[%s1 + $0x60] sm:$0xf]
      %v628 = vld [vmem:[%s1 + $0x64] sm:$0xf]
      %v629 = vld [vmem:[%s1 + $0x68] sm:$0xf]
      %v630 = vld [vmem:[%s1 + $0x6c] sm:$0xf]
      %v631 = vld [vmem:[%s1 + $0x70] sm:$0xf]
      %v632 = vld [vmem:[%s1 + $0x74] sm:$0xf]
      %v633 = vld [vmem:[%s1 + $0x78] sm:$0xf]
      %v634 = vld [vmem:[%s1 + $0x7c] sm:$0xf]
      %v635 = vld [vmem:[%s1 + $0x80] sm:$0xf]
      %v636 = vld [vmem:[%s1 + $0x84] sm:$0xf]
      %v637 = vld [vmem:[%s1 + $0x88] sm:$0xf]
      %v638 = vld [vmem:[%s1 + $0x8c] sm:$0xf]
      %v639 = vld [vmem:[%s1 + $0x90] sm:$0xf]
      %v640 = vld [vmem:[%s1 + $0x94] sm:$0xf]
      %v641 = vld [vmem:[%s1 + $0x98] sm:$0xf]
      %v642 = vld [vmem:[%s1 + $0x9c] sm:$0xf]
      %v643 = vld [vmem:[%s1 + $0xa0] sm:$0xf]
      %v644 = vld [vmem:[%s1 + $0xa4] sm:$0xf]
      %v645 = vld [vmem:[%s1 + $0xa8] sm:$0xf]
      %v646 = vld [vmem:[%s1 + $0xac] sm:$0xf]
      %v647 = vld [vmem:[%s1 + $0xb0] sm:$0xf]
      %v648 = vld [vmem:[%s1 + $0xb4] sm:$0xf]
      %v649 = vld [vmem:[%s1 + $0xb8] sm:$0xf]
      %v650 = vld [vmem:[%s1 + $0xbc] sm:$0xf]
      %s651 = scalar_lea.vmem %s370, 144
      %v652 = vld [vmem:[%s651] sm:$0xf]
      %v653 = vld [vmem:[%s651 + $0x8] sm:$0xf]
      %v654 = vld [vmem:[%s651 + $0x10] sm:$0xf]
      %v655 = vld [vmem:[%s651 + $0x18] sm:$0xf]
      %v656 = vld [vmem:[%s651 + $0x20] sm:$0xf]
      %v657 = vld [vmem:[%s651 + $0x28] sm:$0xf]
      %v658 = vld [vmem:[%s651 + $0x30] sm:$0xf]
      %v659 = vld [vmem:[%s651 + $0x38] sm:$0xf]
      %s660 = scalar_lea.vmem %s370, 216
      %v661 = vld [vmem:[%s660] sm:$0xf]
      %v662 = vld [vmem:[%s660 + $0x8] sm:$0xf]
      %v663 = vld [vmem:[%s660 + $0x10] sm:$0xf]
      %v664 = vld [vmem:[%s660 + $0x18] sm:$0xf]
      %v665 = vld [vmem:[%s660 + $0x20] sm:$0xf]
      %v666 = vld [vmem:[%s660 + $0x28] sm:$0xf]
      %v667 = vld [vmem:[%s660 + $0x30] sm:$0xf]
      %v668 = vld [vmem:[%s660 + $0x38] sm:$0xf]
      %v669 = vld [vmem:[%s651 + $0x4] sm:$0x1]
      %v670 = vld [vmem:[%s651 + $0xc] sm:$0x1]
      %v671 = vld [vmem:[%s651 + $0x14] sm:$0x1]
      %v672 = vld [vmem:[%s651 + $0x1c] sm:$0x1]
      %v673 = vld [vmem:[%s651 + $0x24] sm:$0x1]
      %v674 = vld [vmem:[%s651 + $0x2c] sm:$0x1]
      %v675 = vld [vmem:[%s651 + $0x34] sm:$0x1]
      %v676 = vld [vmem:[%s651 + $0x3c] sm:$0x1]
      %v678 = vshrl.u32 %v652, 16
      %v680 = vrot.slane %v678, 4
      %v681 = vshll.u32 %v652, 16
      %v683 = vrot.slane %v681, 5
      %v684 = vor.u32 %v680, %v683
      %v685 = vrot.slane %v684, 4
      %v687 = vshll.u32 %v669, 16
      %v689 = vrot.slane %v687, 5
      %v690 = vsel %vm426, %v685, %v689
      %v692 = vshrl.u32 %v653, 16
      %v694 = vrot.slane %v692, 4
      %v695 = vshll.u32 %v653, 16
      %v697 = vrot.slane %v695, 5
      %v698 = vor.u32 %v694, %v697
      %v699 = vrot.slane %v698, 4
      %v701 = vshll.u32 %v670, 16
      %v703 = vrot.slane %v701, 5
      %v704 = vsel %vm426, %v699, %v703
      %v706 = vshrl.u32 %v654, 16
      %v708 = vrot.slane %v706, 4
      %v709 = vshll.u32 %v654, 16
      %v711 = vrot.slane %v709, 5
      %v712 = vor.u32 %v708, %v711
      %v713 = vrot.slane %v712, 4
      %v715 = vshll.u32 %v671, 16
      %v717 = vrot.slane %v715, 5
      %v718 = vsel %vm426, %v713, %v717
      %v720 = vshrl.u32 %v655, 16
      %v722 = vrot.slane %v720, 4
      %v723 = vshll.u32 %v655, 16
      %v725 = vrot.slane %v723, 5
      %v726 = vor.u32 %v722, %v725
      %v727 = vrot.slane %v726, 4
      %v729 = vshll.u32 %v672, 16
      %v731 = vrot.slane %v729, 5
      %v732 = vsel %vm426, %v727, %v731
      %v734 = vshrl.u32 %v656, 16
      %v736 = vrot.slane %v734, 4
      %v737 = vshll.u32 %v656, 16
      %v739 = vrot.slane %v737, 5
      %v740 = vor.u32 %v736, %v739
      %v741 = vrot.slane %v740, 4
      %v743 = vshll.u32 %v673, 16
      %v745 = vrot.slane %v743, 5
      %v746 = vsel %vm426, %v741, %v745
      %v748 = vshrl.u32 %v657, 16
      %v750 = vrot.slane %v748, 4
      %v751 = vshll.u32 %v657, 16
      %v753 = vrot.slane %v751, 5
      %v754 = vor.u32 %v750, %v753
      %v755 = vrot.slane %v754, 4
      %v757 = vshll.u32 %v674, 16
      %v759 = vrot.slane %v757, 5
      %v760 = vsel %vm426, %v755, %v759
      %v762 = vshrl.u32 %v658, 16
      %v764 = vrot.slane %v762, 4
      %v765 = vshll.u32 %v658, 16
      %v767 = vrot.slane %v765, 5
      %v768 = vor.u32 %v764, %v767
      %v769 = vrot.slane %v768, 4
      %v771 = vshll.u32 %v675, 16
      %v773 = vrot.slane %v771, 5
      %v774 = vsel %vm426, %v769, %v773
      %v776 = vshrl.u32 %v659, 16
      %v778 = vrot.slane %v776, 4
      %v779 = vshll.u32 %v659, 16
      %v781 = vrot.slane %v779, 5
      %v782 = vor.u32 %v778, %v781
      %v783 = vrot.slane %v782, 4
      %v785 = vshll.u32 %v676, 16
      %v787 = vrot.slane %v785, 5
      %v788 = vsel %vm426, %v783, %v787
      %v797 = vunpack.c.l.b16 %v652
      %v798 = vunpack.c.l.b16 %v653
      %v799 = vunpack.c.l.b16 %v654
      %v800 = vunpack.c.l.b16 %v655
      %v801 = vunpack.c.l.b16 %v656
      %v802 = vunpack.c.l.b16 %v657
      %v803 = vunpack.c.l.b16 %v658
      %v804 = vunpack.c.l.b16 %v659
      %v805 = vpack.c.b16 %v798, %v797
      %v806 = vpack.c.b16 %v800, %v799
      %v807 = vpack.c.b16 %v802, %v801
      %v808 = vpack.c.b16 %v804, %v803
      %v821 = vunpack.c.l.b16 %v661
      %v822 = vunpack.c.l.b16 %v662
      %v823 = vunpack.c.l.b16 %v663
      %v824 = vunpack.c.l.b16 %v664
      %v825 = vunpack.c.l.b16 %v665
      %v826 = vunpack.c.l.b16 %v666
      %v827 = vunpack.c.l.b16 %v667
      %v828 = vunpack.c.l.b16 %v668
      %v829 = vpack.c.b16 %v822, %v821
      %v830 = vpack.c.b16 %v824, %v823
      %v831 = vpack.c.b16 %v826, %v825
      %v832 = vpack.c.b16 %v828, %v827
      %v837 = vunpack.c.l.b16 %v690
      %v838 = vunpack.c.l.b16 %v704
      %v839 = vunpack.c.l.b16 %v718
      %v840 = vunpack.c.l.b16 %v732
      %v841 = vunpack.c.l.b16 %v746
      %v842 = vunpack.c.l.b16 %v760
      %v843 = vunpack.c.l.b16 %v774
      %v844 = vunpack.c.l.b16 %v788
      %v845 = vpack.c.b16 %v838, %v837
      %v846 = vpack.c.b16 %v840, %v839
      %v847 = vpack.c.b16 %v842, %v841
      %v848 = vpack.c.b16 %v844, %v843
      %s853 = scalar_lea.vmem %s1, 192
      %v854 = vld [vmem:[%s853] sm:$0xf]
      %v855 = vld [vmem:[%s853 + $0x4] sm:$0xf]
      %v856 = vld [vmem:[%s853 + $0x8] sm:$0xf]
      %v857 = vld [vmem:[%s853 + $0xc] sm:$0xf]
      %v858 = vld [vmem:[%s853 + $0x10] sm:$0xf]
      %v859 = vld [vmem:[%s853 + $0x14] sm:$0xf]
      %v860 = vld [vmem:[%s853 + $0x18] sm:$0xf]
      %v861 = vld [vmem:[%s853 + $0x1c] sm:$0xf]
      %v862 = vld [vmem:[%s853 + $0x20] sm:$0xf]
      %v863 = vld [vmem:[%s853 + $0x24] sm:$0xf]
      %v864 = vld [vmem:[%s853 + $0x28] sm:$0xf]
      %v865 = vld [vmem:[%s853 + $0x2c] sm:$0xf]
      %v866 = vld [vmem:[%s853 + $0x30] sm:$0xf]
      %v867 = vld [vmem:[%s853 + $0x34] sm:$0xf]
      %v868 = vld [vmem:[%s853 + $0x38] sm:$0xf]
      %v869 = vld [vmem:[%s853 + $0x3c] sm:$0xf]
      %v870 = vld [vmem:[%s853 + $0x40] sm:$0xf]
      %v871 = vld [vmem:[%s853 + $0x44] sm:$0xf]
      %v872 = vld [vmem:[%s853 + $0x48] sm:$0xf]
      %v873 = vld [vmem:[%s853 + $0x4c] sm:$0xf]
      %v874 = vld [vmem:[%s853 + $0x50] sm:$0xf]
      %v875 = vld [vmem:[%s853 + $0x54] sm:$0xf]
      %v876 = vld [vmem:[%s853 + $0x58] sm:$0xf]
      %v877 = vld [vmem:[%s853 + $0x5c] sm:$0xf]
      %v878 = vld [vmem:[%s853 + $0x60] sm:$0xf]
      %v879 = vld [vmem:[%s853 + $0x64] sm:$0xf]
      %v880 = vld [vmem:[%s853 + $0x68] sm:$0xf]
      %v881 = vld [vmem:[%s853 + $0x6c] sm:$0xf]
      %v882 = vld [vmem:[%s853 + $0x70] sm:$0xf]
      %v883 = vld [vmem:[%s853 + $0x74] sm:$0xf]
      %v884 = vld [vmem:[%s853 + $0x78] sm:$0xf]
      %v885 = vld [vmem:[%s853 + $0x7c] sm:$0xf]
      %v886 = vld [vmem:[%s853 + $0x80] sm:$0xf]
      %v887 = vld [vmem:[%s853 + $0x84] sm:$0xf]
      %v888 = vld [vmem:[%s853 + $0x88] sm:$0xf]
      %v889 = vld [vmem:[%s853 + $0x8c] sm:$0xf]
      %v890 = vld [vmem:[%s853 + $0x90] sm:$0xf]
      %v891 = vld [vmem:[%s853 + $0x94] sm:$0xf]
      %v892 = vld [vmem:[%s853 + $0x98] sm:$0xf]
      %v893 = vld [vmem:[%s853 + $0x9c] sm:$0xf]
      %v894 = vld [vmem:[%s853 + $0xa0] sm:$0xf]
      %v895 = vld [vmem:[%s853 + $0xa4] sm:$0xf]
      %v896 = vld [vmem:[%s853 + $0xa8] sm:$0xf]
      %v897 = vld [vmem:[%s853 + $0xac] sm:$0xf]
      %v898 = vld [vmem:[%s853 + $0xb0] sm:$0xf]
      %v899 = vld [vmem:[%s853 + $0xb4] sm:$0xf]
      %v900 = vld [vmem:[%s853 + $0xb8] sm:$0xf]
      %v901 = vld [vmem:[%s853 + $0xbc] sm:$0xf]
      %v950 = vunpack.c.l.b16 %v854
      %v951 = vunpack.c.l.b16 %v855
      %v952 = vunpack.c.l.b16 %v856
      %v953 = vunpack.c.l.b16 %v857
      %v954 = vunpack.c.l.b16 %v858
      %v955 = vunpack.c.l.b16 %v859
      %v956 = vunpack.c.l.b16 %v860
      %v957 = vunpack.c.l.b16 %v861
      %v958 = vunpack.c.l.b16 %v862
      %v959 = vunpack.c.l.b16 %v863
      %v960 = vunpack.c.l.b16 %v864
      %v961 = vunpack.c.l.b16 %v865
      %v962 = vunpack.c.l.b16 %v866
      %v963 = vunpack.c.l.b16 %v867
      %v964 = vunpack.c.l.b16 %v868
      %v965 = vunpack.c.l.b16 %v869
      %v966 = vunpack.c.l.b16 %v870
      %v967 = vunpack.c.l.b16 %v871
      %v968 = vunpack.c.l.b16 %v872
      %v969 = vunpack.c.l.b16 %v873
      %v970 = vunpack.c.l.b16 %v874
      %v971 = vunpack.c.l.b16 %v875
      %v972 = vunpack.c.l.b16 %v876
      %v973 = vunpack.c.l.b16 %v877
      %v974 = vunpack.c.l.b16 %v878
      %v975 = vunpack.c.l.b16 %v879
      %v976 = vunpack.c.l.b16 %v880
      %v977 = vunpack.c.l.b16 %v881
      %v978 = vunpack.c.l.b16 %v882
      %v979 = vunpack.c.l.b16 %v883
      %v980 = vunpack.c.l.b16 %v884
      %v981 = vunpack.c.l.b16 %v885
      %v982 = vunpack.c.l.b16 %v886
      %v983 = vunpack.c.l.b16 %v887
      %v984 = vunpack.c.l.b16 %v888
      %v985 = vunpack.c.l.b16 %v889
      %v986 = vunpack.c.l.b16 %v890
      %v987 = vunpack.c.l.b16 %v891
      %v988 = vunpack.c.l.b16 %v892
      %v989 = vunpack.c.l.b16 %v893
      %v990 = vunpack.c.l.b16 %v894
      %v991 = vunpack.c.l.b16 %v895
      %v992 = vunpack.c.l.b16 %v896
      %v993 = vunpack.c.l.b16 %v897
      %v994 = vunpack.c.l.b16 %v898
      %v995 = vunpack.c.l.b16 %v899
      %v996 = vunpack.c.l.b16 %v900
      %v997 = vunpack.c.l.b16 %v901
      %v998 = vpack.c.b16 %v951, %v950
      %v999 = vpack.c.b16 %v953, %v952
      %v1000 = vpack.c.b16 %v955, %v954
      %v1001 = vpack.c.b16 %v957, %v956
      %v1002 = vpack.c.b16 %v959, %v958
      %v1003 = vpack.c.b16 %v961, %v960
      %v1004 = vpack.c.b16 %v963, %v962
      %v1005 = vpack.c.b16 %v965, %v964
      %v1006 = vpack.c.b16 %v967, %v966
      %v1007 = vpack.c.b16 %v969, %v968
      %v1008 = vpack.c.b16 %v971, %v970
      %v1009 = vpack.c.b16 %v973, %v972
      %v1010 = vpack.c.b16 %v975, %v974
      %v1011 = vpack.c.b16 %v977, %v976
      %v1012 = vpack.c.b16 %v979, %v978
      %v1013 = vpack.c.b16 %v981, %v980
      %v1014 = vpack.c.b16 %v983, %v982
      %v1015 = vpack.c.b16 %v985, %v984
      %v1016 = vpack.c.b16 %v987, %v986
      %v1017 = vpack.c.b16 %v989, %v988
      %v1018 = vpack.c.b16 %v991, %v990
      %v1019 = vpack.c.b16 %v993, %v992
      %v1020 = vpack.c.b16 %v995, %v994
      %v1021 = vpack.c.b16 %v997, %v996
      %1046 = vmatprep.subr.bf16.mxu0 0
      %1047 = vmatpush1.bf16.msra.mxu0 %v998
      %1048 = vmatprep.subr.bf16.mxu0 0
      %1049 = vmatpush1.bf16.msra.mxu0 %v999
      %1050 = vmatprep.subr.bf16.mxu0 0
      %1051 = vmatpush1.bf16.msra.mxu0 %v1000
      %1052 = vmatprep.subr.bf16.mxu0 0
      %1053 = vmatpush1.bf16.msra.mxu0 %v1001
      %1054 = vmatprep.subr.bf16.mxu0 0
      %1055 = vmatpush1.bf16.msra.mxu0 %v1002
      %1056 = vmatprep.subr.bf16.mxu0 0
      %1057 = vmatpush1.bf16.msra.mxu0 %v1003
      %1058 = vmatprep.subr.bf16.mxu0 0
      %1059 = vmatpush1.bf16.msra.mxu0 %v1004
      %1060 = vmatprep.subr.bf16.mxu0 0
      %1061 = vmatpush1.bf16.msra.mxu0 %v1005
      %1062 = vmatprep.subr.bf16.mxu0 0
      %1063 = vmatpush1.bf16.msra.mxu0 %v1006
      %1064 = vmatprep.subr.bf16.mxu0 0
      %1065 = vmatpush1.bf16.msra.mxu0 %v1007
      %1066 = vmatprep.subr.bf16.mxu0 0
      %1067 = vmatpush1.bf16.msra.mxu0 %v1008
      %1068 = vmatprep.subr.bf16.mxu0 0
      %1069 = vmatpush1.bf16.msra.mxu0 %v1009
      %1070 = vmatprep.subr.bf16.mxu0 0
      %1071 = vmatpush1.bf16.msra.mxu0 %v1010
      %1072 = vmatprep.subr.bf16.mxu0 0
      %1073 = vmatpush1.bf16.msra.mxu0 %v1011
      %1074 = vmatprep.subr.bf16.mxu0 0
      %1075 = vmatpush1.bf16.msra.mxu0 %v1012
      %1076 = vmatprep.subr.bf16.mxu0 0
      %1077 = vmatpush1.bf16.msra.mxu0 %v1013
      %1078 = vmatprep.mubr.bf16.mxu0 %v829
      %1079 = vmatmul.mubr.bf16.gmra.mrb[0].mxu0 %v805
      %v1080 = vpop.f32.mrb[0].mxu0
      %v1081 = vadd.f32 0.0, %v1080
      %v1082 = vpop.f32.mrb[0].mxu0
      %v1083 = vpop.f32.mrb[0].mxu0
      %v1084 = vadd.f32 0.0, %v1083
      %v1085 = vpop.f32.mrb[0].mxu0
      %1086 = vmatprep.mubr.bf16.mxu0 %v830
      %1087 = vmatmul.mubr.bf16.gmra.mrb[0].mxu0 %v806
      %v1088 = vpop.f32.mrb[0].mxu0
      %v1089 = vadd.f32 0.0, %v1088
      %v1090 = vpop.f32.mrb[0].mxu0
      %v1091 = vpop.f32.mrb[0].mxu0
      %v1092 = vadd.f32 0.0, %v1091
      %v1093 = vpop.f32.mrb[0].mxu0
      %1094 = vmatprep.mubr.bf16.mxu0 %v831
      %1095 = vmatmul.mubr.bf16.gmra.mrb[0].mxu0 %v807
      %v1096 = vpop.f32.mrb[0].mxu0
      %v1097 = vadd.f32 0.0, %v1096
      %v1098 = vpop.f32.mrb[0].mxu0
      %v1099 = vpop.f32.mrb[0].mxu0
      %v1100 = vadd.f32 0.0, %v1099
      %v1101 = vpop.f32.mrb[0].mxu0
      %1102 = vmatprep.mubr.bf16.mxu0 %v832
      %1103 = vmatmul.mubr.bf16.gmra.mrb[0].mxu0 %v808
      %v1104 = vpop.f32.mrb[0].mxu0
      %v1105 = vadd.f32 0.0, %v1104
      %v1106 = vpop.f32.mrb[0].mxu0
      %v1107 = vpop.f32.mrb[0].mxu0
      %v1108 = vadd.f32 0.0, %v1107
      %v1109 = vpop.f32.mrb[0].mxu0
      %1110 = vdwg.mxu0
      %1111 = vmatprep.subr.bf16.mxu0 0
      %1112 = vmatpush1.bf16.msra.mxu0 %v1014
      %1113 = vmatprep.subr.bf16.mxu0 0
      %1114 = vmatpush1.bf16.msra.mxu0 %v1015
      %1115 = vmatprep.subr.bf16.mxu0 0
      %1116 = vmatpush1.bf16.msra.mxu0 %v1016
      %1117 = vmatprep.subr.bf16.mxu0 0
      %1118 = vmatpush1.bf16.msra.mxu0 %v1017
      %1119 = vmatprep.subr.bf16.mxu0 0
      %1120 = vmatpush1.bf16.msra.mxu0 %v1018
      %1121 = vmatprep.subr.bf16.mxu0 0
      %1122 = vmatpush1.bf16.msra.mxu0 %v1019
      %1123 = vmatprep.subr.bf16.mxu0 0
      %1124 = vmatpush1.bf16.msra.mxu0 %v1020
      %1125 = vmatprep.subr.bf16.mxu0 0
      %1126 = vmatpush1.bf16.msra.mxu0 %v1021
      %1127 = vmatprep.subr.bf16.mxu0 0
      %1128 = vmatpush1.bf16.msra.mxu0 0
      %1129 = vmatprep.subr.bf16.mxu0 0
      %1130 = vmatpush1.bf16.msra.mxu0 0
      %1131 = vmatprep.subr.bf16.mxu0 0
      %1132 = vmatpush1.bf16.msra.mxu0 0
      %1133 = vmatprep.subr.bf16.mxu0 0
      %1134 = vmatpush1.bf16.msra.mxu0 0
      %1135 = vmatprep.subr.bf16.mxu0 0
      %1136 = vmatpush1.bf16.msra.mxu0 0
      %1137 = vmatprep.subr.bf16.mxu0 0
      %1138 = vmatpush1.bf16.msra.mxu0 0
      %1139 = vmatprep.subr.bf16.mxu0 0
      %1140 = vmatpush1.bf16.msra.mxu0 0
      %1141 = vmatprep.subr.bf16.mxu0 0
      %1142 = vmatpush1.bf16.msra.mxu0 0
      %1143 = vmatprep.mubr.bf16.mxu0 0
      %1144 = vmatmul.mubr.bf16.gmra.mrb[0].mxu0 %v845
      %v1145 = vpop.f32.mrb[0].mxu0
      %v1146 = vadd.f32 %v1081, %v1145
      %v1147 = vpop.f32.mrb[0].mxu0
      %v1148 = vpop.f32.mrb[0].mxu0
      %v1149 = vadd.f32 %v1084, %v1148
      %v1150 = vpop.f32.mrb[0].mxu0
      %1151 = vmatprep.mubr.bf16.mxu0 0
      %1152 = vmatmul.mubr.bf16.gmra.mrb[0].mxu0 %v846
      %v1153 = vpop.f32.mrb[0].mxu0
      %v1154 = vadd.f32 %v1089, %v1153
      %v1155 = vpop.f32.mrb[0].mxu0
      %v1156 = vpop.f32.mrb[0].mxu0
      %v1157 = vadd.f32 %v1092, %v1156
      %v1158 = vpop.f32.mrb[0].mxu0
      %1159 = vmatprep.mubr.bf16.mxu0 0
      %1160 = vmatmul.mubr.bf16.gmra.mrb[0].mxu0 %v847
      %v1161 = vpop.f32.mrb[0].mxu0
      %v1162 = vadd.f32 %v1097, %v1161
      %v1163 = vpop.f32.mrb[0].mxu0
      %v1164 = vpop.f32.mrb[0].mxu0
      %v1165 = vadd.f32 %v1100, %v1164
      %v1166 = vpop.f32.mrb[0].mxu0
      %1167 = vmatprep.mubr.bf16.mxu0 0
      %1168 = vmatmul.mubr.bf16.gmra.mrb[0].mxu0 %v848
      %v1169 = vpop.f32.mrb[0].mxu0
      %v1170 = vadd.f32 %v1105, %v1169
      %v1171 = vpop.f32.mrb[0].mxu0
      %v1172 = vpop.f32.mrb[0].mxu0
      %v1173 = vadd.f32 %v1108, %v1172
      %v1174 = vpop.f32.mrb[0].mxu0
      %1175 = vdwg.mxu0
      %v1224 = vunpack.c.l.b16 %v603
      %v1225 = vunpack.c.l.b16 %v604
      %v1226 = vunpack.c.l.b16 %v605
      %v1227 = vunpack.c.l.b16 %v606
      %v1228 = vunpack.c.l.b16 %v607
      %v1229 = vunpack.c.l.b16 %v608
      %v1230 = vunpack.c.l.b16 %v609
      %v1231 = vunpack.c.l.b16 %v610
      %v1232 = vunpack.c.l.b16 %v611
      %v1233 = vunpack.c.l.b16 %v612
      %v1234 = vunpack.c.l.b16 %v613
      %v1235 = vunpack.c.l.b16 %v614
      %v1236 = vunpack.c.l.b16 %v615
      %v1237 = vunpack.c.l.b16 %v616
      %v1238 = vunpack.c.l.b16 %v617
      %v1239 = vunpack.c.l.b16 %v618
      %v1240 = vunpack.c.l.b16 %v619
      %v1241 = vunpack.c.l.b16 %v620
      %v1242 = vunpack.c.l.b16 %v621
      %v1243 = vunpack.c.l.b16 %v622
      %v1244 = vunpack.c.l.b16 %v623
      %v1245 = vunpack.c.l.b16 %v624
      %v1246 = vunpack.c.l.b16 %v625
      %v1247 = vunpack.c.l.b16 %v626
      %v1248 = vunpack.c.l.b16 %v627
      %v1249 = vunpack.c.l.b16 %v628
      %v1250 = vunpack.c.l.b16 %v629
      %v1251 = vunpack.c.l.b16 %v630
      %v1252 = vunpack.c.l.b16 %v631
      %v1253 = vunpack.c.l.b16 %v632
      %v1254 = vunpack.c.l.b16 %v633
      %v1255 = vunpack.c.l.b16 %v634
      %v1256 = vunpack.c.l.b16 %v635
      %v1257 = vunpack.c.l.b16 %v636
      %v1258 = vunpack.c.l.b16 %v637
      %v1259 = vunpack.c.l.b16 %v638
      %v1260 = vunpack.c.l.b16 %v639
      %v1261 = vunpack.c.l.b16 %v640
      %v1262 = vunpack.c.l.b16 %v641
      %v1263 = vunpack.c.l.b16 %v642
      %v1264 = vunpack.c.l.b16 %v643
      %v1265 = vunpack.c.l.b16 %v644
      %v1266 = vunpack.c.l.b16 %v645
      %v1267 = vunpack.c.l.b16 %v646
      %v1268 = vunpack.c.l.b16 %v647
      %v1269 = vunpack.c.l.b16 %v648
      %v1270 = vunpack.c.l.b16 %v649
      %v1271 = vunpack.c.l.b16 %v650
      %v1272 = vpack.c.b16 %v1225, %v1224
      %v1273 = vpack.c.b16 %v1227, %v1226
      %v1274 = vpack.c.b16 %v1229, %v1228
      %v1275 = vpack.c.b16 %v1231, %v1230
      %v1276 = vpack.c.b16 %v1233, %v1232
      %v1277 = vpack.c.b16 %v1235, %v1234
      %v1278 = vpack.c.b16 %v1237, %v1236
      %v1279 = vpack.c.b16 %v1239, %v1238
      %v1280 = vpack.c.b16 %v1241, %v1240
      %v1281 = vpack.c.b16 %v1243, %v1242
      %v1282 = vpack.c.b16 %v1245, %v1244
      %v1283 = vpack.c.b16 %v1247, %v1246
      %v1284 = vpack.c.b16 %v1249, %v1248
      %v1285 = vpack.c.b16 %v1251, %v1250
      %v1286 = vpack.c.b16 %v1253, %v1252
      %v1287 = vpack.c.b16 %v1255, %v1254
      %v1288 = vpack.c.b16 %v1257, %v1256
      %v1289 = vpack.c.b16 %v1259, %v1258
      %v1290 = vpack.c.b16 %v1261, %v1260
      %v1291 = vpack.c.b16 %v1263, %v1262
      %v1292 = vpack.c.b16 %v1265, %v1264
      %v1293 = vpack.c.b16 %v1267, %v1266
      %v1294 = vpack.c.b16 %v1269, %v1268
      %v1295 = vpack.c.b16 %v1271, %v1270
      %1320 = vmatprep.subr.bf16.mxu0 0
      %1321 = vmatpush1.bf16.msra.mxu0 %v1272
      %1322 = vmatprep.subr.bf16.mxu0 0
      %1323 = vmatpush1.bf16.msra.mxu0 %v1273
      %1324 = vmatprep.subr.bf16.mxu0 0
      %1325 = vmatpush1.bf16.msra.mxu0 %v1274
      %1326 = vmatprep.subr.bf16.mxu0 0
      %1327 = vmatpush1.bf16.msra.mxu0 %v1275
      %1328 = vmatprep.subr.bf16.mxu0 0
      %1329 = vmatpush1.bf16.msra.mxu0 %v1276
      %1330 = vmatprep.subr.bf16.mxu0 0
      %1331 = vmatpush1.bf16.msra.mxu0 %v1277
      %1332 = vmatprep.subr.bf16.mxu0 0
      %1333 = vmatpush1.bf16.msra.mxu0 %v1278
      %1334 = vmatprep.subr.bf16.mxu0 0
      %1335 = vmatpush1.bf16.msra.mxu0 %v1279
      %1336 = vmatprep.subr.bf16.mxu0 0
      %1337 = vmatpush1.bf16.msra.mxu0 %v1280
      %1338 = vmatprep.subr.bf16.mxu0 0
      %1339 = vmatpush1.bf16.msra.mxu0 %v1281
      %1340 = vmatprep.subr.bf16.mxu0 0
      %1341 = vmatpush1.bf16.msra.mxu0 %v1282
      %1342 = vmatprep.subr.bf16.mxu0 0
      %1343 = vmatpush1.bf16.msra.mxu0 %v1283
      %1344 = vmatprep.subr.bf16.mxu0 0
      %1345 = vmatpush1.bf16.msra.mxu0 %v1284
      %1346 = vmatprep.subr.bf16.mxu0 0
      %1347 = vmatpush1.bf16.msra.mxu0 %v1285
      %1348 = vmatprep.subr.bf16.mxu0 0
      %1349 = vmatpush1.bf16.msra.mxu0 %v1286
      %1350 = vmatprep.subr.bf16.mxu0 0
      %1351 = vmatpush1.bf16.msra.mxu0 %v1287
      %1352 = vmatprep.mubr.bf16.mxu0 %v579
      %1353 = vmatmul.mubr.bf16.gmra.mrb[0].mxu0 %v555
      %v1354 = vpop.f32.mrb[0].mxu0
      %v1355 = vadd.f32 %v1146, %v1354
      %v1356 = vpop.f32.mrb[0].mxu0
      %v1357 = vpop.f32.mrb[0].mxu0
      %v1358 = vadd.f32 %v1149, %v1357
      %v1359 = vpop.f32.mrb[0].mxu0
      %1360 = vmatprep.mubr.bf16.mxu0 %v580
      %1361 = vmatmul.mubr.bf16.gmra.mrb[0].mxu0 %v556
      %v1362 = vpop.f32.mrb[0].mxu0
      %v1363 = vadd.f32 %v1154, %v1362
      %v1364 = vpop.f32.mrb[0].mxu0
      %v1365 = vpop.f32.mrb[0].mxu0
      %v1366 = vadd.f32 %v1157, %v1365
      %v1367 = vpop.f32.mrb[0].mxu0
      %1368 = vmatprep.mubr.bf16.mxu0 %v581
      %1369 = vmatmul.mubr.bf16.gmra.mrb[0].mxu0 %v557
      %v1370 = vpop.f32.mrb[0].mxu0
      %v1371 = vadd.f32 %v1162, %v1370
      %v1372 = vpop.f32.mrb[0].mxu0
      %v1373 = vpop.f32.mrb[0].mxu0
      %v1374 = vadd.f32 %v1165, %v1373
      %v1375 = vpop.f32.mrb[0].mxu0
      %1376 = vmatprep.mubr.bf16.mxu0 %v582
      %1377 = vmatmul.mubr.bf16.gmra.mrb[0].mxu0 %v558
      %v1378 = vpop.f32.mrb[0].mxu0
      %v1379 = vadd.f32 %v1170, %v1378
      %v1380 = vpop.f32.mrb[0].mxu0
      %v1381 = vpop.f32.mrb[0].mxu0
      %v1382 = vadd.f32 %v1173, %v1381
      %v1383 = vpop.f32.mrb[0].mxu0
      %1384 = vdwg.mxu0
      %1385 = vmatprep.subr.bf16.mxu0 0
      %1386 = vmatpush1.bf16.msra.mxu0 %v1288
      %1387 = vmatprep.subr.bf16.mxu0 0
      %1388 = vmatpush1.bf16.msra.mxu0 %v1289
      %1389 = vmatprep.subr.bf16.mxu0 0
      %1390 = vmatpush1.bf16.msra.mxu0 %v1290
      %1391 = vmatprep.subr.bf16.mxu0 0
      %1392 = vmatpush1.bf16.msra.mxu0 %v1291
      %1393 = vmatprep.subr.bf16.mxu0 0
      %1394 = vmatpush1.bf16.msra.mxu0 %v1292
      %1395 = vmatprep.subr.bf16.mxu0 0
      %1396 = vmatpush1.bf16.msra.mxu0 %v1293
      %1397 = vmatprep.subr.bf16.mxu0 0
      %1398 = vmatpush1.bf16.msra.mxu0 %v1294
      %1399 = vmatprep.subr.bf16.mxu0 0
      %1400 = vmatpush1.bf16.msra.mxu0 %v1295
      %1401 = vmatprep.subr.bf16.mxu0 0
      %1402 = vmatpush1.bf16.msra.mxu0 0
      %1403 = vmatprep.subr.bf16.mxu0 0
      %1404 = vmatpush1.bf16.msra.mxu0 0
      %1405 = vmatprep.subr.bf16.mxu0 0
      %1406 = vmatpush1.bf16.msra.mxu0 0
      %1407 = vmatprep.subr.bf16.mxu0 0
      %1408 = vmatpush1.bf16.msra.mxu0 0
      %1409 = vmatprep.subr.bf16.mxu0 0
      %1410 = vmatpush1.bf16.msra.mxu0 0
      %1411 = vmatprep.subr.bf16.mxu0 0
      %1412 = vmatpush1.bf16.msra.mxu0 0
      %1413 = vmatprep.subr.bf16.mxu0 0
      %1414 = vmatpush1.bf16.msra.mxu0 0
      %1415 = vmatprep.subr.bf16.mxu0 0
      %1416 = vmatpush1.bf16.msra.mxu0 0
      %1417 = vmatprep.mubr.bf16.mxu0 0
      %1418 = vmatmul.mubr.bf16.gmra.mrb[0].mxu0 %v595
      %v1419 = vpop.f32.mrb[0].mxu0
      %v1420 = vadd.f32 %v1355, %v1419
      %v1421 = vpop.f32.mrb[0].mxu0
      %v1422 = vpop.f32.mrb[0].mxu0
      %v1423 = vadd.f32 %v1358, %v1422
      %v1424 = vpop.f32.mrb[0].mxu0
      %1425 = vmatprep.mubr.bf16.mxu0 0
      %1426 = vmatmul.mubr.bf16.gmra.mrb[0].mxu0 %v596
      %v1427 = vpop.f32.mrb[0].mxu0
      %v1428 = vadd.f32 %v1363, %v1427
      %v1429 = vpop.f32.mrb[0].mxu0
      %v1430 = vpop.f32.mrb[0].mxu0
      %v1431 = vadd.f32 %v1366, %v1430
      %v1432 = vpop.f32.mrb[0].mxu0
      %1433 = vmatprep.mubr.bf16.mxu0 0
      %1434 = vmatmul.mubr.bf16.gmra.mrb[0].mxu0 %v597
      %v1435 = vpop.f32.mrb[0].mxu0
      %v1436 = vadd.f32 %v1371, %v1435
      %v1437 = vpop.f32.mrb[0].mxu0
      %v1438 = vpop.f32.mrb[0].mxu0
      %v1439 = vadd.f32 %v1374, %v1438
      %v1440 = vpop.f32.mrb[0].mxu0
      %1441 = vmatprep.mubr.bf16.mxu0 0
      %1442 = vmatmul.mubr.bf16.gmra.mrb[0].mxu0 %v598
      %v1443 = vpop.f32.mrb[0].mxu0
      %v1444 = vadd.f32 %v1379, %v1443
      %v1445 = vpop.f32.mrb[0].mxu0
      %v1446 = vpop.f32.mrb[0].mxu0
      %v1447 = vadd.f32 %v1382, %v1446
      %v1448 = vpop.f32.mrb[0].mxu0
      %1449 = vdwg.mxu0
      %s1450 = scalar_lea.vmem %s370, 8
      %v1451 = vld [vmem:[%s1450] sm:$0xf]
      %v1452 = vld [vmem:[%s1450 + $0x8] sm:$0xf]
      %v1453 = vld [vmem:[%s1450 + $0x10] sm:$0xf]
      %v1454 = vld [vmem:[%s1450 + $0x18] sm:$0xf]
      %v1455 = vld [vmem:[%s1450 + $0x20] sm:$0xf]
      %v1456 = vld [vmem:[%s1450 + $0x28] sm:$0xf]
      %v1457 = vld [vmem:[%s1450 + $0x30] sm:$0xf]
      %v1458 = vld [vmem:[%s1450 + $0x38] sm:$0xf]
      %s1459 = scalar_lea.vmem %s370, 80
      %v1460 = vld [vmem:[%s1459] sm:$0xf]
      %v1461 = vld [vmem:[%s1459 + $0x8] sm:$0xf]
      %v1462 = vld [vmem:[%s1459 + $0x10] sm:$0xf]
      %v1463 = vld [vmem:[%s1459 + $0x18] sm:$0xf]
      %v1464 = vld [vmem:[%s1459 + $0x20] sm:$0xf]
      %v1465 = vld [vmem:[%s1459 + $0x28] sm:$0xf]
      %v1466 = vld [vmem:[%s1459 + $0x30] sm:$0xf]
      %v1467 = vld [vmem:[%s1459 + $0x38] sm:$0xf]
      %v1468 = vld [vmem:[%s1450 + $0x4] sm:$0x1]
      %v1469 = vld [vmem:[%s1450 + $0xc] sm:$0x1]
      %v1470 = vld [vmem:[%s1450 + $0x14] sm:$0x1]
      %v1471 = vld [vmem:[%s1450 + $0x1c] sm:$0x1]
      %v1472 = vld [vmem:[%s1450 + $0x24] sm:$0x1]
      %v1473 = vld [vmem:[%s1450 + $0x2c] sm:$0x1]
      %v1474 = vld [vmem:[%s1450 + $0x34] sm:$0x1]
      %v1475 = vld [vmem:[%s1450 + $0x3c] sm:$0x1]
      %v1477 = vshrl.u32 %v1451, 16
      %v1479 = vrot.slane %v1477, 4
      %v1480 = vshll.u32 %v1451, 16
      %v1482 = vrot.slane %v1480, 5
      %v1483 = vor.u32 %v1479, %v1482
      %v1484 = vrot.slane %v1483, 4
      %v1486 = vshll.u32 %v1468, 16
      %v1488 = vrot.slane %v1486, 5
      %v1489 = vsel %vm426, %v1484, %v1488
      %v1491 = vshrl.u32 %v1452, 16
      %v1493 = vrot.slane %v1491, 4
      %v1494 = vshll.u32 %v1452, 16
      %v1496 = vrot.slane %v1494, 5
      %v1497 = vor.u32 %v1493, %v1496
      %v1498 = vrot.slane %v1497, 4
      %v1500 = vshll.u32 %v1469, 16
      %v1502 = vrot.slane %v1500, 5
      %v1503 = vsel %vm426, %v1498, %v1502
      %v1505 = vshrl.u32 %v1453, 16
      %v1507 = vrot.slane %v1505, 4
      %v1508 = vshll.u32 %v1453, 16
      %v1510 = vrot.slane %v1508, 5
      %v1511 = vor.u32 %v1507, %v1510
      %v1512 = vrot.slane %v1511, 4
      %v1514 = vshll.u32 %v1470, 16
      %v1516 = vrot.slane %v1514, 5
      %v1517 = vsel %vm426, %v1512, %v1516
      %v1519 = vshrl.u32 %v1454, 16
      %v1521 = vrot.slane %v1519, 4
      %v1522 = vshll.u32 %v1454, 16
      %v1524 = vrot.slane %v1522, 5
      %v1525 = vor.u32 %v1521, %v1524
      %v1526 = vrot.slane %v1525, 4
      %v1528 = vshll.u32 %v1471, 16
      %v1530 = vrot.slane %v1528, 5
      %v1531 = vsel %vm426, %v1526, %v1530
      %v1533 = vshrl.u32 %v1455, 16
      %v1535 = vrot.slane %v1533, 4
      %v1536 = vshll.u32 %v1455, 16
      %v1538 = vrot.slane %v1536, 5
      %v1539 = vor.u32 %v1535, %v1538
      %v1540 = vrot.slane %v1539, 4
      %v1542 = vshll.u32 %v1472, 16
      %v1544 = vrot.slane %v1542, 5
      %v1545 = vsel %vm426, %v1540, %v1544
      %v1547 = vshrl.u32 %v1456, 16
      %v1549 = vrot.slane %v1547, 4
      %v1550 = vshll.u32 %v1456, 16
      %v1552 = vrot.slane %v1550, 5
      %v1553 = vor.u32 %v1549, %v1552
      %v1554 = vrot.slane %v1553, 4
      %v1556 = vshll.u32 %v1473, 16
      %v1558 = vrot.slane %v1556, 5
      %v1559 = vsel %vm426, %v1554, %v1558
      %v1561 = vshrl.u32 %v1457, 16
      %v1563 = vrot.slane %v1561, 4
      %v1564 = vshll.u32 %v1457, 16
      %v1566 = vrot.slane %v1564, 5
      %v1567 = vor.u32 %v1563, %v1566
      %v1568 = vrot.slane %v1567, 4
      %v1570 = vshll.u32 %v1474, 16
      %v1572 = vrot.slane %v1570, 5
      %v1573 = vsel %vm426, %v1568, %v1572
      %v1575 = vshrl.u32 %v1458, 16
      %v1577 = vrot.slane %v1575, 4
      %v1578 = vshll.u32 %v1458, 16
      %v1580 = vrot.slane %v1578, 5
      %v1581 = vor.u32 %v1577, %v1580
      %v1582 = vrot.slane %v1581, 4
      %v1584 = vshll.u32 %v1475, 16
      %v1586 = vrot.slane %v1584, 5
      %v1587 = vsel %vm426, %v1582, %v1586
      %v1596 = vunpack.c.l.b16 %v1451
      %v1597 = vunpack.c.l.b16 %v1452
      %v1598 = vunpack.c.l.b16 %v1453
      %v1599 = vunpack.c.l.b16 %v1454
      %v1600 = vunpack.c.l.b16 %v1455
      %v1601 = vunpack.c.l.b16 %v1456
      %v1602 = vunpack.c.l.b16 %v1457
      %v1603 = vunpack.c.l.b16 %v1458
      %v1604 = vpack.c.b16 %v1597, %v1596
      %v1605 = vpack.c.b16 %v1599, %v1598
      %v1606 = vpack.c.b16 %v1601, %v1600
      %v1607 = vpack.c.b16 %v1603, %v1602
      %v1620 = vunpack.c.l.b16 %v1460
      %v1621 = vunpack.c.l.b16 %v1461
      %v1622 = vunpack.c.l.b16 %v1462
      %v1623 = vunpack.c.l.b16 %v1463
      %v1624 = vunpack.c.l.b16 %v1464
      %v1625 = vunpack.c.l.b16 %v1465
      %v1626 = vunpack.c.l.b16 %v1466
      %v1627 = vunpack.c.l.b16 %v1467
      %v1628 = vpack.c.b16 %v1621, %v1620
      %v1629 = vpack.c.b16 %v1623, %v1622
      %v1630 = vpack.c.b16 %v1625, %v1624
      %v1631 = vpack.c.b16 %v1627, %v1626
      %v1636 = vunpack.c.l.b16 %v1489
      %v1637 = vunpack.c.l.b16 %v1503
      %v1638 = vunpack.c.l.b16 %v1517
      %v1639 = vunpack.c.l.b16 %v1531
      %v1640 = vunpack.c.l.b16 %v1545
      %v1641 = vunpack.c.l.b16 %v1559
      %v1642 = vunpack.c.l.b16 %v1573
      %v1643 = vunpack.c.l.b16 %v1587
      %v1644 = vpack.c.b16 %v1637, %v1636
      %v1645 = vpack.c.b16 %v1639, %v1638
      %v1646 = vpack.c.b16 %v1641, %v1640
      %v1647 = vpack.c.b16 %v1643, %v1642
      %s1652 = scalar_lea.vmem %s1, 384
      %v1653 = vld [vmem:[%s1652] sm:$0xf]
      %v1654 = vld [vmem:[%s1652 + $0x4] sm:$0xf]
      %v1655 = vld [vmem:[%s1652 + $0x8] sm:$0xf]
      %v1656 = vld [vmem:[%s1652 + $0xc] sm:$0xf]
      %v1657 = vld [vmem:[%s1652 + $0x10] sm:$0xf]
      %v1658 = vld [vmem:[%s1652 + $0x14] sm:$0xf]
      %v1659 = vld [vmem:[%s1652 + $0x18] sm:$0xf]
      %v1660 = vld [vmem:[%s1652 + $0x1c] sm:$0xf]
      %v1661 = vld [vmem:[%s1652 + $0x20] sm:$0xf]
      %v1662 = vld [vmem:[%s1652 + $0x24] sm:$0xf]
      %v1663 = vld [vmem:[%s1652 + $0x28] sm:$0xf]
      %v1664 = vld [vmem:[%s1652 + $0x2c] sm:$0xf]
      %v1665 = vld [vmem:[%s1652 + $0x30] sm:$0xf]
      %v1666 = vld [vmem:[%s1652 + $0x34] sm:$0xf]
      %v1667 = vld [vmem:[%s1652 + $0x38] sm:$0xf]
      %v1668 = vld [vmem:[%s1652 + $0x3c] sm:$0xf]
      %v1669 = vld [vmem:[%s1652 + $0x40] sm:$0xf]
      %v1670 = vld [vmem:[%s1652 + $0x44] sm:$0xf]
      %v1671 = vld [vmem:[%s1652 + $0x48] sm:$0xf]
      %v1672 = vld [vmem:[%s1652 + $0x4c] sm:$0xf]
      %v1673 = vld [vmem:[%s1652 + $0x50] sm:$0xf]
      %v1674 = vld [vmem:[%s1652 + $0x54] sm:$0xf]
      %v1675 = vld [vmem:[%s1652 + $0x58] sm:$0xf]
      %v1676 = vld [vmem:[%s1652 + $0x5c] sm:$0xf]
      %v1677 = vld [vmem:[%s1652 + $0x60] sm:$0xf]
      %v1678 = vld [vmem:[%s1652 + $0x64] sm:$0xf]
      %v1679 = vld [vmem:[%s1652 + $0x68] sm:$0xf]
      %v1680 = vld [vmem:[%s1652 + $0x6c] sm:$0xf]
      %v1681 = vld [vmem:[%s1652 + $0x70] sm:$0xf]
      %v1682 = vld [vmem:[%s1652 + $0x74] sm:$0xf]
      %v1683 = vld [vmem:[%s1652 + $0x78] sm:$0xf]
      %v1684 = vld [vmem:[%s1652 + $0x7c] sm:$0xf]
      %v1685 = vld [vmem:[%s1652 + $0x80] sm:$0xf]
      %v1686 = vld [vmem:[%s1652 + $0x84] sm:$0xf]
      %v1687 = vld [vmem:[%s1652 + $0x88] sm:$0xf]
      %v1688 = vld [vmem:[%s1652 + $0x8c] sm:$0xf]
      %v1689 = vld [vmem:[%s1652 + $0x90] sm:$0xf]
      %v1690 = vld [vmem:[%s1652 + $0x94] sm:$0xf]
      %v1691 = vld [vmem:[%s1652 + $0x98] sm:$0xf]
      %v1692 = vld [vmem:[%s1652 + $0x9c] sm:$0xf]
      %v1693 = vld [vmem:[%s1652 + $0xa0] sm:$0xf]
      %v1694 = vld [vmem:[%s1652 + $0xa4] sm:$0xf]
      %v1695 = vld [vmem:[%s1652 + $0xa8] sm:$0xf]
      %v1696 = vld [vmem:[%s1652 + $0xac] sm:$0xf]
      %v1697 = vld [vmem:[%s1652 + $0xb0] sm:$0xf]
      %v1698 = vld [vmem:[%s1652 + $0xb4] sm:$0xf]
      %v1699 = vld [vmem:[%s1652 + $0xb8] sm:$0xf]
      %v1700 = vld [vmem:[%s1652 + $0xbc] sm:$0xf]
      %v1749 = vunpack.c.l.b16 %v1653
      %v1750 = vunpack.c.l.b16 %v1654
      %v1751 = vunpack.c.l.b16 %v1655
      %v1752 = vunpack.c.l.b16 %v1656
      %v1753 = vunpack.c.l.b16 %v1657
      %v1754 = vunpack.c.l.b16 %v1658
      %v1755 = vunpack.c.l.b16 %v1659
      %v1756 = vunpack.c.l.b16 %v1660
      %v1757 = vunpack.c.l.b16 %v1661
      %v1758 = vunpack.c.l.b16 %v1662
      %v1759 = vunpack.c.l.b16 %v1663
      %v1760 = vunpack.c.l.b16 %v1664
      %v1761 = vunpack.c.l.b16 %v1665
      %v1762 = vunpack.c.l.b16 %v1666
      %v1763 = vunpack.c.l.b16 %v1667
      %v1764 = vunpack.c.l.b16 %v1668
      %v1765 = vunpack.c.l.b16 %v1669
      %v1766 = vunpack.c.l.b16 %v1670
      %v1767 = vunpack.c.l.b16 %v1671
      %v1768 = vunpack.c.l.b16 %v1672
      %v1769 = vunpack.c.l.b16 %v1673
      %v1770 = vunpack.c.l.b16 %v1674
      %v1771 = vunpack.c.l.b16 %v1675
      %v1772 = vunpack.c.l.b16 %v1676
      %v1773 = vunpack.c.l.b16 %v1677
      %v1774 = vunpack.c.l.b16 %v1678
      %v1775 = vunpack.c.l.b16 %v1679
      %v1776 = vunpack.c.l.b16 %v1680
      %v1777 = vunpack.c.l.b16 %v1681
      %v1778 = vunpack.c.l.b16 %v1682
      %v1779 = vunpack.c.l.b16 %v1683
      %v1780 = vunpack.c.l.b16 %v1684
      %v1781 = vunpack.c.l.b16 %v1685
      %v1782 = vunpack.c.l.b16 %v1686
      %v1783 = vunpack.c.l.b16 %v1687
      %v1784 = vunpack.c.l.b16 %v1688
      %v1785 = vunpack.c.l.b16 %v1689
      %v1786 = vunpack.c.l.b16 %v1690
      %v1787 = vunpack.c.l.b16 %v1691
      %v1788 = vunpack.c.l.b16 %v1692
      %v1789 = vunpack.c.l.b16 %v1693
      %v1790 = vunpack.c.l.b16 %v1694
      %v1791 = vunpack.c.l.b16 %v1695
      %v1792 = vunpack.c.l.b16 %v1696
      %v1793 = vunpack.c.l.b16 %v1697
      %v1794 = vunpack.c.l.b16 %v1698
      %v1795 = vunpack.c.l.b16 %v1699
      %v1796 = vunpack.c.l.b16 %v1700
      %v1797 = vpack.c.b16 %v1750, %v1749
      %v1798 = vpack.c.b16 %v1752, %v1751
      %v1799 = vpack.c.b16 %v1754, %v1753
      %v1800 = vpack.c.b16 %v1756, %v1755
      %v1801 = vpack.c.b16 %v1758, %v1757
      %v1802 = vpack.c.b16 %v1760, %v1759
      %v1803 = vpack.c.b16 %v1762, %v1761
      %v1804 = vpack.c.b16 %v1764, %v1763
      %v1805 = vpack.c.b16 %v1766, %v1765
      %v1806 = vpack.c.b16 %v1768, %v1767
      %v1807 = vpack.c.b16 %v1770, %v1769
      %v1808 = vpack.c.b16 %v1772, %v1771
      %v1809 = vpack.c.b16 %v1774, %v1773
      %v1810 = vpack.c.b16 %v1776, %v1775
      %v1811 = vpack.c.b16 %v1778, %v1777
      %v1812 = vpack.c.b16 %v1780, %v1779
      %v1813 = vpack.c.b16 %v1782, %v1781
      %v1814 = vpack.c.b16 %v1784, %v1783
      %v1815 = vpack.c.b16 %v1786, %v1785
      %v1816 = vpack.c.b16 %v1788, %v1787
      %v1817 = vpack.c.b16 %v1790, %v1789
      %v1818 = vpack.c.b16 %v1792, %v1791
      %v1819 = vpack.c.b16 %v1794, %v1793
      %v1820 = vpack.c.b16 %v1796, %v1795
      %1845 = vmatprep.subr.bf16.mxu0 0
      %1846 = vmatpush1.bf16.msra.mxu0 %v1797
      %1847 = vmatprep.subr.bf16.mxu0 0
      %1848 = vmatpush1.bf16.msra.mxu0 %v1798
      %1849 = vmatprep.subr.bf16.mxu0 0
      %1850 = vmatpush1.bf16.msra.mxu0 %v1799
      %1851 = vmatprep.subr.bf16.mxu0 0
      %1852 = vmatpush1.bf16.msra.mxu0 %v1800
      %1853 = vmatprep.subr.bf16.mxu0 0
      %1854 = vmatpush1.bf16.msra.mxu0 %v1801
      %1855 = vmatprep.subr.bf16.mxu0 0
      %1856 = vmatpush1.bf16.msra.mxu0 %v1802
      %1857 = vmatprep.subr.bf16.mxu0 0
      %1858 = vmatpush1.bf16.msra.mxu0 %v1803
      %1859 = vmatprep.subr.bf16.mxu0 0
      %1860 = vmatpush1.bf16.msra.mxu0 %v1804
      %1861 = vmatprep.subr.bf16.mxu0 0
      %1862 = vmatpush1.bf16.msra.mxu0 %v1805
      %1863 = vmatprep.subr.bf16.mxu0 0
      %1864 = vmatpush1.bf16.msra.mxu0 %v1806
      %1865 = vmatprep.subr.bf16.mxu0 0
      %1866 = vmatpush1.bf16.msra.mxu0 %v1807
      %1867 = vmatprep.subr.bf16.mxu0 0
      %1868 = vmatpush1.bf16.msra.mxu0 %v1808
      %1869 = vmatprep.subr.bf16.mxu0 0
      %1870 = vmatpush1.bf16.msra.mxu0 %v1809
      %1871 = vmatprep.subr.bf16.mxu0 0
      %1872 = vmatpush1.bf16.msra.mxu0 %v1810
      %1873 = vmatprep.subr.bf16.mxu0 0
      %1874 = vmatpush1.bf16.msra.mxu0 %v1811
      %1875 = vmatprep.subr.bf16.mxu0 0
      %1876 = vmatpush1.bf16.msra.mxu0 %v1812
      %1877 = vmatprep.mubr.bf16.mxu0 %v1628
      %1878 = vmatmul.mubr.bf16.gmra.mrb[0].mxu0 %v1604
      %v1879 = vpop.f32.mrb[0].mxu0
      %v1880 = vadd.f32 0.0, %v1879
      %v1881 = vpop.f32.mrb[0].mxu0
      %v1882 = vpop.f32.mrb[0].mxu0
      %v1883 = vadd.f32 0.0, %v1882
      %v1884 = vpop.f32.mrb[0].mxu0
      %1885 = vmatprep.mubr.bf16.mxu0 %v1629
      %1886 = vmatmul.mubr.bf16.gmra.mrb[0].mxu0 %v1605
      %v1887 = vpop.f32.mrb[0].mxu0
      %v1888 = vadd.f32 0.0, %v1887
      %v1889 = vpop.f32.mrb[0].mxu0
      %v1890 = vpop.f32.mrb[0].mxu0
      %v1891 = vadd.f32 0.0, %v1890
      %v1892 = vpop.f32.mrb[0].mxu0
      %1893 = vmatprep.mubr.bf16.mxu0 %v1630
      %1894 = vmatmul.mubr.bf16.gmra.mrb[0].mxu0 %v1606
      %v1895 = vpop.f32.mrb[0].mxu0
      %v1896 = vadd.f32 0.0, %v1895
      %v1897 = vpop.f32.mrb[0].mxu0
      %v1898 = vpop.f32.mrb[0].mxu0
      %v1899 = vadd.f32 0.0, %v1898
      %v1900 = vpop.f32.mrb[0].mxu0
      %1901 = vmatprep.mubr.bf16.mxu0 %v1631
      %1902 = vmatmul.mubr.bf16.gmra.mrb[0].mxu0 %v1607
      %v1903 = vpop.f32.mrb[0].mxu0
      %v1904 = vadd.f32 0.0, %v1903
      %v1905 = vpop.f32.mrb[0].mxu0
      %v1906 = vpop.f32.mrb[0].mxu0
      %v1907 = vadd.f32 0.0, %v1906
      %v1908 = vpop.f32.mrb[0].mxu0
      %1909 = vdwg.mxu0
      %1910 = vmatprep.subr.bf16.mxu0 0
      %1911 = vmatpush1.bf16.msra.mxu0 %v1813
      %1912 = vmatprep.subr.bf16.mxu0 0
      %1913 = vmatpush1.bf16.msra.mxu0 %v1814
      %1914 = vmatprep.subr.bf16.mxu0 0
      %1915 = vmatpush1.bf16.msra.mxu0 %v1815
      %1916 = vmatprep.subr.bf16.mxu0 0
      %1917 = vmatpush1.bf16.msra.mxu0 %v1816
      %1918 = vmatprep.subr.bf16.mxu0 0
      %1919 = vmatpush1.bf16.msra.mxu0 %v1817
      %1920 = vmatprep.subr.bf16.mxu0 0
      %1921 = vmatpush1.bf16.msra.mxu0 %v1818
      %1922 = vmatprep.subr.bf16.mxu0 0
      %1923 = vmatpush1.bf16.msra.mxu0 %v1819
      %1924 = vmatprep.subr.bf16.mxu0 0
      %1925 = vmatpush1.bf16.msra.mxu0 %v1820
      %1926 = vmatprep.subr.bf16.mxu0 0
      %1927 = vmatpush1.bf16.msra.mxu0 0
      %1928 = vmatprep.subr.bf16.mxu0 0
      %1929 = vmatpush1.bf16.msra.mxu0 0
      %1930 = vmatprep.subr.bf16.mxu0 0
      %1931 = vmatpush1.bf16.msra.mxu0 0
      %1932 = vmatprep.subr.bf16.mxu0 0
      %1933 = vmatpush1.bf16.msra.mxu0 0
      %1934 = vmatprep.subr.bf16.mxu0 0
      %1935 = vmatpush1.bf16.msra.mxu0 0
      %1936 = vmatprep.subr.bf16.mxu0 0
      %1937 = vmatpush1.bf16.msra.mxu0 0
      %1938 = vmatprep.subr.bf16.mxu0 0
      %1939 = vmatpush1.bf16.msra.mxu0 0
      %1940 = vmatprep.subr.bf16.mxu0 0
      %1941 = vmatpush1.bf16.msra.mxu0 0
      %1942 = vmatprep.mubr.bf16.mxu0 0
      %1943 = vmatmul.mubr.bf16.gmra.mrb[0].mxu0 %v1644
      %v1944 = vpop.f32.mrb[0].mxu0
      %v1945 = vadd.f32 %v1880, %v1944
      %v1946 = vpop.f32.mrb[0].mxu0
      %v1947 = vpop.f32.mrb[0].mxu0
      %v1948 = vadd.f32 %v1883, %v1947
      %v1949 = vpop.f32.mrb[0].mxu0
      %1950 = vmatprep.mubr.bf16.mxu0 0
      %1951 = vmatmul.mubr.bf16.gmra.mrb[0].mxu0 %v1645
      %v1952 = vpop.f32.mrb[0].mxu0
      %v1953 = vadd.f32 %v1888, %v1952
      %v1954 = vpop.f32.mrb[0].mxu0
      %v1955 = vpop.f32.mrb[0].mxu0
      %v1956 = vadd.f32 %v1891, %v1955
      %v1957 = vpop.f32.mrb[0].mxu0
      %1958 = vmatprep.mubr.bf16.mxu0 0
      %1959 = vmatmul.mubr.bf16.gmra.mrb[0].mxu0 %v1646
      %v1960 = vpop.f32.mrb[0].mxu0
      %v1961 = vadd.f32 %v1896, %v1960
      %v1962 = vpop.f32.mrb[0].mxu0
      %v1963 = vpop.f32.mrb[0].mxu0
      %v1964 = vadd.f32 %v1899, %v1963
      %v1965 = vpop.f32.mrb[0].mxu0
      %1966 = vmatprep.mubr.bf16.mxu0 0
      %1967 = vmatmul.mubr.bf16.gmra.mrb[0].mxu0 %v1647
      %v1968 = vpop.f32.mrb[0].mxu0
      %v1969 = vadd.f32 %v1904, %v1968
      %v1970 = vpop.f32.mrb[0].mxu0
      %v1971 = vpop.f32.mrb[0].mxu0
      %v1972 = vadd.f32 %v1907, %v1971
      %v1973 = vpop.f32.mrb[0].mxu0
      %1974 = vdwg.mxu0
      %v1975 = vadd.f32 %v1420, %v1945
      %v1976 = vadd.f32 %v1423, %v1948
      %v1977 = vadd.f32 %v1428, %v1953
      %v1978 = vadd.f32 %v1431, %v1956
      %v1979 = vadd.f32 %v1436, %v1961
      %v1980 = vadd.f32 %v1439, %v1964
      %v1981 = vadd.f32 %v1444, %v1969
      %v1982 = vadd.f32 %v1447, %v1972
      %v1983 = vpack.c.bf16 %v1976, %v1975
      %v1984 = vpack.c.bf16 %v1978, %v1977
      %v1985 = vpack.c.bf16 %v1980, %v1979
      %v1986 = vpack.c.bf16 %v1982, %v1981
      %v1991 = vunpack.c.l.b16 %v1983
      %v1992 = vunpack.c.h.b16 %v1983
      %v1993 = vunpack.c.l.b16 %v1984
      %v1994 = vunpack.c.h.b16 %v1984
      %v1995 = vunpack.c.l.b16 %v1985
      %v1996 = vunpack.c.h.b16 %v1985
      %v1997 = vunpack.c.l.b16 %v1986
      %v1998 = vunpack.c.h.b16 %v1986
      %v1999 = vpack.c.b16 %v1991, %v1991
      %v2000 = vpack.c.b16 %v1992, %v1992
      %v2001 = vpack.c.b16 %v1993, %v1993
      %v2002 = vpack.c.b16 %v1994, %v1994
      %v2003 = vpack.c.b16 %v1995, %v1995
      %v2004 = vpack.c.b16 %v1996, %v1996
      %v2005 = vpack.c.b16 %v1997, %v1997
      %v2006 = vpack.c.b16 %v1998, %v1998
      %2015 = vst [vmem:[%s380] sm:$0xf] %v1999
      %2016 = vst [vmem:[%s380 + $0x4] sm:$0xf] %v2000
      %2017 = vst [vmem:[%s380 + $0x8] sm:$0xf] %v2001
      %2018 = vst [vmem:[%s380 + $0xc] sm:$0xf] %v2002
      %2019 = vst [vmem:[%s380 + $0x10] sm:$0xf] %v2003
      %2020 = vst [vmem:[%s380 + $0x14] sm:$0xf] %v2004
      %2021 = vst [vmem:[%s380 + $0x18] sm:$0xf] %v2005
      %2022 = vst [vmem:[%s380 + $0x1c] sm:$0xf] %v2006
      %v2023 = vadd.f32 %v1975, %v1976
      %v2024 = vadd.f32 %v2023, %v1977
      %v2025 = vadd.f32 %v2024, %v1978
      %v2026 = vadd.f32 %v2025, %v1979
      %v2027 = vadd.f32 %v2026, %v1980
      %v2028 = vadd.f32 %v2027, %v1981
      %v2029 = vadd.f32 %v2028, %v1982
      %v2030 = vrot.slane %v2029, 4
      %v2031 = vadd.f32 %v2029, %v2030
      %v2032 = vrot.slane %v2031, 2
      %v2033 = vadd.f32 %v2031, %v2032
      %v2034 = vrot.slane %v2033, 1
      %v2035 = vadd.f32 %v2033, %v2034
      %2036 = vst [vmem:[%s383] sm:$0x1] %v2035
      %v2037 = vmul.f32 %v1975, %v1975
      %v2038 = vmul.f32 %v1976, %v1976
      %v2039 = vmul.f32 %v1977, %v1977
      %v2040 = vmul.f32 %v1978, %v1978
      %v2041 = vmul.f32 %v1979, %v1979
      %v2042 = vmul.f32 %v1980, %v1980
      %v2043 = vmul.f32 %v1981, %v1981
      %v2044 = vmul.f32 %v1982, %v1982
      %v2045 = vadd.f32 %v2037, %v2038
      %v2046 = vadd.f32 %v2045, %v2039
      %v2047 = vadd.f32 %v2046, %v2040
      %v2048 = vadd.f32 %v2047, %v2041
      %v2049 = vadd.f32 %v2048, %v2042
      %v2050 = vadd.f32 %v2049, %v2043
      %v2051 = vadd.f32 %v2050, %v2044
      %v2052 = vrot.slane %v2051, 4
      %v2053 = vadd.f32 %v2051, %v2052
      %v2054 = vrot.slane %v2053, 2
      %v2055 = vadd.f32 %v2053, %v2054
      %v2056 = vrot.slane %v2055, 1
      %v2057 = vadd.f32 %v2055, %v2056
      %2058 = vst [vmem:[%s386] sm:$0x1] %v2057
      %v2059 = vld [vmem:[%s375] sm:$0xf]
      %v2060 = vld [vmem:[%s375 + $0x4] sm:$0xf]
      %v2061 = vld [vmem:[%s375 + $0x8] sm:$0xf]
      %v2062 = vld [vmem:[%s375 + $0xc] sm:$0xf]
      %v2063 = vld [vmem:[%s375 + $0x10] sm:$0xf]
      %v2064 = vld [vmem:[%s375 + $0x14] sm:$0xf]
      %v2065 = vld [vmem:[%s375 + $0x18] sm:$0xf]
      %v2066 = vld [vmem:[%s375 + $0x1c] sm:$0xf]
      %v2067 = vld [vmem:[%s3] sm:$0xf]
      %v2068 = vld [vmem:[%s3 + $0x4] sm:$0xf]
      %v2069 = vld [vmem:[%s3 + $0x8] sm:$0xf]
      %v2070 = vld [vmem:[%s3 + $0xc] sm:$0xf]
      %v2071 = vld [vmem:[%s3 + $0x10] sm:$0xf]
      %v2072 = vld [vmem:[%s3 + $0x14] sm:$0xf]
      %v2073 = vld [vmem:[%s3 + $0x18] sm:$0xf]
      %v2074 = vld [vmem:[%s3 + $0x1c] sm:$0xf]
      %v2075 = vld [vmem:[%s3 + $0x20] sm:$0xf]
      %v2076 = vld [vmem:[%s3 + $0x24] sm:$0xf]
      %v2077 = vld [vmem:[%s3 + $0x28] sm:$0xf]
      %v2078 = vld [vmem:[%s3 + $0x2c] sm:$0xf]
      %v2079 = vld [vmem:[%s3 + $0x30] sm:$0xf]
      %v2080 = vld [vmem:[%s3 + $0x34] sm:$0xf]
      %v2081 = vld [vmem:[%s3 + $0x38] sm:$0xf]
      %v2082 = vld [vmem:[%s3 + $0x3c] sm:$0xf]
      %v2091 = vunpack.c.l.b16 %v2059
      %v2092 = vunpack.c.l.b16 %v2060
      %v2093 = vunpack.c.l.b16 %v2061
      %v2094 = vunpack.c.l.b16 %v2062
      %v2095 = vunpack.c.l.b16 %v2063
      %v2096 = vunpack.c.l.b16 %v2064
      %v2097 = vunpack.c.l.b16 %v2065
      %v2098 = vunpack.c.l.b16 %v2066
      %v2099 = vpack.c.b16 %v2092, %v2091
      %v2100 = vpack.c.b16 %v2094, %v2093
      %v2101 = vpack.c.b16 %v2096, %v2095
      %v2102 = vpack.c.b16 %v2098, %v2097
      %v2123 = vunpack.c.l.b16 %v2067
      %v2124 = vunpack.c.l.b16 %v2068
      %v2125 = vunpack.c.l.b16 %v2069
      %v2126 = vunpack.c.l.b16 %v2070
      %v2127 = vunpack.c.l.b16 %v2071
      %v2128 = vunpack.c.l.b16 %v2072
      %v2129 = vunpack.c.l.b16 %v2073
      %v2130 = vunpack.c.l.b16 %v2074
      %v2131 = vunpack.c.l.b16 %v2075
      %v2132 = vunpack.c.l.b16 %v2076
      %v2133 = vunpack.c.l.b16 %v2077
      %v2134 = vunpack.c.l.b16 %v2078
      %v2135 = vunpack.c.l.b16 %v2079
      %v2136 = vunpack.c.l.b16 %v2080
      %v2137 = vunpack.c.l.b16 %v2081
      %v2138 = vunpack.c.l.b16 %v2082
      %v2139 = vpack.c.b16 %v2124, %v2123
      %v2140 = vpack.c.b16 %v2126, %v2125
      %v2141 = vpack.c.b16 %v2128, %v2127
      %v2142 = vpack.c.b16 %v2130, %v2129
      %v2143 = vpack.c.b16 %v2132, %v2131
      %v2144 = vpack.c.b16 %v2134, %v2133
      %v2145 = vpack.c.b16 %v2136, %v2135
      %v2146 = vpack.c.b16 %v2138, %v2137
      %2155 = vmatprep.subr.bf16.mxu0 0
      %2156 = vmatpush1.bf16.msra.mxu0 %v2139
      %2157 = vmatprep.subr.bf16.mxu0 0
      %2158 = vmatpush1.bf16.msra.mxu0 %v2140
      %2159 = vmatprep.subr.bf16.mxu0 0
      %2160 = vmatpush1.bf16.msra.mxu0 %v2141
      %2161 = vmatprep.subr.bf16.mxu0 0
      %2162 = vmatpush1.bf16.msra.mxu0 %v2142
      %2163 = vmatprep.subr.bf16.mxu0 0
      %2164 = vmatpush1.bf16.msra.mxu0 %v2143
      %2165 = vmatprep.subr.bf16.mxu0 0
      %2166 = vmatpush1.bf16.msra.mxu0 %v2144
      %2167 = vmatprep.subr.bf16.mxu0 0
      %2168 = vmatpush1.bf16.msra.mxu0 %v2145
      %2169 = vmatprep.subr.bf16.mxu0 0
      %2170 = vmatpush1.bf16.msra.mxu0 %v2146
      %2171 = vmatprep.subr.bf16.mxu0 0
      %2172 = vmatpush1.bf16.msra.mxu0 0
      %2173 = vmatprep.subr.bf16.mxu0 0
      %2174 = vmatpush1.bf16.msra.mxu0 0
      %2175 = vmatprep.subr.bf16.mxu0 0
      %2176 = vmatpush1.bf16.msra.mxu0 0
      %2177 = vmatprep.subr.bf16.mxu0 0
      %2178 = vmatpush1.bf16.msra.mxu0 0
      %2179 = vmatprep.subr.bf16.mxu0 0
      %2180 = vmatpush1.bf16.msra.mxu0 0
      %2181 = vmatprep.subr.bf16.mxu0 0
      %2182 = vmatpush1.bf16.msra.mxu0 0
      %2183 = vmatprep.subr.bf16.mxu0 0
      %2184 = vmatpush1.bf16.msra.mxu0 0
      %2185 = vmatprep.subr.bf16.mxu0 0
      %2186 = vmatpush1.bf16.msra.mxu0 0
      %2187 = vmatprep.mubr.bf16.mxu0 0
      %2188 = vmatmul.mubr.bf16.gmra.mrb[0].mxu0 %v2099
      %v2189 = vpop.f32.mrb[0].mxu0
      %v2190 = vadd.f32 0.0, %v2189
      %v2191 = vpop.f32.mrb[0].mxu0
      %v2192 = vpop.f32.mrb[0].mxu0
      %v2193 = vadd.f32 0.0, %v2192
      %v2194 = vpop.f32.mrb[0].mxu0
      %2195 = vmatprep.mubr.bf16.mxu0 0
      %2196 = vmatmul.mubr.bf16.gmra.mrb[0].mxu0 %v2100
      %v2197 = vpop.f32.mrb[0].mxu0
      %v2198 = vadd.f32 0.0, %v2197
      %v2199 = vpop.f32.mrb[0].mxu0
      %v2200 = vpop.f32.mrb[0].mxu0
      %v2201 = vadd.f32 0.0, %v2200
      %v2202 = vpop.f32.mrb[0].mxu0
      %2203 = vmatprep.mubr.bf16.mxu0 0
      %2204 = vmatmul.mubr.bf16.gmra.mrb[0].mxu0 %v2101
      %v2205 = vpop.f32.mrb[0].mxu0
      %v2206 = vadd.f32 0.0, %v2205
      %v2207 = vpop.f32.mrb[0].mxu0
      %v2208 = vpop.f32.mrb[0].mxu0
      %v2209 = vadd.f32 0.0, %v2208
      %v2210 = vpop.f32.mrb[0].mxu0
      %2211 = vmatprep.mubr.bf16.mxu0 0
      %2212 = vmatmul.mubr.bf16.gmra.mrb[0].mxu0 %v2102
      %v2213 = vpop.f32.mrb[0].mxu0
      %v2214 = vadd.f32 0.0, %v2213
      %v2215 = vpop.f32.mrb[0].mxu0
      %v2216 = vpop.f32.mrb[0].mxu0
      %v2217 = vadd.f32 0.0, %v2216
      %v2218 = vpop.f32.mrb[0].mxu0
      %2219 = vdwg.mxu0
      %v2220 = vpack.c.bf16 %v2193, %v2190
      %v2221 = vpack.c.bf16 %v2201, %v2198
      %v2222 = vpack.c.bf16 %v2209, %v2206
      %v2223 = vpack.c.bf16 %v2217, %v2214
      %v2228 = vunpack.c.l.b16 %v2220
      %v2229 = vunpack.c.h.b16 %v2220
      %v2230 = vunpack.c.l.b16 %v2221
      %v2231 = vunpack.c.h.b16 %v2221
      %v2232 = vunpack.c.l.b16 %v2222
      %v2233 = vunpack.c.h.b16 %v2222
      %v2234 = vunpack.c.l.b16 %v2223
      %v2235 = vunpack.c.h.b16 %v2223
      %v2236 = vpack.c.b16 %v2228, %v2228
      %v2237 = vpack.c.b16 %v2229, %v2229
      %v2238 = vpack.c.b16 %v2230, %v2230
      %v2239 = vpack.c.b16 %v2231, %v2231
      %v2240 = vpack.c.b16 %v2232, %v2232
      %v2241 = vpack.c.b16 %v2233, %v2233
      %v2242 = vpack.c.b16 %v2234, %v2234
      %v2243 = vpack.c.b16 %v2235, %v2235
      %2252 = vst [vmem:[%s391] sm:$0xf] %v2236
      %2253 = vst [vmem:[%s391 + $0x4] sm:$0xf] %v2237
      %2254 = vst [vmem:[%s391 + $0x8] sm:$0xf] %v2238
      %2255 = vst [vmem:[%s391 + $0xc] sm:$0xf] %v2239
      %2256 = vst [vmem:[%s391 + $0x10] sm:$0xf] %v2240
      %2257 = vst [vmem:[%s391 + $0x14] sm:$0xf] %v2241
      %2258 = vst [vmem:[%s391 + $0x18] sm:$0xf] %v2242
      %2259 = vst [vmem:[%s391 + $0x1c] sm:$0xf] %v2243
      %v2260 = vadd.f32 %v2190, %v2193
      %v2261 = vadd.f32 %v2260, %v2198
      %v2262 = vadd.f32 %v2261, %v2201
      %v2263 = vadd.f32 %v2262, %v2206
      %v2264 = vadd.f32 %v2263, %v2209
      %v2265 = vadd.f32 %v2264, %v2214
      %v2266 = vadd.f32 %v2265, %v2217
      %v2267 = vrot.slane %v2266, 4
      %v2268 = vadd.f32 %v2266, %v2267
      %v2269 = vrot.slane %v2268, 2
      %v2270 = vadd.f32 %v2268, %v2269
      %v2271 = vrot.slane %v2270, 1
      %v2272 = vadd.f32 %v2270, %v2271
      %2273 = vst [vmem:[%s394] sm:$0x1] %v2272
      %v2274 = vmul.f32 %v2190, %v2190
      %v2275 = vmul.f32 %v2193, %v2193
      %v2276 = vmul.f32 %v2198, %v2198
      %v2277 = vmul.f32 %v2201, %v2201
      %v2278 = vmul.f32 %v2206, %v2206
      %v2279 = vmul.f32 %v2209, %v2209
      %v2280 = vmul.f32 %v2214, %v2214
      %v2281 = vmul.f32 %v2217, %v2217
      %v2282 = vadd.f32 %v2274, %v2275
      %v2283 = vadd.f32 %v2282, %v2276
      %v2284 = vadd.f32 %v2283, %v2277
      %v2285 = vadd.f32 %v2284, %v2278
      %v2286 = vadd.f32 %v2285, %v2279
      %v2287 = vadd.f32 %v2286, %v2280
      %v2288 = vadd.f32 %v2287, %v2281
      %v2289 = vrot.slane %v2288, 4
      %v2290 = vadd.f32 %v2288, %v2289
      %v2291 = vrot.slane %v2290, 2
      %v2292 = vadd.f32 %v2290, %v2291
      %v2293 = vrot.slane %v2292, 1
      %v2294 = vadd.f32 %v2292, %v2293
      %2295 = vst [vmem:[%s397] sm:$0x1] %v2294
      %p2296 = scmp.lt.s32.totalorder %s21, 1
      %s2297 = scalar_select %p2296, %s21, 1
      %s2298 = smul.addr %s2297, 8
      %s2299 = smul.addr %s2298, 4
      %s2300 = scalar_lea.vmem %s4, %s2299
      %p2301 = scmp.lt.s32.totalorder %s21, 1
      %s2302 = scalar_select %p2301, %s21, 1
      %s2303 = scalar_lea.vmem %s5, %s2302
      %p2304 = scmp.lt.s32.totalorder %s21, 1
      %s2305 = scalar_select %p2304, %s21, 1
      %s2306 = scalar_lea.vmem %s6, %s2305
      %p2307 = scmp.lt.s32.totalorder %s21, 1
      %s2308 = scalar_select %p2307, %s21, 1
      %s2309 = smul.addr %s2308, 8
      %s2310 = smul.addr %s2309, 4
      %s2311 = scalar_lea.vmem %s7, %s2310
      %p2312 = scmp.lt.s32.totalorder %s21, 1
      %s2313 = scalar_select %p2312, %s21, 1
      %s2314 = scalar_lea.vmem %s8, %s2313
      %p2315 = scmp.lt.s32.totalorder %s21, 1
      %s2316 = scalar_select %p2315, %s21, 1
      %s2317 = scalar_lea.vmem %s9, %s2316
      // Predicated region
      $region37: #{basic_block_forward.3} parent=35 // pred_check
        %p2318 = pneg %p133
      $region38: #{basic_block_forward.3} parent=35 // pred_check_branch
        %2320 = sbr.rel (%p2318) target = $region40
      $region39: #{basic_block_forward.3} parent=35 // pred_region
        _
      $region40: #{basic_block_forward.3} parent=35 // pred_fallthru
        _
      // Predicated region
      $region41: #{basic_block_forward.3} parent=35 // pred_check
        %p2321 = pneg %p159
      $region42: #{basic_block_forward.3} parent=35 // pred_check_branch
        %2323 = sbr.rel (%p2321) target = $region44
      $region43: #{basic_block_forward.3} parent=35 // pred_region
        _
      $region44: #{basic_block_forward.3} parent=35 // pred_fallthru
        _
      // Predicated region
      $region45: #{basic_block_forward.3} parent=35 // pred_check
        %p2324 = pneg %p185
      $region46: #{basic_block_forward.3} parent=35 // pred_check_branch
        %2326 = sbr.rel (%p2324) target = $region48
      $region47: #{basic_block_forward.3} parent=35 // pred_region
        _
      $region48: #{basic_block_forward.3} parent=35 // pred_fallthru
        _
      // Predicated region
      $region49: #{basic_block_forward.3} parent=35 // pred_check
        %p2327 = pneg %p211
      $region50: #{basic_block_forward.3} parent=35 // pred_check_branch
        %2329 = sbr.rel (%p2327) target = $region52
      $region51: #{basic_block_forward.3} parent=35 // pred_region
        _
      $region52: #{basic_block_forward.3} parent=35 // pred_fallthru
        _
      // Predicated region
      $region53: #{basic_block_forward.3} parent=35 // pred_check
        %p2330 = pneg %p237
      $region54: #{basic_block_forward.3} parent=35 // pred_check_branch
        %2332 = sbr.rel (%p2330) target = $region56
      $region55: #{basic_block_forward.3} parent=35 // pred_region
        _
      $region56: #{basic_block_forward.3} parent=35 // pred_fallthru
        _
      // Predicated region
      $region57: #{basic_block_forward.3} parent=35 // pred_check
        %p2333 = pneg %p263
      $region58: #{basic_block_forward.3} parent=35 // pred_check_branch
        %2335 = sbr.rel (%p2333) target = $region60
      $region59: #{basic_block_forward.3} parent=35 // pred_region
        _
      $region60: #{basic_block_forward.3} parent=35 // pred_fallthru
        _
    $region36: #{basic_block_forward.3} parent=5 // pred_fallthru
      _
    %p2336 = scmp.le.s32.totalorder 2, %s16
    // Predicated region
    $region61: #{basic_block_forward.3} parent=5 // pred_check
      %p2337 = pneg %p2336
    $region62: #{basic_block_forward.3} parent=5 // pred_check_branch
      %2339 = sbr.rel (%p2337) target = $region64
    $region63: #{basic_block_forward.3} parent=5 // pred_region
      %s2340 = ssub.s32 %s16, 2
      // Predicated region
      $region65: #{basic_block_forward.3} parent=63 // pred_check
        %p2341 = pneg %p139
      $region66: #{basic_block_forward.3} parent=63 // pred_check_branch
        %2343 = sbr.rel (%p2341) target = $region68
      $region67: #{basic_block_forward.3} parent=63 // pred_region
        %p2344 = scmp.lt.s32.totalorder %s22, 1
        %s2345 = scalar_select %p2344, %s22, 1
        %s2346 = smul.addr %s2345, 8
        %s2347 = smul.addr %s2346, 4
        %s2348 = scalar_lea.vmem %s4, %s2347
      $region68: #{basic_block_forward.3} parent=63 // pred_fallthru
        _
      // Predicated region
      $region69: #{basic_block_forward.3} parent=63 // pred_check
        %p2349 = pneg %p165
      $region70: #{basic_block_forward.3} parent=63 // pred_check_branch
        %2351 = sbr.rel (%p2349) target = $region72
      $region71: #{basic_block_forward.3} parent=63 // pred_region
        %p2352 = scmp.lt.s32.totalorder %s22, 1
        %s2353 = scalar_select %p2352, %s22, 1
        %s2354 = scalar_lea.vmem %s5, %s2353
      $region72: #{basic_block_forward.3} parent=63 // pred_fallthru
        _
      // Predicated region
      $region73: #{basic_block_forward.3} parent=63 // pred_check
        %p2355 = pneg %p191
      $region74: #{basic_block_forward.3} parent=63 // pred_check_branch
        %2357 = sbr.rel (%p2355) target = $region76
      $region75: #{basic_block_forward.3} parent=63 // pred_region
        %p2358 = scmp.lt.s32.totalorder %s22, 1
        %s2359 = scalar_select %p2358, %s22, 1
        %s2360 = scalar_lea.vmem %s6, %s2359
      $region76: #{basic_block_forward.3} parent=63 // pred_fallthru
        _
      // Predicated region
      $region77: #{basic_block_forward.3} parent=63 // pred_check
        %p2361 = pneg %p217
      $region78: #{basic_block_forward.3} parent=63 // pred_check_branch
        %2363 = sbr.rel (%p2361) target = $region80
      $region79: #{basic_block_forward.3} parent=63 // pred_region
        %p2364 = scmp.lt.s32.totalorder %s22, 1
        %s2365 = scalar_select %p2364, %s22, 1
        %s2366 = smul.addr %s2365, 8
        %s2367 = smul.addr %s2366, 4
        %s2368 = scalar_lea.vmem %s7, %s2367
      $region80: #{basic_block_forward.3} parent=63 // pred_fallthru
        _
      // Predicated region
      $region81: #{basic_block_forward.3} parent=63 // pred_check
        %p2369 = pneg %p243
      $region82: #{basic_block_forward.3} parent=63 // pred_check_branch
        %2371 = sbr.rel (%p2369) target = $region84
      $region83: #{basic_block_forward.3} parent=63 // pred_region
        %p2372 = scmp.lt.s32.totalorder %s22, 1
        %s2373 = scalar_select %p2372, %s22, 1
        %s2374 = scalar_lea.vmem %s8, %s2373
      $region84: #{basic_block_forward.3} parent=63 // pred_fallthru
        _
      // Predicated region
      $region85: #{basic_block_forward.3} parent=63 // pred_check
        %p2375 = pneg %p269
      $region86: #{basic_block_forward.3} parent=63 // pred_check_branch
        %2377 = sbr.rel (%p2375) target = $region88
      $region87: #{basic_block_forward.3} parent=63 // pred_region
        %p2378 = scmp.lt.s32.totalorder %s22, 1
        %s2379 = scalar_select %p2378, %s22, 1
        %s2380 = scalar_lea.vmem %s9, %s2379
      $region88: #{basic_block_forward.3} parent=63 // pred_fallthru
        _
    $region64: #{basic_block_forward.3} parent=5 // pred_fallthru
      _
  $region6: #{basic_block_forward.3} parent=0 // loop_footer
    %s20 = sadd.s32 1, %s16
  $region7: #{basic_block_forward.3} parent=0 // loop_footer_branch
    %15 = sbr.rel target = $region3
  $region8: #{basic_block_forward.3} parent=0 // loop_exit
    _

// kernel: basic_block_forward.5
$region0: #{basic_block_forward.5}
  #allocation0 [shape = 'u32[]', space=smem, size = 0x4, offset = 0x4, fixed_abs, tag = 'smem constant byte address 0x4 - core index']
  #allocation1 [shape = 'u32[144,128]{1,0:T(1,128)}', space=vmem, size = 0x12000, scoped, tag = 'internal scratch']
  #allocation2 [shape = 'bf16[10,10,128]{2,1,0:T(8,128)(2,1)}', space=vmem, size = 0xa000, scoped, tag = 'scratch operand']
  %s0 = inlined_call_operand.vmem [shape: bf16[2,64,128], index: 0, kind: input, shape index: {}]
  %s1 = inlined_call_operand.vmem [shape: bf16[3,384,128], index: 1, kind: input, shape index: {}]
  %s2 = inlined_call_operand.vmem [shape: bf16[2,64,128], index: 2, kind: input, shape index: {}]
  %s3 = inlined_call_operand.vmem [shape: f32[1,128], index: 3, kind: input, shape index: {}]
  %s4 = inlined_call_operand.vmem [shape: f32[1,128], index: 4, kind: input, shape index: {}]
  %s5 = inlined_call_operand.vmem [shape: f32[1,128], index: 5, kind: input, shape index: {}]
  %s6 = inlined_call_operand.vmem [shape: f32[1,128], index: 6, kind: input, shape index: {}]
  %s7 = inlined_call_operand.vmem [shape: f32[1,128], index: 7, kind: input, shape index: {}]
  %s8 = inlined_call_operand.vmem [shape: f32[1,128], index: 8, kind: input, shape index: {}]
  %s9 = inlined_call_operand.vmem [shape: bf16[2,64,128], index: 9, kind: output, shape index: {}]
  %s10 = sld [smem:[#allocation0]]
  $region69: #{basic_block_forward.5} parent=0
    _
  %s12 = ssub.s32 1, %s10
  %s13 = scalar_select 0, %s12, %s10
  loop: start=0, step=1, limit=4
  $region2: #{basic_block_forward.5} parent=0 // loop_pre_header
    _
  $region3: #{basic_block_forward.5} parent=0 // loop_header
    %s15 = sphi 0, %s19
    %p16 = scmp.ge.s32.totalorder %s15, 4
    %s25 = sphi 0, %s27
    %s28 = sphi 0, %s25
    %s29 = sphi 0, %s28
    %s45 = sphi 0, %s29
    %s49 = sphi 0, %s49
    %s51 = sphi 0, %s49
    %s52 = sphi 0, %s51
    %s66 = sphi 0, %s52
    %s72 = sphi 0, %s74
    %s75 = sphi 0, %s72
    %s76 = sphi 0, %s75
    %s92 = sphi 0, %s76
    %s96 = sphi 0, %s96
    %s98 = sphi 0, %s96
    %s99 = sphi 0, %s98
    %s113 = sphi 0, %s99
    %s117 = sphi 0, %s117
    %s119 = sphi 0, %s117
    %s120 = sphi 0, %s119
    %s134 = sphi 0, %s120
    %s138 = sphi 0, %s138
    %s140 = sphi 0, %s138
    %s141 = sphi 0, %s140
    %s155 = sphi 0, %s141
    %s159 = sphi 0, %s159
    %s161 = sphi 0, %s159
    %s162 = sphi 0, %s161
    %s176 = sphi 0, %s162
    %s180 = sphi 0, %s180
    %s182 = sphi 0, %s180
    %s183 = sphi 0, %s182
    %s197 = sphi 0, %s183
    %s201 = sphi 0, %s201
    %s203 = sphi 0, %s201
    %s204 = sphi 0, %s203
    %s218 = sphi 0, %s204
    %s224 = sphi 0, %s226
    %s227 = sphi 0, %s224
    %s228 = sphi 0, %s227
    %s244 = sphi 0, %s228
  $region4: #{basic_block_forward.5} parent=0 // loop_header_branch
    %18 = sbr.rel (%p16) target = $region8
  $region5: #{basic_block_forward.5} parent=0 // loop_body
    %s20 = ssub.s32 %s15, 1
    %s21 = ssub.s32 %s15, 2
    %s22 = sadd.s32 %s15, 1
    %s23 = ssub.s32 %s15, %s22
    %p24 = scmp.eq.s32.totalorder %s23, 0
    %s26 = sadd.s32 %s25, 1
    %s27 = scalar_select %p24, %s25, %s26
    %p30 = pneg %p24
    %p31 = scmp.eq.s32.totalorder %s15, 1
    %p32 = por %p30, %p31
    %p33 = scmp.ne.s32.totalorder %s25, %s28
    %p34 = scmp.eq.s32.totalorder %s15, 0
    %p35 = por %p33, %p34
    %p36 = scmp.ne.s32.totalorder %s25, %s28
    %p37 = scmp.eq.s32.totalorder %s20, 1
    %p38 = por %p36, %p37
    %p39 = scmp.ne.s32.totalorder %s28, %s29
    %p40 = scmp.eq.s32.totalorder %s20, 0
    %p41 = por %p39, %p40
    %p42 = scmp.ne.s32.totalorder %s28, %s29
    %p43 = scmp.eq.s32.totalorder %s21, 1
    %p44 = por %p42, %p43
    %p46 = scmp.ne.s32.totalorder %s29, %s45
    %p47 = scmp.eq.s32.totalorder %s21, 0
    %p48 = por %p46, %p47
    %s50 = sadd.s32 %s49, 1
    %p53 = scmp.eq.s32.totalorder %s15, 1
    %p54 = scmp.ne.s32.totalorder %s49, %s51
    %p55 = scmp.eq.s32.totalorder %s15, 0
    %p56 = por %p54, %p55
    %p57 = scmp.ne.s32.totalorder %s49, %s51
    %p58 = scmp.eq.s32.totalorder %s20, 1
    %p59 = por %p57, %p58
    %p60 = scmp.ne.s32.totalorder %s51, %s52
    %p61 = scmp.eq.s32.totalorder %s20, 0
    %p62 = por %p60, %p61
    %p63 = scmp.ne.s32.totalorder %s51, %s52
    %p64 = scmp.eq.s32.totalorder %s21, 1
    %p65 = por %p63, %p64
    %p67 = scmp.ne.s32.totalorder %s52, %s66
    %p68 = scmp.eq.s32.totalorder %s21, 0
    %p69 = por %p67, %p68
    %s70 = ssub.s32 %s15, %s22
    %p71 = scmp.eq.s32.totalorder %s70, 0
    %s73 = sadd.s32 %s72, 1
    %s74 = scalar_select %p71, %s72, %s73
    %p77 = pneg %p71
    %p78 = scmp.eq.s32.totalorder %s15, 1
    %p79 = por %p77, %p78
    %p80 = scmp.ne.s32.totalorder %s72, %s75
    %p81 = scmp.eq.s32.totalorder %s15, 0
    %p82 = por %p80, %p81
    %p83 = scmp.ne.s32.totalorder %s72, %s75
    %p84 = scmp.eq.s32.totalorder %s20, 1
    %p85 = por %p83, %p84
    %p86 = scmp.ne.s32.totalorder %s75, %s76
    %p87 = scmp.eq.s32.totalorder %s20, 0
    %p88 = por %p86, %p87
    %p89 = scmp.ne.s32.totalorder %s75, %s76
    %p90 = scmp.eq.s32.totalorder %s21, 1
    %p91 = por %p89, %p90
    %p93 = scmp.ne.s32.totalorder %s76, %s92
    %p94 = scmp.eq.s32.totalorder %s21, 0
    %p95 = por %p93, %p94
    %s97 = sadd.s32 %s96, 1
    %p100 = scmp.eq.s32.totalorder %s15, 1
    %p101 = scmp.ne.s32.totalorder %s96, %s98
    %p102 = scmp.eq.s32.totalorder %s15, 0
    %p103 = por %p101, %p102
    %p104 = scmp.ne.s32.totalorder %s96, %s98
    %p105 = scmp.eq.s32.totalorder %s20, 1
    %p106 = por %p104, %p105
    %p107 = scmp.ne.s32.totalorder %s98, %s99
    %p108 = scmp.eq.s32.totalorder %s20, 0
    %p109 = por %p107, %p108
    %p110 = scmp.ne.s32.totalorder %s98, %s99
    %p111 = scmp.eq.s32.totalorder %s21, 1
    %p112 = por %p110, %p111
    %p114 = scmp.ne.s32.totalorder %s99, %s113
    %p115 = scmp.eq.s32.totalorder %s21, 0
    %p116 = por %p114, %p115
    %s118 = sadd.s32 %s117, 1
    %p121 = scmp.eq.s32.totalorder %s15, 1
    %p122 = scmp.ne.s32.totalorder %s117, %s119
    %p123 = scmp.eq.s32.totalorder %s15, 0
    %p124 = por %p122, %p123
    %p125 = scmp.ne.s32.totalorder %s117, %s119
    %p126 = scmp.eq.s32.totalorder %s20, 1
    %p127 = por %p125, %p126
    %p128 = scmp.ne.s32.totalorder %s119, %s120
    %p129 = scmp.eq.s32.totalorder %s20, 0
    %p130 = por %p128, %p129
    %p131 = scmp.ne.s32.totalorder %s119, %s120
    %p132 = scmp.eq.s32.totalorder %s21, 1
    %p133 = por %p131, %p132
    %p135 = scmp.ne.s32.totalorder %s120, %s134
    %p136 = scmp.eq.s32.totalorder %s21, 0
    %p137 = por %p135, %p136
    %s139 = sadd.s32 %s138, 1
    %p142 = scmp.eq.s32.totalorder %s15, 1
    %p143 = scmp.ne.s32.totalorder %s138, %s140
    %p144 = scmp.eq.s32.totalorder %s15, 0
    %p145 = por %p143, %p144
    %p146 = scmp.ne.s32.totalorder %s138, %s140
    %p147 = scmp.eq.s32.totalorder %s20, 1
    %p148 = por %p146, %p147
    %p149 = scmp.ne.s32.totalorder %s140, %s141
    %p150 = scmp.eq.s32.totalorder %s20, 0
    %p151 = por %p149, %p150
    %p152 = scmp.ne.s32.totalorder %s140, %s141
    %p153 = scmp.eq.s32.totalorder %s21, 1
    %p154 = por %p152, %p153
    %p156 = scmp.ne.s32.totalorder %s141, %s155
    %p157 = scmp.eq.s32.totalorder %s21, 0
    %p158 = por %p156, %p157
    %s160 = sadd.s32 %s159, 1
    %p163 = scmp.eq.s32.totalorder %s15, 1
    %p164 = scmp.ne.s32.totalorder %s159, %s161
    %p165 = scmp.eq.s32.totalorder %s15, 0
    %p166 = por %p164, %p165
    %p167 = scmp.ne.s32.totalorder %s159, %s161
    %p168 = scmp.eq.s32.totalorder %s20, 1
    %p169 = por %p167, %p168
    %p170 = scmp.ne.s32.totalorder %s161, %s162
    %p171 = scmp.eq.s32.totalorder %s20, 0
    %p172 = por %p170, %p171
    %p173 = scmp.ne.s32.totalorder %s161, %s162
    %p174 = scmp.eq.s32.totalorder %s21, 1
    %p175 = por %p173, %p174
    %p177 = scmp.ne.s32.totalorder %s162, %s176
    %p178 = scmp.eq.s32.totalorder %s21, 0
    %p179 = por %p177, %p178
    %s181 = sadd.s32 %s180, 1
    %p184 = scmp.eq.s32.totalorder %s15, 1
    %p185 = scmp.ne.s32.totalorder %s180, %s182
    %p186 = scmp.eq.s32.totalorder %s15, 0
    %p187 = por %p185, %p186
    %p188 = scmp.ne.s32.totalorder %s180, %s182
    %p189 = scmp.eq.s32.totalorder %s20, 1
    %p190 = por %p188, %p189
    %p191 = scmp.ne.s32.totalorder %s182, %s183
    %p192 = scmp.eq.s32.totalorder %s20, 0
    %p193 = por %p191, %p192
    %p194 = scmp.ne.s32.totalorder %s182, %s183
    %p195 = scmp.eq.s32.totalorder %s21, 1
    %p196 = por %p194, %p195
    %p198 = scmp.ne.s32.totalorder %s183, %s197
    %p199 = scmp.eq.s32.totalorder %s21, 0
    %p200 = por %p198, %p199
    %s202 = sadd.s32 %s201, 1
    %p205 = scmp.eq.s32.totalorder %s15, 1
    %p206 = scmp.ne.s32.totalorder %s201, %s203
    %p207 = scmp.eq.s32.totalorder %s15, 0
    %p208 = por %p206, %p207
    %p209 = scmp.ne.s32.totalorder %s201, %s203
    %p210 = scmp.eq.s32.totalorder %s20, 1
    %p211 = por %p209, %p210
    %p212 = scmp.ne.s32.totalorder %s203, %s204
    %p213 = scmp.eq.s32.totalorder %s20, 0
    %p214 = por %p212, %p213
    %p215 = scmp.ne.s32.totalorder %s203, %s204
    %p216 = scmp.eq.s32.totalorder %s21, 1
    %p217 = por %p215, %p216
    %p219 = scmp.ne.s32.totalorder %s204, %s218
    %p220 = scmp.eq.s32.totalorder %s21, 0
    %p221 = por %p219, %p220
    %s222 = ssub.s32 %s15, %s22
    %p223 = scmp.eq.s32.totalorder %s222, 0
    %s225 = sadd.s32 %s224, 1
    %s226 = scalar_select %p223, %s224, %s225
    %p229 = pneg %p223
    %p230 = scmp.eq.s32.totalorder %s15, 1
    %p231 = por %p229, %p230
    %p232 = scmp.ne.s32.totalorder %s224, %s227
    %p233 = scmp.eq.s32.totalorder %s15, 0
    %p234 = por %p232, %p233
    %p235 = scmp.ne.s32.totalorder %s224, %s227
    %p236 = scmp.eq.s32.totalorder %s20, 1
    %p237 = por %p235, %p236
    %p238 = scmp.ne.s32.totalorder %s227, %s228
    %p239 = scmp.eq.s32.totalorder %s20, 0
    %p240 = por %p238, %p239
    %p241 = scmp.ne.s32.totalorder %s227, %s228
    %p242 = scmp.eq.s32.totalorder %s21, 1
    %p243 = por %p241, %p242
    %p245 = scmp.ne.s32.totalorder %s228, %s244
    %p246 = scmp.eq.s32.totalorder %s21, 0
    %p247 = por %p245, %p246
    %p248 = scmp.le.s32.totalorder 1, %s15
    %p249 = scmp.lt.s32.totalorder %s15, 3
    %p250 = pnand %p248, %p249
    %p251 = pneg %p250
    // Predicated region
    $region9: #{basic_block_forward.5} parent=5 // pred_check
      _
    $region10: #{basic_block_forward.5} parent=5 // pred_check_branch
      %253 = sbr.rel (%p250) target = $region12
    $region11: #{basic_block_forward.5} parent=5 // pred_region
      %s254 = ssub.s32 %s15, 1
      // Predicated region
      $region13: #{basic_block_forward.5} parent=11 // pred_check
        %p255 = pneg %p62
      $region14: #{basic_block_forward.5} parent=11 // pred_check_branch
        %257 = sbr.rel (%p255) target = $region16
      $region15: #{basic_block_forward.5} parent=11 // pred_region
        _
      $region16: #{basic_block_forward.5} parent=11 // pred_fallthru
        _
      // Predicated region
      $region17: #{basic_block_forward.5} parent=11 // pred_check
        %p258 = pneg %p109
      $region18: #{basic_block_forward.5} parent=11 // pred_check_branch
        %260 = sbr.rel (%p258) target = $region20
      $region19: #{basic_block_forward.5} parent=11 // pred_region
        _
      $region20: #{basic_block_forward.5} parent=11 // pred_fallthru
        _
      // Predicated region
      $region21: #{basic_block_forward.5} parent=11 // pred_check
        %p261 = pneg %p130
      $region22: #{basic_block_forward.5} parent=11 // pred_check_branch
        %263 = sbr.rel (%p261) target = $region24
      $region23: #{basic_block_forward.5} parent=11 // pred_region
        _
      $region24: #{basic_block_forward.5} parent=11 // pred_fallthru
        _
      // Predicated region
      $region25: #{basic_block_forward.5} parent=11 // pred_check
        %p264 = pneg %p151
      $region26: #{basic_block_forward.5} parent=11 // pred_check_branch
        %266 = sbr.rel (%p264) target = $region28
      $region27: #{basic_block_forward.5} parent=11 // pred_region
        _
      $region28: #{basic_block_forward.5} parent=11 // pred_fallthru
        _
      // Predicated region
      $region29: #{basic_block_forward.5} parent=11 // pred_check
        %p267 = pneg %p172
      $region30: #{basic_block_forward.5} parent=11 // pred_check_branch
        %269 = sbr.rel (%p267) target = $region32
      $region31: #{basic_block_forward.5} parent=11 // pred_region
        _
      $region32: #{basic_block_forward.5} parent=11 // pred_fallthru
        _
      // Predicated region
      $region33: #{basic_block_forward.5} parent=11 // pred_check
        %p270 = pneg %p193
      $region34: #{basic_block_forward.5} parent=11 // pred_check_branch
        %272 = sbr.rel (%p270) target = $region36
      $region35: #{basic_block_forward.5} parent=11 // pred_region
        _
      $region36: #{basic_block_forward.5} parent=11 // pred_fallthru
        _
      // Predicated region
      $region37: #{basic_block_forward.5} parent=11 // pred_check
        %p273 = pneg %p214
      $region38: #{basic_block_forward.5} parent=11 // pred_check_branch
        %275 = sbr.rel (%p273) target = $region40
      $region39: #{basic_block_forward.5} parent=11 // pred_region
        _
      $region40: #{basic_block_forward.5} parent=11 // pred_fallthru
        _
    $region12: #{basic_block_forward.5} parent=5 // pred_fallthru
      _
    %p276 = scmp.lt.s32.totalorder %s15, 2
    // Predicated region
    $region41: #{basic_block_forward.5} parent=5 // pred_check
      %p277 = pneg %p276
    $region42: #{basic_block_forward.5} parent=5 // pred_check_branch
      %279 = sbr.rel (%p277) target = $region44
    $region43: #{basic_block_forward.5} parent=5 // pred_region
      // Predicated region
      $region45: #{basic_block_forward.5} parent=43 // pred_check
        %p280 = pneg %p35
      $region46: #{basic_block_forward.5} parent=43 // pred_check_branch
        %282 = sbr.rel (%p280) target = $region48
      $region47: #{basic_block_forward.5} parent=43 // pred_region
        %p283 = scmp.lt.s32.totalorder %s15, 1
        %s284 = scalar_select %p283, %s15, 1
        %s285 = smul.addr %s284, 8
        %s286 = smul.addr %s285, 4
        %s287 = scalar_lea.vmem %s0, %s286
      $region48: #{basic_block_forward.5} parent=43 // pred_fallthru
        _
      // Predicated region
      $region49: #{basic_block_forward.5} parent=43 // pred_check
        %p288 = pneg %p82
      $region50: #{basic_block_forward.5} parent=43 // pred_check_branch
        %290 = sbr.rel (%p288) target = $region52
      $region51: #{basic_block_forward.5} parent=43 // pred_region
        %p291 = scmp.lt.s32.totalorder %s15, 1
        %s292 = scalar_select %p291, %s15, 1
        %s293 = smul.addr %s292, 8
        %s294 = smul.addr %s293, 4
        %s295 = scalar_lea.vmem %s2, %s294
      $region52: #{basic_block_forward.5} parent=43 // pred_fallthru
        _
    $region44: #{basic_block_forward.5} parent=5 // pred_fallthru
      _
    %p296 = scmp.le.s32.totalorder 1, %s15
    %p297 = scmp.lt.s32.totalorder %s15, 3
    %p298 = pnand %p296, %p297
    %p299 = pneg %p298
    // Predicated region
    $region53: #{basic_block_forward.5} parent=5 // pred_check
      _
    $region54: #{basic_block_forward.5} parent=5 // pred_check_branch
      %301 = sbr.rel (%p298) target = $region56
    $region55: #{basic_block_forward.5} parent=5 // pred_region
      %s302 = ssub.s32 %s15, 1
      %p303 = scmp.lt.s32.totalorder %s20, 1
      %s304 = scalar_select %p303, %s20, 1
      %s305 = smul.addr %s304, 8
      %s306 = smul.addr %s305, 4
      %s307 = scalar_lea.vmem %s0, %s306
      %p308 = pneg %p41
      %p309 = pneg %p38
      %p310 = pneg %p62
      %p311 = pneg %p59
      %p312 = scmp.lt.s32.totalorder %s20, 1
      %s313 = scalar_select %p312, %s20, 1
      %s314 = smul.addr %s313, 8
      %s315 = smul.addr %s314, 4
      %s316 = scalar_lea.vmem %s2, %s315
      %p317 = pneg %p88
      %p318 = pneg %p85
      %p319 = pneg %p109
      %p320 = pneg %p106
      %p321 = pneg %p130
      %p322 = pneg %p127
      %p323 = pneg %p151
      %p324 = pneg %p148
      %p325 = pneg %p172
      %p326 = pneg %p169
      %p327 = pneg %p193
      %p328 = pneg %p190
      %p329 = pneg %p214
      %p330 = pneg %p211
      %p331 = pneg %p240
      %p332 = pneg %p237
      %p333 = scmp.lt.s32.totalorder %s20, 1
      %s334 = scalar_select %p333, %s20, 1
      %s335 = smul.addr %s334, 8
      %s336 = smul.addr %s335, 4
      %s337 = scalar_lea.vmem %s9, %s336
      %p338 = scmp.lt.s32.totalorder %s20, 1
      %s339 = scalar_select %p338, %s20, 1
      %s340 = smul.addr %s339, 8
      %s341 = smul.addr %s340, 4
      %s342 = scalar_lea.vmem %s0, %s341
      %p343 = scmp.lt.s32.totalorder %s20, 1
      %s344 = scalar_select %p343, %s20, 1
      %s345 = smul.addr %s344, 8
      %s346 = smul.addr %s345, 4
      %s347 = scalar_lea.vmem %s2, %s346
      %p348 = scmp.lt.s32.totalorder %s20, 1
      %s349 = scalar_select %p348, %s20, 1
      %s350 = smul.addr %s349, 8
      %s351 = smul.addr %s350, 4
      %s352 = scalar_lea.vmem %s9, %s351
      %v354 = vld [vmem:[%s342] sm:$0xf]
      %v355 = vld [vmem:[%s342 + $0x4] sm:$0xf]
      %v356 = vld [vmem:[%s342 + $0x8] sm:$0xf]
      %v357 = vld [vmem:[%s342 + $0xc] sm:$0xf]
      %v358 = vld [vmem:[%s342 + $0x10] sm:$0xf]
      %v359 = vld [vmem:[%s342 + $0x14] sm:$0xf]
      %v360 = vld [vmem:[%s342 + $0x18] sm:$0xf]
      %v361 = vld [vmem:[%s342 + $0x1c] sm:$0xf]
      %v362 = vunpack.c.l.bf16 %v354
      %v363 = vunpack.c.l.bf16 %v355
      %v364 = vunpack.c.l.bf16 %v356
      %v365 = vunpack.c.l.bf16 %v357
      %v366 = vunpack.c.l.bf16 %v358
      %v367 = vunpack.c.l.bf16 %v359
      %v368 = vunpack.c.l.bf16 %v360
      %v369 = vunpack.c.l.bf16 %v361
      %v370 = vld [vmem:[%s3] sm:$0x1]
      %v372 = vlaneseq
      %v373 = vshrl.u32 %v372, 7
      %v374 = vsub.s32 0, %v373
      %v375 = vrot.slane %v370, %v374
      %v377 = vmul.f32 %v362, %v375
      %v378 = vmul.f32 %v363, %v375
      %v379 = vmul.f32 %v364, %v375
      %v380 = vmul.f32 %v365, %v375
      %v381 = vmul.f32 %v366, %v375
      %v382 = vmul.f32 %v367, %v375
      %v383 = vmul.f32 %v368, %v375
      %v384 = vmul.f32 %v369, %v375
      %v385 = vld [vmem:[%s4] sm:$0x1]
      %v387 = vlaneseq
      %v388 = vshrl.u32 %v387, 7
      %v389 = vsub.s32 0, %v388
      %v390 = vrot.slane %v385, %v389
      %v392 = vadd.f32 %v377, %v390
      %v393 = vadd.f32 %v378, %v390
      %v394 = vadd.f32 %v379, %v390
      %v395 = vadd.f32 %v380, %v390
      %v396 = vadd.f32 %v381, %v390
      %v397 = vadd.f32 %v382, %v390
      %v398 = vadd.f32 %v383, %v390
      %v399 = vadd.f32 %v384, %v390
      %v400 = vmax.f32 %v392, 0.0
      %v401 = vmax.f32 %v393, 0.0
      %v402 = vmax.f32 %v394, 0.0
      %v403 = vmax.f32 %v395, 0.0
      %v404 = vmax.f32 %v396, 0.0
      %v405 = vmax.f32 %v397, 0.0
      %v406 = vmax.f32 %v398, 0.0
      %v407 = vmax.f32 %v399, 0.0
      %v408 = vld [vmem:[%s5] sm:$0x1]
      %v410 = vlaneseq
      %v411 = vshrl.u32 %v410, 7
      %v412 = vsub.s32 0, %v411
      %v413 = vrot.slane %v408, %v412
      %v415 = vmul.f32 %v400, %v413
      %v416 = vmul.f32 %v401, %v413
      %v417 = vmul.f32 %v402, %v413
      %v418 = vmul.f32 %v403, %v413
      %v419 = vmul.f32 %v404, %v413
      %v420 = vmul.f32 %v405, %v413
      %v421 = vmul.f32 %v406, %v413
      %v422 = vmul.f32 %v407, %v413
      %v423 = vld [vmem:[%s6] sm:$0x1]
      %v425 = vlaneseq
      %v426 = vshrl.u32 %v425, 7
      %v427 = vsub.s32 0, %v426
      %v428 = vrot.slane %v423, %v427
      %v430 = vadd.f32 %v415, %v428
      %v431 = vadd.f32 %v416, %v428
      %v432 = vadd.f32 %v417, %v428
      %v433 = vadd.f32 %v418, %v428
      %v434 = vadd.f32 %v419, %v428
      %v435 = vadd.f32 %v420, %v428
      %v436 = vadd.f32 %v421, %v428
      %v437 = vadd.f32 %v422, %v428
      %438 = vst [vmem:[#allocation2] sm:$0xf] 0
      %439 = vst [vmem:[#allocation2 + $0x4] sm:$0x1] 0
      %440 = vst [vmem:[#allocation2 + $0x8] sm:$0xf] 0
      %441 = vst [vmem:[#allocation2 + $0xc] sm:$0x1] 0
      %442 = vst [vmem:[#allocation2 + $0x10] sm:$0xf] 0
      %443 = vst [vmem:[#allocation2 + $0x14] sm:$0x1] 0
      %444 = vst [vmem:[#allocation2 + $0x18] sm:$0xf] 0
      %445 = vst [vmem:[#allocation2 + $0x1c] sm:$0x1] 0
      %446 = vst [vmem:[#allocation2 + $0x20] sm:$0xf] 0
      %447 = vst [vmem:[#allocation2 + $0x24] sm:$0x1] 0
      %448 = vst [vmem:[#allocation2 + $0x28] sm:$0xf] 0
      %449 = vst [vmem:[#allocation2 + $0x2c] sm:$0x1] 0
      %450 = vst [vmem:[#allocation2 + $0x30] sm:$0xf] 0
      %451 = vst [vmem:[#allocation2 + $0x34] sm:$0x1] 0
      %452 = vst [vmem:[#allocation2 + $0x38] sm:$0xf] 0
      %453 = vst [vmem:[#allocation2 + $0x3c] sm:$0x1] 0
      %454 = vst [vmem:[#allocation2 + $0x40] sm:$0xf] 0
      %455 = vst [vmem:[#allocation2 + $0x44] sm:$0x1] 0
      %456 = vst [vmem:[#allocation2 + $0x48] sm:$0xf] 0
      %457 = vst [vmem:[#allocation2 + $0x4c] sm:$0x1] 0
      %v458 = vpack.c.bf16 %v430, %v430
      %v459 = vpack.c.bf16 %v431, %v431
      %v460 = vpack.c.bf16 %v432, %v432
      %v461 = vpack.c.bf16 %v433, %v433
      %v462 = vpack.c.bf16 %v434, %v434
      %v463 = vpack.c.bf16 %v435, %v435
      %v464 = vpack.c.bf16 %v436, %v436
      %v465 = vpack.c.bf16 %v437, %v437
      %v474 = vunpack.c.l.b16 %v458
      %v475 = vunpack.c.l.b16 %v459
      %v476 = vunpack.c.l.b16 %v460
      %v477 = vunpack.c.l.b16 %v461
      %v478 = vunpack.c.l.b16 %v462
      %v479 = vunpack.c.l.b16 %v463
      %v480 = vunpack.c.l.b16 %v464
      %v481 = vunpack.c.l.b16 %v465
      %v482 = vpack.c.b16 %v474, %v474
      %v483 = vpack.c.b16 %v475, %v475
      %v484 = vpack.c.b16 %v476, %v476
      %v485 = vpack.c.b16 %v477, %v477
      %v486 = vpack.c.b16 %v478, %v478
      %v487 = vpack.c.b16 %v479, %v479
      %v488 = vpack.c.b16 %v480, %v480
      %v489 = vpack.c.b16 %v481, %v481
      %v491 = vshrl.u32 %v482, 16
      %v493 = vrot.slane %v491, 7
      %v494 = vshll.u32 %v482, 16
      %v496 = vor.u32 %v493, %v494
      %v497 = vrot.slane %v493, 4
      %v499 = vshrl.u32 %v483, 16
      %v501 = vrot.slane %v499, 7
      %v502 = vshll.u32 %v483, 16
      %v504 = vor.u32 %v501, %v502
      %v505 = vrot.slane %v501, 4
      %v507 = vshrl.u32 %v484, 16
      %v509 = vrot.slane %v507, 7
      %v510 = vshll.u32 %v484, 16
      %v512 = vor.u32 %v509, %v510
      %v513 = vrot.slane %v509, 4
      %v515 = vshrl.u32 %v485, 16
      %v517 = vrot.slane %v515, 7
      %v518 = vshll.u32 %v485, 16
      %v520 = vor.u32 %v517, %v518
      %v521 = vrot.slane %v517, 4
      %v523 = vshrl.u32 %v486, 16
      %v525 = vrot.slane %v523, 7
      %v526 = vshll.u32 %v486, 16
      %v528 = vor.u32 %v525, %v526
      %v529 = vrot.slane %v525, 4
      %v531 = vshrl.u32 %v487, 16
      %v533 = vrot.slane %v531, 7
      %v534 = vshll.u32 %v487, 16
      %v536 = vor.u32 %v533, %v534
      %v537 = vrot.slane %v533, 4
      %v539 = vshrl.u32 %v488, 16
      %v541 = vrot.slane %v539, 7
      %v542 = vshll.u32 %v488, 16
      %v544 = vor.u32 %v541, %v542
      %v545 = vrot.slane %v541, 4
      %v547 = vshrl.u32 %v489, 16
      %v549 = vrot.slane %v547, 7
      %v550 = vshll.u32 %v489, 16
      %v552 = vor.u32 %v549, %v550
      %v553 = vrot.slane %v549, 4
      %s570 = scalar_lea.vmem [#allocation2], 8
      %vm571 = vcmask 1043456
      %vm572 = vsmask.f32 7938
      %vm573 = vmand %vm571, %vm572
      %v574 = vld [vmem:[%s570] sm:$0xf]
      %v575 = vsel %vm573, %v496, %v574
      %576 = vst [vmem:[%s570] sm:$0xf] %v575
      %vm577 = vcmask 1040384
      %vm578 = vsmask.f32 256
      %vm579 = vmand %vm577, %vm578
      %v580 = vld [vmem:[%s570 + $0x4] sm:$0x1]
      %v581 = vsel %vm579, %v497, %v580
      %582 = vst [vmem:[%s570 + $0x4] sm:$0x1] %v581
      %v583 = vld [vmem:[%s570 + $0x8] sm:$0xf]
      %v584 = vsel %vm573, %v504, %v583
      %585 = vst [vmem:[%s570 + $0x8] sm:$0xf] %v584
      %v586 = vld [vmem:[%s570 + $0xc] sm:$0x1]
      %v587 = vsel %vm579, %v505, %v586
      %588 = vst [vmem:[%s570 + $0xc] sm:$0x1] %v587
      %v589 = vld [vmem:[%s570 + $0x10] sm:$0xf]
      %v590 = vsel %vm573, %v512, %v589
      %591 = vst [vmem:[%s570 + $0x10] sm:$0xf] %v590
      %v592 = vld [vmem:[%s570 + $0x14] sm:$0x1]
      %v593 = vsel %vm579, %v513, %v592
      %594 = vst [vmem:[%s570 + $0x14] sm:$0x1] %v593
      %v595 = vld [vmem:[%s570 + $0x18] sm:$0xf]
      %v596 = vsel %vm573, %v520, %v595
      %597 = vst [vmem:[%s570 + $0x18] sm:$0xf] %v596
      %v598 = vld [vmem:[%s570 + $0x1c] sm:$0x1]
      %v599 = vsel %vm579, %v521, %v598
      %600 = vst [vmem:[%s570 + $0x1c] sm:$0x1] %v599
      %v601 = vld [vmem:[%s570 + $0x20] sm:$0xf]
      %v602 = vsel %vm573, %v528, %v601
      %603 = vst [vmem:[%s570 + $0x20] sm:$0xf] %v602
      %v604 = vld [vmem:[%s570 + $0x24] sm:$0x1]
      %v605 = vsel %vm579, %v529, %v604
      %606 = vst [vmem:[%s570 + $0x24] sm:$0x1] %v605
      %v607 = vld [vmem:[%s570 + $0x28] sm:$0xf]
      %v608 = vsel %vm573, %v536, %v607
      %609 = vst [vmem:[%s570 + $0x28] sm:$0xf] %v608
      %v610 = vld [vmem:[%s570 + $0x2c] sm:$0x1]
      %v611 = vsel %vm579, %v537, %v610
      %612 = vst [vmem:[%s570 + $0x2c] sm:$0x1] %v611
      %v613 = vld [vmem:[%s570 + $0x30] sm:$0xf]
      %v614 = vsel %vm573, %v544, %v613
      %615 = vst [vmem:[%s570 + $0x30] sm:$0xf] %v614
      %v616 = vld [vmem:[%s570 + $0x34] sm:$0x1]
      %v617 = vsel %vm579, %v545, %v616
      %618 = vst [vmem:[%s570 + $0x34] sm:$0x1] %v617
      %v619 = vld [vmem:[%s570 + $0x38] sm:$0xf]
      %v620 = vsel %vm573, %v552, %v619
      %621 = vst [vmem:[%s570 + $0x38] sm:$0xf] %v620
      %v622 = vld [vmem:[%s570 + $0x3c] sm:$0x1]
      %v623 = vsel %vm579, %v553, %v622
      %624 = vst [vmem:[%s570 + $0x3c] sm:$0x1] %v623
      %v625 = vld [vmem:[#allocation2] sm:$0xf]
      %v626 = vld [vmem:[#allocation2 + $0x8] sm:$0xf]
      %v627 = vld [vmem:[#allocation2 + $0x10] sm:$0xf]
      %v628 = vld [vmem:[#allocation2 + $0x18] sm:$0xf]
      %v629 = vld [vmem:[#allocation2 + $0x20] sm:$0xf]
      %v630 = vld [vmem:[#allocation2 + $0x28] sm:$0xf]
      %v631 = vld [vmem:[#allocation2 + $0x30] sm:$0xf]
      %v632 = vld [vmem:[#allocation2 + $0x38] sm:$0xf]
      %v633 = vld [vmem:[#allocation2 + $0x4] sm:$0x1]
      %v634 = vld [vmem:[#allocation2 + $0xc] sm:$0x1]
      %v635 = vld [vmem:[#allocation2 + $0x14] sm:$0x1]
      %v636 = vld [vmem:[#allocation2 + $0x1c] sm:$0x1]
      %v637 = vld [vmem:[#allocation2 + $0x24] sm:$0x1]
      %v638 = vld [vmem:[#allocation2 + $0x2c] sm:$0x1]
      %v639 = vld [vmem:[#allocation2 + $0x34] sm:$0x1]
      %v640 = vld [vmem:[#allocation2 + $0x3c] sm:$0x1]
      %vm641 = vsmask.f32 3328
      %vm642 = vsmask.f32 7440
      %vm643 = vmor %vm641, %vm642
      %v645 = vshrl.u32 %v625, 16
      %v647 = vrot.slane %v645, 4
      %v648 = vshll.u32 %v625, 16
      %v650 = vrot.slane %v648, 5
      %v651 = vor.u32 %v647, %v650
      %v652 = vrot.slane %v651, 4
      %v654 = vshll.u32 %v633, 16
      %v656 = vrot.slane %v654, 5
      %v657 = vsel %vm643, %v652, %v656
      %v659 = vshrl.u32 %v626, 16
      %v661 = vrot.slane %v659, 4
      %v662 = vshll.u32 %v626, 16
      %v664 = vrot.slane %v662, 5
      %v665 = vor.u32 %v661, %v664
      %v666 = vrot.slane %v665, 4
      %v668 = vshll.u32 %v634, 16
      %v670 = vrot.slane %v668, 5
      %v671 = vsel %vm643, %v666, %v670
      %v673 = vshrl.u32 %v627, 16
      %v675 = vrot.slane %v673, 4
      %v676 = vshll.u32 %v627, 16
      %v678 = vrot.slane %v676, 5
      %v679 = vor.u32 %v675, %v678
      %v680 = vrot.slane %v679, 4
      %v682 = vshll.u32 %v635, 16
      %v684 = vrot.slane %v682, 5
      %v685 = vsel %vm643, %v680, %v684
      %v687 = vshrl.u32 %v628, 16
      %v689 = vrot.slane %v687, 4
      %v690 = vshll.u32 %v628, 16
      %v692 = vrot.slane %v690, 5
      %v693 = vor.u32 %v689, %v692
      %v694 = vrot.slane %v693, 4
      %v696 = vshll.u32 %v636, 16
      %v698 = vrot.slane %v696, 5
      %v699 = vsel %vm643, %v694, %v698
      %v701 = vshrl.u32 %v629, 16
      %v703 = vrot.slane %v701, 4
      %v704 = vshll.u32 %v629, 16
      %v706 = vrot.slane %v704, 5
      %v707 = vor.u32 %v703, %v706
      %v708 = vrot.slane %v707, 4
      %v710 = vshll.u32 %v637, 16
      %v712 = vrot.slane %v710, 5
      %v713 = vsel %vm643, %v708, %v712
      %v715 = vshrl.u32 %v630, 16
      %v717 = vrot.slane %v715, 4
      %v718 = vshll.u32 %v630, 16
      %v720 = vrot.slane %v718, 5
      %v721 = vor.u32 %v717, %v720
      %v722 = vrot.slane %v721, 4
      %v724 = vshll.u32 %v638, 16
      %v726 = vrot.slane %v724, 5
      %v727 = vsel %vm643, %v722, %v726
      %v729 = vshrl.u32 %v631, 16
      %v731 = vrot.slane %v729, 4
      %v732 = vshll.u32 %v631, 16
      %v734 = vrot.slane %v732, 5
      %v735 = vor.u32 %v731, %v734
      %v736 = vrot.slane %v735, 4
      %v738 = vshll.u32 %v639, 16
      %v740 = vrot.slane %v738, 5
      %v741 = vsel %vm643, %v736, %v740
      %v743 = vshrl.u32 %v632, 16
      %v745 = vrot.slane %v743, 4
      %v746 = vshll.u32 %v632, 16
      %v748 = vrot.slane %v746, 5
      %v749 = vor.u32 %v745, %v748
      %v750 = vrot.slane %v749, 4
      %v752 = vshll.u32 %v640, 16
      %v754 = vrot.slane %v752, 5
      %v755 = vsel %vm643, %v750, %v754
      %v756 = vld [vmem:[#allocation2] sm:$0xe]
      %v757 = vld [vmem:[#allocation2 + $0x8] sm:$0xe]
      %v758 = vld [vmem:[#allocation2 + $0x10] sm:$0xe]
      %v759 = vld [vmem:[#allocation2 + $0x18] sm:$0xe]
      %v760 = vld [vmem:[#allocation2 + $0x20] sm:$0xe]
      %v761 = vld [vmem:[#allocation2 + $0x28] sm:$0xe]
      %v762 = vld [vmem:[#allocation2 + $0x30] sm:$0xe]
      %v763 = vld [vmem:[#allocation2 + $0x38] sm:$0xe]
      %vm780 = vcmask 1042432
      %vm781 = vcmask 1046532
      %vm782 = vmor %vm780, %vm781
      %v783 = vrot.slane %v756, 5
      %v784 = vrot.slane %v783, 4
      %v785 = vrot.slane %v633, 5
      %v786 = vsel %vm782, %v784, %v785
      %v787 = vrot.slane %v757, 5
      %v788 = vrot.slane %v787, 4
      %v789 = vrot.slane %v634, 5
      %v790 = vsel %vm782, %v788, %v789
      %v791 = vrot.slane %v758, 5
      %v792 = vrot.slane %v791, 4
      %v793 = vrot.slane %v635, 5
      %v794 = vsel %vm782, %v792, %v793
      %v795 = vrot.slane %v759, 5
      %v796 = vrot.slane %v795, 4
      %v797 = vrot.slane %v636, 5
      %v798 = vsel %vm782, %v796, %v797
      %v799 = vrot.slane %v760, 5
      %v800 = vrot.slane %v799, 4
      %v801 = vrot.slane %v637, 5
      %v802 = vsel %vm782, %v800, %v801
      %v803 = vrot.slane %v761, 5
      %v804 = vrot.slane %v803, 4
      %v805 = vrot.slane %v638, 5
      %v806 = vsel %vm782, %v804, %v805
      %v807 = vrot.slane %v762, 5
      %v808 = vrot.slane %v807, 4
      %v809 = vrot.slane %v639, 5
      %v810 = vsel %vm782, %v808, %v809
      %v811 = vrot.slane %v763, 5
      %v812 = vrot.slane %v811, 4
      %v813 = vrot.slane %v640, 5
      %v814 = vsel %vm782, %v812, %v813
      %v823 = vunpack.c.l.b16 %v625
      %v824 = vunpack.c.l.b16 %v626
      %v825 = vunpack.c.l.b16 %v627
      %v826 = vunpack.c.l.b16 %v628
      %v827 = vunpack.c.l.b16 %v629
      %v828 = vunpack.c.l.b16 %v630
      %v829 = vunpack.c.l.b16 %v631
      %v830 = vunpack.c.l.b16 %v632
      %v831 = vpack.c.b16 %v824, %v823
      %v832 = vpack.c.b16 %v826, %v825
      %v833 = vpack.c.b16 %v828, %v827
      %v834 = vpack.c.b16 %v830, %v829
      %v839 = vunpack.c.l.b16 %v657
      %v840 = vunpack.c.l.b16 %v671
      %v841 = vunpack.c.l.b16 %v685
      %v842 = vunpack.c.l.b16 %v699
      %v843 = vunpack.c.l.b16 %v713
      %v844 = vunpack.c.l.b16 %v727
      %v845 = vunpack.c.l.b16 %v741
      %v846 = vunpack.c.l.b16 %v755
      %v847 = vpack.c.b16 %v840, %v839
      %v848 = vpack.c.b16 %v842, %v841
      %v849 = vpack.c.b16 %v844, %v843
      %v850 = vpack.c.b16 %v846, %v845
      %v855 = vunpack.c.l.b16 %v786
      %v856 = vunpack.c.l.b16 %v790
      %v857 = vunpack.c.l.b16 %v794
      %v858 = vunpack.c.l.b16 %v798
      %v859 = vunpack.c.l.b16 %v802
      %v860 = vunpack.c.l.b16 %v806
      %v861 = vunpack.c.l.b16 %v810
      %v862 = vunpack.c.l.b16 %v814
      %v863 = vpack.c.b16 %v856, %v855
      %v864 = vpack.c.b16 %v858, %v857
      %v865 = vpack.c.b16 %v860, %v859
      %v866 = vpack.c.b16 %v862, %v861
      %v871 = vld [vmem:[%s1] sm:$0xf]
      %v872 = vld [vmem:[%s1 + $0x4] sm:$0xf]
      %v873 = vld [vmem:[%s1 + $0x8] sm:$0xf]
      %v874 = vld [vmem:[%s1 + $0xc] sm:$0xf]
      %v875 = vld [vmem:[%s1 + $0x10] sm:$0xf]
      %v876 = vld [vmem:[%s1 + $0x14] sm:$0xf]
      %v877 = vld [vmem:[%s1 + $0x18] sm:$0xf]
      %v878 = vld [vmem:[%s1 + $0x1c] sm:$0xf]
      %v879 = vld [vmem:[%s1 + $0x20] sm:$0xf]
      %v880 = vld [vmem:[%s1 + $0x24] sm:$0xf]
      %v881 = vld [vmem:[%s1 + $0x28] sm:$0xf]
      %v882 = vld [vmem:[%s1 + $0x2c] sm:$0xf]
      %v883 = vld [vmem:[%s1 + $0x30] sm:$0xf]
      %v884 = vld [vmem:[%s1 + $0x34] sm:$0xf]
      %v885 = vld [vmem:[%s1 + $0x38] sm:$0xf]
      %v886 = vld [vmem:[%s1 + $0x3c] sm:$0xf]
      %v887 = vld [vmem:[%s1 + $0x40] sm:$0xf]
      %v888 = vld [vmem:[%s1 + $0x44] sm:$0xf]
      %v889 = vld [vmem:[%s1 + $0x48] sm:$0xf]
      %v890 = vld [vmem:[%s1 + $0x4c] sm:$0xf]
      %v891 = vld [vmem:[%s1 + $0x50] sm:$0xf]
      %v892 = vld [vmem:[%s1 + $0x54] sm:$0xf]
      %v893 = vld [vmem:[%s1 + $0x58] sm:$0xf]
      %v894 = vld [vmem:[%s1 + $0x5c] sm:$0xf]
      %v895 = vld [vmem:[%s1 + $0x60] sm:$0xf]
      %v896 = vld [vmem:[%s1 + $0x64] sm:$0xf]
      %v897 = vld [vmem:[%s1 + $0x68] sm:$0xf]
      %v898 = vld [vmem:[%s1 + $0x6c] sm:$0xf]
      %v899 = vld [vmem:[%s1 + $0x70] sm:$0xf]
      %v900 = vld [vmem:[%s1 + $0x74] sm:$0xf]
      %v901 = vld [vmem:[%s1 + $0x78] sm:$0xf]
      %v902 = vld [vmem:[%s1 + $0x7c] sm:$0xf]
      %v903 = vld [vmem:[%s1 + $0x80] sm:$0xf]
      %v904 = vld [vmem:[%s1 + $0x84] sm:$0xf]
      %v905 = vld [vmem:[%s1 + $0x88] sm:$0xf]
      %v906 = vld [vmem:[%s1 + $0x8c] sm:$0xf]
      %v907 = vld [vmem:[%s1 + $0x90] sm:$0xf]
      %v908 = vld [vmem:[%s1 + $0x94] sm:$0xf]
      %v909 = vld [vmem:[%s1 + $0x98] sm:$0xf]
      %v910 = vld [vmem:[%s1 + $0x9c] sm:$0xf]
      %v911 = vld [vmem:[%s1 + $0xa0] sm:$0xf]
      %v912 = vld [vmem:[%s1 + $0xa4] sm:$0xf]
      %v913 = vld [vmem:[%s1 + $0xa8] sm:$0xf]
      %v914 = vld [vmem:[%s1 + $0xac] sm:$0xf]
      %v915 = vld [vmem:[%s1 + $0xb0] sm:$0xf]
      %v916 = vld [vmem:[%s1 + $0xb4] sm:$0xf]
      %v917 = vld [vmem:[%s1 + $0xb8] sm:$0xf]
      %v918 = vld [vmem:[%s1 + $0xbc] sm:$0xf]
      %v919 = vld [vmem:[%s570] sm:$0xf]
      %v920 = vld [vmem:[%s570 + $0x8] sm:$0xf]
      %v921 = vld [vmem:[%s570 + $0x10] sm:$0xf]
      %v922 = vld [vmem:[%s570 + $0x18] sm:$0xf]
      %v923 = vld [vmem:[%s570 + $0x20] sm:$0xf]
      %v924 = vld [vmem:[%s570 + $0x28] sm:$0xf]
      %v925 = vld [vmem:[%s570 + $0x30] sm:$0xf]
      %v926 = vld [vmem:[%s570 + $0x38] sm:$0xf]
      %v927 = vld [vmem:[%s570 + $0x4] sm:$0x1]
      %v928 = vld [vmem:[%s570 + $0xc] sm:$0x1]
      %v929 = vld [vmem:[%s570 + $0x14] sm:$0x1]
      %v930 = vld [vmem:[%s570 + $0x1c] sm:$0x1]
      %v931 = vld [vmem:[%s570 + $0x24] sm:$0x1]
      %v932 = vld [vmem:[%s570 + $0x2c] sm:$0x1]
      %v933 = vld [vmem:[%s570 + $0x34] sm:$0x1]
      %v934 = vld [vmem:[%s570 + $0x3c] sm:$0x1]
      %v936 = vshrl.u32 %v919, 16
      %v938 = vrot.slane %v936, 4
      %v939 = vshll.u32 %v919, 16
      %v941 = vrot.slane %v939, 5
      %v942 = vor.u32 %v938, %v941
      %v943 = vrot.slane %v942, 4
      %v945 = vshll.u32 %v927, 16
      %v947 = vrot.slane %v945, 5
      %v948 = vsel %vm643, %v943, %v947
      %v950 = vshrl.u32 %v920, 16
      %v952 = vrot.slane %v950, 4
      %v953 = vshll.u32 %v920, 16
      %v955 = vrot.slane %v953, 5
      %v956 = vor.u32 %v952, %v955
      %v957 = vrot.slane %v956, 4
      %v959 = vshll.u32 %v928, 16
      %v961 = vrot.slane %v959, 5
      %v962 = vsel %vm643, %v957, %v961
      %v964 = vshrl.u32 %v921, 16
      %v966 = vrot.slane %v964, 4
      %v967 = vshll.u32 %v921, 16
      %v969 = vrot.slane %v967, 5
      %v970 = vor.u32 %v966, %v969
      %v971 = vrot.slane %v970, 4
      %v973 = vshll.u32 %v929, 16
      %v975 = vrot.slane %v973, 5
      %v976 = vsel %vm643, %v971, %v975
      %v978 = vshrl.u32 %v922, 16
      %v980 = vrot.slane %v978, 4
      %v981 = vshll.u32 %v922, 16
      %v983 = vrot.slane %v981, 5
      %v984 = vor.u32 %v980, %v983
      %v985 = vrot.slane %v984, 4
      %v987 = vshll.u32 %v930, 16
      %v989 = vrot.slane %v987, 5
      %v990 = vsel %vm643, %v985, %v989
      %v992 = vshrl.u32 %v923, 16
      %v994 = vrot.slane %v992, 4
      %v995 = vshll.u32 %v923, 16
      %v997 = vrot.slane %v995, 5
      %v998 = vor.u32 %v994, %v997
      %v999 = vrot.slane %v998, 4
      %v1001 = vshll.u32 %v931, 16
      %v1003 = vrot.slane %v1001, 5
      %v1004 = vsel %vm643, %v999, %v1003
      %v1006 = vshrl.u32 %v924, 16
      %v1008 = vrot.slane %v1006, 4
      %v1009 = vshll.u32 %v924, 16
      %v1011 = vrot.slane %v1009, 5
      %v1012 = vor.u32 %v1008, %v1011
      %v1013 = vrot.slane %v1012, 4
      %v1015 = vshll.u32 %v932, 16
      %v1017 = vrot.slane %v1015, 5
      %v1018 = vsel %vm643, %v1013, %v1017
      %v1020 = vshrl.u32 %v925, 16
      %v1022 = vrot.slane %v1020, 4
      %v1023 = vshll.u32 %v925, 16
      %v1025 = vrot.slane %v1023, 5
      %v1026 = vor.u32 %v1022, %v1025
      %v1027 = vrot.slane %v1026, 4
      %v1029 = vshll.u32 %v933, 16
      %v1031 = vrot.slane %v1029, 5
      %v1032 = vsel %vm643, %v1027, %v1031
      %v1034 = vshrl.u32 %v926, 16
      %v1036 = vrot.slane %v1034, 4
      %v1037 = vshll.u32 %v926, 16
      %v1039 = vrot.slane %v1037, 5
      %v1040 = vor.u32 %v1036, %v1039
      %v1041 = vrot.slane %v1040, 4
      %v1043 = vshll.u32 %v934, 16
      %v1045 = vrot.slane %v1043, 5
      %v1046 = vsel %vm643, %v1041, %v1045
      %v1047 = vld [vmem:[%s570] sm:$0xe]
      %v1048 = vld [vmem:[%s570 + $0x8] sm:$0xe]
      %v1049 = vld [vmem:[%s570 + $0x10] sm:$0xe]
      %v1050 = vld [vmem:[%s570 + $0x18] sm:$0xe]
      %v1051 = vld [vmem:[%s570 + $0x20] sm:$0xe]
      %v1052 = vld [vmem:[%s570 + $0x28] sm:$0xe]
      %v1053 = vld [vmem:[%s570 + $0x30] sm:$0xe]
      %v1054 = vld [vmem:[%s570 + $0x38] sm:$0xe]
      %v1071 = vrot.slane %v1047, 5
      %v1072 = vrot.slane %v1071, 4
      %v1073 = vrot.slane %v927, 5
      %v1074 = vsel %vm782, %v1072, %v1073
      %v1075 = vrot.slane %v1048, 5
      %v1076 = vrot.slane %v1075, 4
      %v1077 = vrot.slane %v928, 5
      %v1078 = vsel %vm782, %v1076, %v1077
      %v1079 = vrot.slane %v1049, 5
      %v1080 = vrot.slane %v1079, 4
      %v1081 = vrot.slane %v929, 5
      %v1082 = vsel %vm782, %v1080, %v1081
      %v1083 = vrot.slane %v1050, 5
      %v1084 = vrot.slane %v1083, 4
      %v1085 = vrot.slane %v930, 5
      %v1086 = vsel %vm782, %v1084, %v1085
      %v1087 = vrot.slane %v1051, 5
      %v1088 = vrot.slane %v1087, 4
      %v1089 = vrot.slane %v931, 5
      %v1090 = vsel %vm782, %v1088, %v1089
      %v1091 = vrot.slane %v1052, 5
      %v1092 = vrot.slane %v1091, 4
      %v1093 = vrot.slane %v932, 5
      %v1094 = vsel %vm782, %v1092, %v1093
      %v1095 = vrot.slane %v1053, 5
      %v1096 = vrot.slane %v1095, 4
      %v1097 = vrot.slane %v933, 5
      %v1098 = vsel %vm782, %v1096, %v1097
      %v1099 = vrot.slane %v1054, 5
      %v1100 = vrot.slane %v1099, 4
      %v1101 = vrot.slane %v934, 5
      %v1102 = vsel %vm782, %v1100, %v1101
      %v1111 = vunpack.c.l.b16 %v919
      %v1112 = vunpack.c.l.b16 %v920
      %v1113 = vunpack.c.l.b16 %v921
      %v1114 = vunpack.c.l.b16 %v922
      %v1115 = vunpack.c.l.b16 %v923
      %v1116 = vunpack.c.l.b16 %v924
      %v1117 = vunpack.c.l.b16 %v925
      %v1118 = vunpack.c.l.b16 %v926
      %v1119 = vpack.c.b16 %v1112, %v1111
      %v1120 = vpack.c.b16 %v1114, %v1113
      %v1121 = vpack.c.b16 %v1116, %v1115
      %v1122 = vpack.c.b16 %v1118, %v1117
      %v1127 = vunpack.c.l.b16 %v948
      %v1128 = vunpack.c.l.b16 %v962
      %v1129 = vunpack.c.l.b16 %v976
      %v1130 = vunpack.c.l.b16 %v990
      %v1131 = vunpack.c.l.b16 %v1004
      %v1132 = vunpack.c.l.b16 %v1018
      %v1133 = vunpack.c.l.b16 %v1032
      %v1134 = vunpack.c.l.b16 %v1046
      %v1135 = vpack.c.b16 %v1128, %v1127
      %v1136 = vpack.c.b16 %v1130, %v1129
      %v1137 = vpack.c.b16 %v1132, %v1131
      %v1138 = vpack.c.b16 %v1134, %v1133
      %v1143 = vunpack.c.l.b16 %v1074
      %v1144 = vunpack.c.l.b16 %v1078
      %v1145 = vunpack.c.l.b16 %v1082
      %v1146 = vunpack.c.l.b16 %v1086
      %v1147 = vunpack.c.l.b16 %v1090
      %v1148 = vunpack.c.l.b16 %v1094
      %v1149 = vunpack.c.l.b16 %v1098
      %v1150 = vunpack.c.l.b16 %v1102
      %v1151 = vpack.c.b16 %v1144, %v1143
      %v1152 = vpack.c.b16 %v1146, %v1145
      %v1153 = vpack.c.b16 %v1148, %v1147
      %v1154 = vpack.c.b16 %v1150, %v1149
      %s1159 = scalar_lea.vmem %s1, 192
      %v1160 = vld [vmem:[%s1159] sm:$0xf]
      %v1161 = vld [vmem:[%s1159 + $0x4] sm:$0xf]
      %v1162 = vld [vmem:[%s1159 + $0x8] sm:$0xf]
      %v1163 = vld [vmem:[%s1159 + $0xc] sm:$0xf]
      %v1164 = vld [vmem:[%s1159 + $0x10] sm:$0xf]
      %v1165 = vld [vmem:[%s1159 + $0x14] sm:$0xf]
      %v1166 = vld [vmem:[%s1159 + $0x18] sm:$0xf]
      %v1167 = vld [vmem:[%s1159 + $0x1c] sm:$0xf]
      %v1168 = vld [vmem:[%s1159 + $0x20] sm:$0xf]
      %v1169 = vld [vmem:[%s1159 + $0x24] sm:$0xf]
      %v1170 = vld [vmem:[%s1159 + $0x28] sm:$0xf]
      %v1171 = vld [vmem:[%s1159 + $0x2c] sm:$0xf]
      %v1172 = vld [vmem:[%s1159 + $0x30] sm:$0xf]
      %v1173 = vld [vmem:[%s1159 + $0x34] sm:$0xf]
      %v1174 = vld [vmem:[%s1159 + $0x38] sm:$0xf]
      %v1175 = vld [vmem:[%s1159 + $0x3c] sm:$0xf]
      %v1176 = vld [vmem:[%s1159 + $0x40] sm:$0xf]
      %v1177 = vld [vmem:[%s1159 + $0x44] sm:$0xf]
      %v1178 = vld [vmem:[%s1159 + $0x48] sm:$0xf]
      %v1179 = vld [vmem:[%s1159 + $0x4c] sm:$0xf]
      %v1180 = vld [vmem:[%s1159 + $0x50] sm:$0xf]
      %v1181 = vld [vmem:[%s1159 + $0x54] sm:$0xf]
      %v1182 = vld [vmem:[%s1159 + $0x58] sm:$0xf]
      %v1183 = vld [vmem:[%s1159 + $0x5c] sm:$0xf]
      %v1184 = vld [vmem:[%s1159 + $0x60] sm:$0xf]
      %v1185 = vld [vmem:[%s1159 + $0x64] sm:$0xf]
      %v1186 = vld [vmem:[%s1159 + $0x68] sm:$0xf]
      %v1187 = vld [vmem:[%s1159 + $0x6c] sm:$0xf]
      %v1188 = vld [vmem:[%s1159 + $0x70] sm:$0xf]
      %v1189 = vld [vmem:[%s1159 + $0x74] sm:$0xf]
      %v1190 = vld [vmem:[%s1159 + $0x78] sm:$0xf]
      %v1191 = vld [vmem:[%s1159 + $0x7c] sm:$0xf]
      %v1192 = vld [vmem:[%s1159 + $0x80] sm:$0xf]
      %v1193 = vld [vmem:[%s1159 + $0x84] sm:$0xf]
      %v1194 = vld [vmem:[%s1159 + $0x88] sm:$0xf]
      %v1195 = vld [vmem:[%s1159 + $0x8c] sm:$0xf]
      %v1196 = vld [vmem:[%s1159 + $0x90] sm:$0xf]
      %v1197 = vld [vmem:[%s1159 + $0x94] sm:$0xf]
      %v1198 = vld [vmem:[%s1159 + $0x98] sm:$0xf]
      %v1199 = vld [vmem:[%s1159 + $0x9c] sm:$0xf]
      %v1200 = vld [vmem:[%s1159 + $0xa0] sm:$0xf]
      %v1201 = vld [vmem:[%s1159 + $0xa4] sm:$0xf]
      %v1202 = vld [vmem:[%s1159 + $0xa8] sm:$0xf]
      %v1203 = vld [vmem:[%s1159 + $0xac] sm:$0xf]
      %v1204 = vld [vmem:[%s1159 + $0xb0] sm:$0xf]
      %v1205 = vld [vmem:[%s1159 + $0xb4] sm:$0xf]
      %v1206 = vld [vmem:[%s1159 + $0xb8] sm:$0xf]
      %v1207 = vld [vmem:[%s1159 + $0xbc] sm:$0xf]
      %v1256 = vunpack.c.l.b16 %v1160
      %v1257 = vunpack.c.l.b16 %v1161
      %v1258 = vunpack.c.l.b16 %v1162
      %v1259 = vunpack.c.l.b16 %v1163
      %v1260 = vunpack.c.l.b16 %v1164
      %v1261 = vunpack.c.l.b16 %v1165
      %v1262 = vunpack.c.l.b16 %v1166
      %v1263 = vunpack.c.l.b16 %v1167
      %v1264 = vunpack.c.l.b16 %v1168
      %v1265 = vunpack.c.l.b16 %v1169
      %v1266 = vunpack.c.l.b16 %v1170
      %v1267 = vunpack.c.l.b16 %v1171
      %v1268 = vunpack.c.l.b16 %v1172
      %v1269 = vunpack.c.l.b16 %v1173
      %v1270 = vunpack.c.l.b16 %v1174
      %v1271 = vunpack.c.l.b16 %v1175
      %v1272 = vunpack.c.l.b16 %v1176
      %v1273 = vunpack.c.l.b16 %v1177
      %v1274 = vunpack.c.l.b16 %v1178
      %v1275 = vunpack.c.l.b16 %v1179
      %v1276 = vunpack.c.l.b16 %v1180
      %v1277 = vunpack.c.l.b16 %v1181
      %v1278 = vunpack.c.l.b16 %v1182
      %v1279 = vunpack.c.l.b16 %v1183
      %v1280 = vunpack.c.l.b16 %v1184
      %v1281 = vunpack.c.l.b16 %v1185
      %v1282 = vunpack.c.l.b16 %v1186
      %v1283 = vunpack.c.l.b16 %v1187
      %v1284 = vunpack.c.l.b16 %v1188
      %v1285 = vunpack.c.l.b16 %v1189
      %v1286 = vunpack.c.l.b16 %v1190
      %v1287 = vunpack.c.l.b16 %v1191
      %v1288 = vunpack.c.l.b16 %v1192
      %v1289 = vunpack.c.l.b16 %v1193
      %v1290 = vunpack.c.l.b16 %v1194
      %v1291 = vunpack.c.l.b16 %v1195
      %v1292 = vunpack.c.l.b16 %v1196
      %v1293 = vunpack.c.l.b16 %v1197
      %v1294 = vunpack.c.l.b16 %v1198
      %v1295 = vunpack.c.l.b16 %v1199
      %v1296 = vunpack.c.l.b16 %v1200
      %v1297 = vunpack.c.l.b16 %v1201
      %v1298 = vunpack.c.l.b16 %v1202
      %v1299 = vunpack.c.l.b16 %v1203
      %v1300 = vunpack.c.l.b16 %v1204
      %v1301 = vunpack.c.l.b16 %v1205
      %v1302 = vunpack.c.l.b16 %v1206
      %v1303 = vunpack.c.l.b16 %v1207
      %v1304 = vpack.c.b16 %v1257, %v1256
      %v1305 = vpack.c.b16 %v1259, %v1258
      %v1306 = vpack.c.b16 %v1261, %v1260
      %v1307 = vpack.c.b16 %v1263, %v1262
      %v1308 = vpack.c.b16 %v1265, %v1264
      %v1309 = vpack.c.b16 %v1267, %v1266
      %v1310 = vpack.c.b16 %v1269, %v1268
      %v1311 = vpack.c.b16 %v1271, %v1270
      %v1312 = vpack.c.b16 %v1273, %v1272
      %v1313 = vpack.c.b16 %v1275, %v1274
      %v1314 = vpack.c.b16 %v1277, %v1276
      %v1315 = vpack.c.b16 %v1279, %v1278
      %v1316 = vpack.c.b16 %v1281, %v1280
      %v1317 = vpack.c.b16 %v1283, %v1282
      %v1318 = vpack.c.b16 %v1285, %v1284
      %v1319 = vpack.c.b16 %v1287, %v1286
      %v1320 = vpack.c.b16 %v1289, %v1288
      %v1321 = vpack.c.b16 %v1291, %v1290
      %v1322 = vpack.c.b16 %v1293, %v1292
      %v1323 = vpack.c.b16 %v1295, %v1294
      %v1324 = vpack.c.b16 %v1297, %v1296
      %v1325 = vpack.c.b16 %v1299, %v1298
      %v1326 = vpack.c.b16 %v1301, %v1300
      %v1327 = vpack.c.b16 %v1303, %v1302
      %1352 = vmatprep.subr.bf16.mxu0 0
      %1353 = vmatpush1.bf16.msra.mxu0 %v1304
      %1354 = vmatprep.subr.bf16.mxu0 0
      %1355 = vmatpush1.bf16.msra.mxu0 %v1305
      %1356 = vmatprep.subr.bf16.mxu0 0
      %1357 = vmatpush1.bf16.msra.mxu0 %v1306
      %1358 = vmatprep.subr.bf16.mxu0 0
      %1359 = vmatpush1.bf16.msra.mxu0 %v1307
      %1360 = vmatprep.subr.bf16.mxu0 0
      %1361 = vmatpush1.bf16.msra.mxu0 %v1308
      %1362 = vmatprep.subr.bf16.mxu0 0
      %1363 = vmatpush1.bf16.msra.mxu0 %v1309
      %1364 = vmatprep.subr.bf16.mxu0 0
      %1365 = vmatpush1.bf16.msra.mxu0 %v1310
      %1366 = vmatprep.subr.bf16.mxu0 0
      %1367 = vmatpush1.bf16.msra.mxu0 %v1311
      %1368 = vmatprep.subr.bf16.mxu0 0
      %1369 = vmatpush1.bf16.msra.mxu0 %v1312
      %1370 = vmatprep.subr.bf16.mxu0 0
      %1371 = vmatpush1.bf16.msra.mxu0 %v1313
      %1372 = vmatprep.subr.bf16.mxu0 0
      %1373 = vmatpush1.bf16.msra.mxu0 %v1314
      %1374 = vmatprep.subr.bf16.mxu0 0
      %1375 = vmatpush1.bf16.msra.mxu0 %v1315
      %1376 = vmatprep.subr.bf16.mxu0 0
      %1377 = vmatpush1.bf16.msra.mxu0 %v1316
      %1378 = vmatprep.subr.bf16.mxu0 0
      %1379 = vmatpush1.bf16.msra.mxu0 %v1317
      %1380 = vmatprep.subr.bf16.mxu0 0
      %1381 = vmatpush1.bf16.msra.mxu0 %v1318
      %1382 = vmatprep.subr.bf16.mxu0 0
      %1383 = vmatpush1.bf16.msra.mxu0 %v1319
      %1384 = vmatprep.mubr.bf16.mxu0 %v1135
      %1385 = vmatmul.mubr.bf16.gmra.mrb[0].mxu0 %v1119
      %v1386 = vpop.f32.mrb[0].mxu0
      %v1387 = vadd.f32 0.0, %v1386
      %v1388 = vpop.f32.mrb[0].mxu0
      %v1389 = vpop.f32.mrb[0].mxu0
      %v1390 = vadd.f32 0.0, %v1389
      %v1391 = vpop.f32.mrb[0].mxu0
      %1392 = vmatprep.mubr.bf16.mxu0 %v1136
      %1393 = vmatmul.mubr.bf16.gmra.mrb[0].mxu0 %v1120
      %v1394 = vpop.f32.mrb[0].mxu0
      %v1395 = vadd.f32 0.0, %v1394
      %v1396 = vpop.f32.mrb[0].mxu0
      %v1397 = vpop.f32.mrb[0].mxu0
      %v1398 = vadd.f32 0.0, %v1397
      %v1399 = vpop.f32.mrb[0].mxu0
      %1400 = vmatprep.mubr.bf16.mxu0 %v1137
      %1401 = vmatmul.mubr.bf16.gmra.mrb[0].mxu0 %v1121
      %v1402 = vpop.f32.mrb[0].mxu0
      %v1403 = vadd.f32 0.0, %v1402
      %v1404 = vpop.f32.mrb[0].mxu0
      %v1405 = vpop.f32.mrb[0].mxu0
      %v1406 = vadd.f32 0.0, %v1405
      %v1407 = vpop.f32.mrb[0].mxu0
      %1408 = vmatprep.mubr.bf16.mxu0 %v1138
      %1409 = vmatmul.mubr.bf16.gmra.mrb[0].mxu0 %v1122
      %v1410 = vpop.f32.mrb[0].mxu0
      %v1411 = vadd.f32 0.0, %v1410
      %v1412 = vpop.f32.mrb[0].mxu0
      %v1413 = vpop.f32.mrb[0].mxu0
      %v1414 = vadd.f32 0.0, %v1413
      %v1415 = vpop.f32.mrb[0].mxu0
      %1416 = vdwg.mxu0
      %1417 = vmatprep.subr.bf16.mxu0 0
      %1418 = vmatpush1.bf16.msra.mxu0 %v1320
      %1419 = vmatprep.subr.bf16.mxu0 0
      %1420 = vmatpush1.bf16.msra.mxu0 %v1321
      %1421 = vmatprep.subr.bf16.mxu0 0
      %1422 = vmatpush1.bf16.msra.mxu0 %v1322
      %1423 = vmatprep.subr.bf16.mxu0 0
      %1424 = vmatpush1.bf16.msra.mxu0 %v1323
      %1425 = vmatprep.subr.bf16.mxu0 0
      %1426 = vmatpush1.bf16.msra.mxu0 %v1324
      %1427 = vmatprep.subr.bf16.mxu0 0
      %1428 = vmatpush1.bf16.msra.mxu0 %v1325
      %1429 = vmatprep.subr.bf16.mxu0 0
      %1430 = vmatpush1.bf16.msra.mxu0 %v1326
      %1431 = vmatprep.subr.bf16.mxu0 0
      %1432 = vmatpush1.bf16.msra.mxu0 %v1327
      %1433 = vmatprep.subr.bf16.mxu0 0
      %1434 = vmatpush1.bf16.msra.mxu0 0
      %1435 = vmatprep.subr.bf16.mxu0 0
      %1436 = vmatpush1.bf16.msra.mxu0 0
      %1437 = vmatprep.subr.bf16.mxu0 0
      %1438 = vmatpush1.bf16.msra.mxu0 0
      %1439 = vmatprep.subr.bf16.mxu0 0
      %1440 = vmatpush1.bf16.msra.mxu0 0
      %1441 = vmatprep.subr.bf16.mxu0 0
      %1442 = vmatpush1.bf16.msra.mxu0 0
      %1443 = vmatprep.subr.bf16.mxu0 0
      %1444 = vmatpush1.bf16.msra.mxu0 0
      %1445 = vmatprep.subr.bf16.mxu0 0
      %1446 = vmatpush1.bf16.msra.mxu0 0
      %1447 = vmatprep.subr.bf16.mxu0 0
      %1448 = vmatpush1.bf16.msra.mxu0 0
      %1449 = vmatprep.mubr.bf16.mxu0 0
      %1450 = vmatmul.mubr.bf16.gmra.mrb[0].mxu0 %v1151
      %v1451 = vpop.f32.mrb[0].mxu0
      %v1452 = vadd.f32 %v1387, %v1451
      %v1453 = vpop.f32.mrb[0].mxu0
      %v1454 = vpop.f32.mrb[0].mxu0
      %v1455 = vadd.f32 %v1390, %v1454
      %v1456 = vpop.f32.mrb[0].mxu0
      %1457 = vmatprep.mubr.bf16.mxu0 0
      %1458 = vmatmul.mubr.bf16.gmra.mrb[0].mxu0 %v1152
      %v1459 = vpop.f32.mrb[0].mxu0
      %v1460 = vadd.f32 %v1395, %v1459
      %v1461 = vpop.f32.mrb[0].mxu0
      %v1462 = vpop.f32.mrb[0].mxu0
      %v1463 = vadd.f32 %v1398, %v1462
      %v1464 = vpop.f32.mrb[0].mxu0
      %1465 = vmatprep.mubr.bf16.mxu0 0
      %1466 = vmatmul.mubr.bf16.gmra.mrb[0].mxu0 %v1153
      %v1467 = vpop.f32.mrb[0].mxu0
      %v1468 = vadd.f32 %v1403, %v1467
      %v1469 = vpop.f32.mrb[0].mxu0
      %v1470 = vpop.f32.mrb[0].mxu0
      %v1471 = vadd.f32 %v1406, %v1470
      %v1472 = vpop.f32.mrb[0].mxu0
      %1473 = vmatprep.mubr.bf16.mxu0 0
      %1474 = vmatmul.mubr.bf16.gmra.mrb[0].mxu0 %v1154
      %v1475 = vpop.f32.mrb[0].mxu0
      %v1476 = vadd.f32 %v1411, %v1475
      %v1477 = vpop.f32.mrb[0].mxu0
      %v1478 = vpop.f32.mrb[0].mxu0
      %v1479 = vadd.f32 %v1414, %v1478
      %v1480 = vpop.f32.mrb[0].mxu0
      %1481 = vdwg.mxu0
      %v1530 = vunpack.c.l.b16 %v871
      %v1531 = vunpack.c.l.b16 %v872
      %v1532 = vunpack.c.l.b16 %v873
      %v1533 = vunpack.c.l.b16 %v874
      %v1534 = vunpack.c.l.b16 %v875
      %v1535 = vunpack.c.l.b16 %v876
      %v1536 = vunpack.c.l.b16 %v877
      %v1537 = vunpack.c.l.b16 %v878
      %v1538 = vunpack.c.l.b16 %v879
      %v1539 = vunpack.c.l.b16 %v880
      %v1540 = vunpack.c.l.b16 %v881
      %v1541 = vunpack.c.l.b16 %v882
      %v1542 = vunpack.c.l.b16 %v883
      %v1543 = vunpack.c.l.b16 %v884
      %v1544 = vunpack.c.l.b16 %v885
      %v1545 = vunpack.c.l.b16 %v886
      %v1546 = vunpack.c.l.b16 %v887
      %v1547 = vunpack.c.l.b16 %v888
      %v1548 = vunpack.c.l.b16 %v889
      %v1549 = vunpack.c.l.b16 %v890
      %v1550 = vunpack.c.l.b16 %v891
      %v1551 = vunpack.c.l.b16 %v892
      %v1552 = vunpack.c.l.b16 %v893
      %v1553 = vunpack.c.l.b16 %v894
      %v1554 = vunpack.c.l.b16 %v895
      %v1555 = vunpack.c.l.b16 %v896
      %v1556 = vunpack.c.l.b16 %v897
      %v1557 = vunpack.c.l.b16 %v898
      %v1558 = vunpack.c.l.b16 %v899
      %v1559 = vunpack.c.l.b16 %v900
      %v1560 = vunpack.c.l.b16 %v901
      %v1561 = vunpack.c.l.b16 %v902
      %v1562 = vunpack.c.l.b16 %v903
      %v1563 = vunpack.c.l.b16 %v904
      %v1564 = vunpack.c.l.b16 %v905
      %v1565 = vunpack.c.l.b16 %v906
      %v1566 = vunpack.c.l.b16 %v907
      %v1567 = vunpack.c.l.b16 %v908
      %v1568 = vunpack.c.l.b16 %v909
      %v1569 = vunpack.c.l.b16 %v910
      %v1570 = vunpack.c.l.b16 %v911
      %v1571 = vunpack.c.l.b16 %v912
      %v1572 = vunpack.c.l.b16 %v913
      %v1573 = vunpack.c.l.b16 %v914
      %v1574 = vunpack.c.l.b16 %v915
      %v1575 = vunpack.c.l.b16 %v916
      %v1576 = vunpack.c.l.b16 %v917
      %v1577 = vunpack.c.l.b16 %v918
      %v1578 = vpack.c.b16 %v1531, %v1530
      %v1579 = vpack.c.b16 %v1533, %v1532
      %v1580 = vpack.c.b16 %v1535, %v1534
      %v1581 = vpack.c.b16 %v1537, %v1536
      %v1582 = vpack.c.b16 %v1539, %v1538
      %v1583 = vpack.c.b16 %v1541, %v1540
      %v1584 = vpack.c.b16 %v1543, %v1542
      %v1585 = vpack.c.b16 %v1545, %v1544
      %v1586 = vpack.c.b16 %v1547, %v1546
      %v1587 = vpack.c.b16 %v1549, %v1548
      %v1588 = vpack.c.b16 %v1551, %v1550
      %v1589 = vpack.c.b16 %v1553, %v1552
      %v1590 = vpack.c.b16 %v1555, %v1554
      %v1591 = vpack.c.b16 %v1557, %v1556
      %v1592 = vpack.c.b16 %v1559, %v1558
      %v1593 = vpack.c.b16 %v1561, %v1560
      %v1594 = vpack.c.b16 %v1563, %v1562
      %v1595 = vpack.c.b16 %v1565, %v1564
      %v1596 = vpack.c.b16 %v1567, %v1566
      %v1597 = vpack.c.b16 %v1569, %v1568
      %v1598 = vpack.c.b16 %v1571, %v1570
      %v1599 = vpack.c.b16 %v1573, %v1572
      %v1600 = vpack.c.b16 %v1575, %v1574
      %v1601 = vpack.c.b16 %v1577, %v1576
      %1626 = vmatprep.subr.bf16.mxu0 0
      %1627 = vmatpush1.bf16.msra.mxu0 %v1578
      %1628 = vmatprep.subr.bf16.mxu0 0
      %1629 = vmatpush1.bf16.msra.mxu0 %v1579
      %1630 = vmatprep.subr.bf16.mxu0 0
      %1631 = vmatpush1.bf16.msra.mxu0 %v1580
      %1632 = vmatprep.subr.bf16.mxu0 0
      %1633 = vmatpush1.bf16.msra.mxu0 %v1581
      %1634 = vmatprep.subr.bf16.mxu0 0
      %1635 = vmatpush1.bf16.msra.mxu0 %v1582
      %1636 = vmatprep.subr.bf16.mxu0 0
      %1637 = vmatpush1.bf16.msra.mxu0 %v1583
      %1638 = vmatprep.subr.bf16.mxu0 0
      %1639 = vmatpush1.bf16.msra.mxu0 %v1584
      %1640 = vmatprep.subr.bf16.mxu0 0
      %1641 = vmatpush1.bf16.msra.mxu0 %v1585
      %1642 = vmatprep.subr.bf16.mxu0 0
      %1643 = vmatpush1.bf16.msra.mxu0 %v1586
      %1644 = vmatprep.subr.bf16.mxu0 0
      %1645 = vmatpush1.bf16.msra.mxu0 %v1587
      %1646 = vmatprep.subr.bf16.mxu0 0
      %1647 = vmatpush1.bf16.msra.mxu0 %v1588
      %1648 = vmatprep.subr.bf16.mxu0 0
      %1649 = vmatpush1.bf16.msra.mxu0 %v1589
      %1650 = vmatprep.subr.bf16.mxu0 0
      %1651 = vmatpush1.bf16.msra.mxu0 %v1590
      %1652 = vmatprep.subr.bf16.mxu0 0
      %1653 = vmatpush1.bf16.msra.mxu0 %v1591
      %1654 = vmatprep.subr.bf16.mxu0 0
      %1655 = vmatpush1.bf16.msra.mxu0 %v1592
      %1656 = vmatprep.subr.bf16.mxu0 0
      %1657 = vmatpush1.bf16.msra.mxu0 %v1593
      %1658 = vmatprep.mubr.bf16.mxu0 %v847
      %1659 = vmatmul.mubr.bf16.gmra.mrb[0].mxu0 %v831
      %v1660 = vpop.f32.mrb[0].mxu0
      %v1661 = vadd.f32 %v1452, %v1660
      %v1662 = vpop.f32.mrb[0].mxu0
      %v1663 = vpop.f32.mrb[0].mxu0
      %v1664 = vadd.f32 %v1455, %v1663
      %v1665 = vpop.f32.mrb[0].mxu0
      %1666 = vmatprep.mubr.bf16.mxu0 %v848
      %1667 = vmatmul.mubr.bf16.gmra.mrb[0].mxu0 %v832
      %v1668 = vpop.f32.mrb[0].mxu0
      %v1669 = vadd.f32 %v1460, %v1668
      %v1670 = vpop.f32.mrb[0].mxu0
      %v1671 = vpop.f32.mrb[0].mxu0
      %v1672 = vadd.f32 %v1463, %v1671
      %v1673 = vpop.f32.mrb[0].mxu0
      %1674 = vmatprep.mubr.bf16.mxu0 %v849
      %1675 = vmatmul.mubr.bf16.gmra.mrb[0].mxu0 %v833
      %v1676 = vpop.f32.mrb[0].mxu0
      %v1677 = vadd.f32 %v1468, %v1676
      %v1678 = vpop.f32.mrb[0].mxu0
      %v1679 = vpop.f32.mrb[0].mxu0
      %v1680 = vadd.f32 %v1471, %v1679
      %v1681 = vpop.f32.mrb[0].mxu0
      %1682 = vmatprep.mubr.bf16.mxu0 %v850
      %1683 = vmatmul.mubr.bf16.gmra.mrb[0].mxu0 %v834
      %v1684 = vpop.f32.mrb[0].mxu0
      %v1685 = vadd.f32 %v1476, %v1684
      %v1686 = vpop.f32.mrb[0].mxu0
      %v1687 = vpop.f32.mrb[0].mxu0
      %v1688 = vadd.f32 %v1479, %v1687
      %v1689 = vpop.f32.mrb[0].mxu0
      %1690 = vdwg.mxu0
      %1691 = vmatprep.subr.bf16.mxu0 0
      %1692 = vmatpush1.bf16.msra.mxu0 %v1594
      %1693 = vmatprep.subr.bf16.mxu0 0
      %1694 = vmatpush1.bf16.msra.mxu0 %v1595
      %1695 = vmatprep.subr.bf16.mxu0 0
      %1696 = vmatpush1.bf16.msra.mxu0 %v1596
      %1697 = vmatprep.subr.bf16.mxu0 0
      %1698 = vmatpush1.bf16.msra.mxu0 %v1597
      %1699 = vmatprep.subr.bf16.mxu0 0
      %1700 = vmatpush1.bf16.msra.mxu0 %v1598
      %1701 = vmatprep.subr.bf16.mxu0 0
      %1702 = vmatpush1.bf16.msra.mxu0 %v1599
      %1703 = vmatprep.subr.bf16.mxu0 0
      %1704 = vmatpush1.bf16.msra.mxu0 %v1600
      %1705 = vmatprep.subr.bf16.mxu0 0
      %1706 = vmatpush1.bf16.msra.mxu0 %v1601
      %1707 = vmatprep.subr.bf16.mxu0 0
      %1708 = vmatpush1.bf16.msra.mxu0 0
      %1709 = vmatprep.subr.bf16.mxu0 0
      %1710 = vmatpush1.bf16.msra.mxu0 0
      %1711 = vmatprep.subr.bf16.mxu0 0
      %1712 = vmatpush1.bf16.msra.mxu0 0
      %1713 = vmatprep.subr.bf16.mxu0 0
      %1714 = vmatpush1.bf16.msra.mxu0 0
      %1715 = vmatprep.subr.bf16.mxu0 0
      %1716 = vmatpush1.bf16.msra.mxu0 0
      %1717 = vmatprep.subr.bf16.mxu0 0
      %1718 = vmatpush1.bf16.msra.mxu0 0
      %1719 = vmatprep.subr.bf16.mxu0 0
      %1720 = vmatpush1.bf16.msra.mxu0 0
      %1721 = vmatprep.subr.bf16.mxu0 0
      %1722 = vmatpush1.bf16.msra.mxu0 0
      %1723 = vmatprep.mubr.bf16.mxu0 0
      %1724 = vmatmul.mubr.bf16.gmra.mrb[0].mxu0 %v863
      %v1725 = vpop.f32.mrb[0].mxu0
      %v1726 = vadd.f32 %v1661, %v1725
      %v1727 = vpop.f32.mrb[0].mxu0
      %v1728 = vpop.f32.mrb[0].mxu0
      %v1729 = vadd.f32 %v1664, %v1728
      %v1730 = vpop.f32.mrb[0].mxu0
      %1731 = vmatprep.mubr.bf16.mxu0 0
      %1732 = vmatmul.mubr.bf16.gmra.mrb[0].mxu0 %v864
      %v1733 = vpop.f32.mrb[0].mxu0
      %v1734 = vadd.f32 %v1669, %v1733
      %v1735 = vpop.f32.mrb[0].mxu0
      %v1736 = vpop.f32.mrb[0].mxu0
      %v1737 = vadd.f32 %v1672, %v1736
      %v1738 = vpop.f32.mrb[0].mxu0
      %1739 = vmatprep.mubr.bf16.mxu0 0
      %1740 = vmatmul.mubr.bf16.gmra.mrb[0].mxu0 %v865
      %v1741 = vpop.f32.mrb[0].mxu0
      %v1742 = vadd.f32 %v1677, %v1741
      %v1743 = vpop.f32.mrb[0].mxu0
      %v1744 = vpop.f32.mrb[0].mxu0
      %v1745 = vadd.f32 %v1680, %v1744
      %v1746 = vpop.f32.mrb[0].mxu0
      %1747 = vmatprep.mubr.bf16.mxu0 0
      %1748 = vmatmul.mubr.bf16.gmra.mrb[0].mxu0 %v866
      %v1749 = vpop.f32.mrb[0].mxu0
      %v1750 = vadd.f32 %v1685, %v1749
      %v1751 = vpop.f32.mrb[0].mxu0
      %v1752 = vpop.f32.mrb[0].mxu0
      %v1753 = vadd.f32 %v1688, %v1752
      %v1754 = vpop.f32.mrb[0].mxu0
      %1755 = vdwg.mxu0
      %s1756 = scalar_lea.vmem [#allocation2], 16
      %v1757 = vld [vmem:[%s1756] sm:$0xf]
      %v1758 = vld [vmem:[%s1756 + $0x8] sm:$0xf]
      %v1759 = vld [vmem:[%s1756 + $0x10] sm:$0xf]
      %v1760 = vld [vmem:[%s1756 + $0x18] sm:$0xf]
      %v1761 = vld [vmem:[%s1756 + $0x20] sm:$0xf]
      %v1762 = vld [vmem:[%s1756 + $0x28] sm:$0xf]
      %v1763 = vld [vmem:[%s1756 + $0x30] sm:$0xf]
      %v1764 = vld [vmem:[%s1756 + $0x38] sm:$0xf]
      %v1765 = vld [vmem:[%s1756 + $0x4] sm:$0x1]
      %v1766 = vld [vmem:[%s1756 + $0xc] sm:$0x1]
      %v1767 = vld [vmem:[%s1756 + $0x14] sm:$0x1]
      %v1768 = vld [vmem:[%s1756 + $0x1c] sm:$0x1]
      %v1769 = vld [vmem:[%s1756 + $0x24] sm:$0x1]
      %v1770 = vld [vmem:[%s1756 + $0x2c] sm:$0x1]
      %v1771 = vld [vmem:[%s1756 + $0x34] sm:$0x1]
      %v1772 = vld [vmem:[%s1756 + $0x3c] sm:$0x1]
      %v1774 = vshrl.u32 %v1757, 16
      %v1776 = vrot.slane %v1774, 4
      %v1777 = vshll.u32 %v1757, 16
      %v1779 = vrot.slane %v1777, 5
      %v1780 = vor.u32 %v1776, %v1779
      %v1781 = vrot.slane %v1780, 4
      %v1783 = vshll.u32 %v1765, 16
      %v1785 = vrot.slane %v1783, 5
      %v1786 = vsel %vm643, %v1781, %v1785
      %v1788 = vshrl.u32 %v1758, 16
      %v1790 = vrot.slane %v1788, 4
      %v1791 = vshll.u32 %v1758, 16
      %v1793 = vrot.slane %v1791, 5
      %v1794 = vor.u32 %v1790, %v1793
      %v1795 = vrot.slane %v1794, 4
      %v1797 = vshll.u32 %v1766, 16
      %v1799 = vrot.slane %v1797, 5
      %v1800 = vsel %vm643, %v1795, %v1799
      %v1802 = vshrl.u32 %v1759, 16
      %v1804 = vrot.slane %v1802, 4
      %v1805 = vshll.u32 %v1759, 16
      %v1807 = vrot.slane %v1805, 5
      %v1808 = vor.u32 %v1804, %v1807
      %v1809 = vrot.slane %v1808, 4
      %v1811 = vshll.u32 %v1767, 16
      %v1813 = vrot.slane %v1811, 5
      %v1814 = vsel %vm643, %v1809, %v1813
      %v1816 = vshrl.u32 %v1760, 16
      %v1818 = vrot.slane %v1816, 4
      %v1819 = vshll.u32 %v1760, 16
      %v1821 = vrot.slane %v1819, 5
      %v1822 = vor.u32 %v1818, %v1821
      %v1823 = vrot.slane %v1822, 4
      %v1825 = vshll.u32 %v1768, 16
      %v1827 = vrot.slane %v1825, 5
      %v1828 = vsel %vm643, %v1823, %v1827
      %v1830 = vshrl.u32 %v1761, 16
      %v1832 = vrot.slane %v1830, 4
      %v1833 = vshll.u32 %v1761, 16
      %v1835 = vrot.slane %v1833, 5
      %v1836 = vor.u32 %v1832, %v1835
      %v1837 = vrot.slane %v1836, 4
      %v1839 = vshll.u32 %v1769, 16
      %v1841 = vrot.slane %v1839, 5
      %v1842 = vsel %vm643, %v1837, %v1841
      %v1844 = vshrl.u32 %v1762, 16
      %v1846 = vrot.slane %v1844, 4
      %v1847 = vshll.u32 %v1762, 16
      %v1849 = vrot.slane %v1847, 5
      %v1850 = vor.u32 %v1846, %v1849
      %v1851 = vrot.slane %v1850, 4
      %v1853 = vshll.u32 %v1770, 16
      %v1855 = vrot.slane %v1853, 5
      %v1856 = vsel %vm643, %v1851, %v1855
      %v1858 = vshrl.u32 %v1763, 16
      %v1860 = vrot.slane %v1858, 4
      %v1861 = vshll.u32 %v1763, 16
      %v1863 = vrot.slane %v1861, 5
      %v1864 = vor.u32 %v1860, %v1863
      %v1865 = vrot.slane %v1864, 4
      %v1867 = vshll.u32 %v1771, 16
      %v1869 = vrot.slane %v1867, 5
      %v1870 = vsel %vm643, %v1865, %v1869
      %v1872 = vshrl.u32 %v1764, 16
      %v1874 = vrot.slane %v1872, 4
      %v1875 = vshll.u32 %v1764, 16
      %v1877 = vrot.slane %v1875, 5
      %v1878 = vor.u32 %v1874, %v1877
      %v1879 = vrot.slane %v1878, 4
      %v1881 = vshll.u32 %v1772, 16
      %v1883 = vrot.slane %v1881, 5
      %v1884 = vsel %vm643, %v1879, %v1883
      %v1885 = vld [vmem:[%s1756] sm:$0xe]
      %v1886 = vld [vmem:[%s1756 + $0x8] sm:$0xe]
      %v1887 = vld [vmem:[%s1756 + $0x10] sm:$0xe]
      %v1888 = vld [vmem:[%s1756 + $0x18] sm:$0xe]
      %v1889 = vld [vmem:[%s1756 + $0x20] sm:$0xe]
      %v1890 = vld [vmem:[%s1756 + $0x28] sm:$0xe]
      %v1891 = vld [vmem:[%s1756 + $0x30] sm:$0xe]
      %v1892 = vld [vmem:[%s1756 + $0x38] sm:$0xe]
      %v1909 = vrot.slane %v1885, 5
      %v1910 = vrot.slane %v1909, 4
      %v1911 = vrot.slane %v1765, 5
      %v1912 = vsel %vm782, %v1910, %v1911
      %v1913 = vrot.slane %v1886, 5
      %v1914 = vrot.slane %v1913, 4
      %v1915 = vrot.slane %v1766, 5
      %v1916 = vsel %vm782, %v1914, %v1915
      %v1917 = vrot.slane %v1887, 5
      %v1918 = vrot.slane %v1917, 4
      %v1919 = vrot.slane %v1767, 5
      %v1920 = vsel %vm782, %v1918, %v1919
      %v1921 = vrot.slane %v1888, 5
      %v1922 = vrot.slane %v1921, 4
      %v1923 = vrot.slane %v1768, 5
      %v1924 = vsel %vm782, %v1922, %v1923
      %v1925 = vrot.slane %v1889, 5
      %v1926 = vrot.slane %v1925, 4
      %v1927 = vrot.slane %v1769, 5
      %v1928 = vsel %vm782, %v1926, %v1927
      %v1929 = vrot.slane %v1890, 5
      %v1930 = vrot.slane %v1929, 4
      %v1931 = vrot.slane %v1770, 5
      %v1932 = vsel %vm782, %v1930, %v1931
      %v1933 = vrot.slane %v1891, 5
      %v1934 = vrot.slane %v1933, 4
      %v1935 = vrot.slane %v1771, 5
      %v1936 = vsel %vm782, %v1934, %v1935
      %v1937 = vrot.slane %v1892, 5
      %v1938 = vrot.slane %v1937, 4
      %v1939 = vrot.slane %v1772, 5
      %v1940 = vsel %vm782, %v1938, %v1939
      %v1949 = vunpack.c.l.b16 %v1757
      %v1950 = vunpack.c.l.b16 %v1758
      %v1951 = vunpack.c.l.b16 %v1759
      %v1952 = vunpack.c.l.b16 %v1760
      %v1953 = vunpack.c.l.b16 %v1761
      %v1954 = vunpack.c.l.b16 %v1762
      %v1955 = vunpack.c.l.b16 %v1763
      %v1956 = vunpack.c.l.b16 %v1764
      %v1957 = vpack.c.b16 %v1950, %v1949
      %v1958 = vpack.c.b16 %v1952, %v1951
      %v1959 = vpack.c.b16 %v1954, %v1953
      %v1960 = vpack.c.b16 %v1956, %v1955
      %v1965 = vunpack.c.l.b16 %v1786
      %v1966 = vunpack.c.l.b16 %v1800
      %v1967 = vunpack.c.l.b16 %v1814
      %v1968 = vunpack.c.l.b16 %v1828
      %v1969 = vunpack.c.l.b16 %v1842
      %v1970 = vunpack.c.l.b16 %v1856
      %v1971 = vunpack.c.l.b16 %v1870
      %v1972 = vunpack.c.l.b16 %v1884
      %v1973 = vpack.c.b16 %v1966, %v1965
      %v1974 = vpack.c.b16 %v1968, %v1967
      %v1975 = vpack.c.b16 %v1970, %v1969
      %v1976 = vpack.c.b16 %v1972, %v1971
      %v1981 = vunpack.c.l.b16 %v1912
      %v1982 = vunpack.c.l.b16 %v1916
      %v1983 = vunpack.c.l.b16 %v1920
      %v1984 = vunpack.c.l.b16 %v1924
      %v1985 = vunpack.c.l.b16 %v1928
      %v1986 = vunpack.c.l.b16 %v1932
      %v1987 = vunpack.c.l.b16 %v1936
      %v1988 = vunpack.c.l.b16 %v1940
      %v1989 = vpack.c.b16 %v1982, %v1981
      %v1990 = vpack.c.b16 %v1984, %v1983
      %v1991 = vpack.c.b16 %v1986, %v1985
      %v1992 = vpack.c.b16 %v1988, %v1987
      %s1997 = scalar_lea.vmem %s1, 384
      %v1998 = vld [vmem:[%s1997] sm:$0xf]
      %v1999 = vld [vmem:[%s1997 + $0x4] sm:$0xf]
      %v2000 = vld [vmem:[%s1997 + $0x8] sm:$0xf]
      %v2001 = vld [vmem:[%s1997 + $0xc] sm:$0xf]
      %v2002 = vld [vmem:[%s1997 + $0x10] sm:$0xf]
      %v2003 = vld [vmem:[%s1997 + $0x14] sm:$0xf]
      %v2004 = vld [vmem:[%s1997 + $0x18] sm:$0xf]
      %v2005 = vld [vmem:[%s1997 + $0x1c] sm:$0xf]
      %v2006 = vld [vmem:[%s1997 + $0x20] sm:$0xf]
      %v2007 = vld [vmem:[%s1997 + $0x24] sm:$0xf]
      %v2008 = vld [vmem:[%s1997 + $0x28] sm:$0xf]
      %v2009 = vld [vmem:[%s1997 + $0x2c] sm:$0xf]
      %v2010 = vld [vmem:[%s1997 + $0x30] sm:$0xf]
      %v2011 = vld [vmem:[%s1997 + $0x34] sm:$0xf]
      %v2012 = vld [vmem:[%s1997 + $0x38] sm:$0xf]
      %v2013 = vld [vmem:[%s1997 + $0x3c] sm:$0xf]
      %v2014 = vld [vmem:[%s1997 + $0x40] sm:$0xf]
      %v2015 = vld [vmem:[%s1997 + $0x44] sm:$0xf]
      %v2016 = vld [vmem:[%s1997 + $0x48] sm:$0xf]
      %v2017 = vld [vmem:[%s1997 + $0x4c] sm:$0xf]
      %v2018 = vld [vmem:[%s1997 + $0x50] sm:$0xf]
      %v2019 = vld [vmem:[%s1997 + $0x54] sm:$0xf]
      %v2020 = vld [vmem:[%s1997 + $0x58] sm:$0xf]
      %v2021 = vld [vmem:[%s1997 + $0x5c] sm:$0xf]
      %v2022 = vld [vmem:[%s1997 + $0x60] sm:$0xf]
      %v2023 = vld [vmem:[%s1997 + $0x64] sm:$0xf]
      %v2024 = vld [vmem:[%s1997 + $0x68] sm:$0xf]
      %v2025 = vld [vmem:[%s1997 + $0x6c] sm:$0xf]
      %v2026 = vld [vmem:[%s1997 + $0x70] sm:$0xf]
      %v2027 = vld [vmem:[%s1997 + $0x74] sm:$0xf]
      %v2028 = vld [vmem:[%s1997 + $0x78] sm:$0xf]
      %v2029 = vld [vmem:[%s1997 + $0x7c] sm:$0xf]
      %v2030 = vld [vmem:[%s1997 + $0x80] sm:$0xf]
      %v2031 = vld [vmem:[%s1997 + $0x84] sm:$0xf]
      %v2032 = vld [vmem:[%s1997 + $0x88] sm:$0xf]
      %v2033 = vld [vmem:[%s1997 + $0x8c] sm:$0xf]
      %v2034 = vld [vmem:[%s1997 + $0x90] sm:$0xf]
      %v2035 = vld [vmem:[%s1997 + $0x94] sm:$0xf]
      %v2036 = vld [vmem:[%s1997 + $0x98] sm:$0xf]
      %v2037 = vld [vmem:[%s1997 + $0x9c] sm:$0xf]
      %v2038 = vld [vmem:[%s1997 + $0xa0] sm:$0xf]
      %v2039 = vld [vmem:[%s1997 + $0xa4] sm:$0xf]
      %v2040 = vld [vmem:[%s1997 + $0xa8] sm:$0xf]
      %v2041 = vld [vmem:[%s1997 + $0xac] sm:$0xf]
      %v2042 = vld [vmem:[%s1997 + $0xb0] sm:$0xf]
      %v2043 = vld [vmem:[%s1997 + $0xb4] sm:$0xf]
      %v2044 = vld [vmem:[%s1997 + $0xb8] sm:$0xf]
      %v2045 = vld [vmem:[%s1997 + $0xbc] sm:$0xf]
      %v2094 = vunpack.c.l.b16 %v1998
      %v2095 = vunpack.c.l.b16 %v1999
      %v2096 = vunpack.c.l.b16 %v2000
      %v2097 = vunpack.c.l.b16 %v2001
      %v2098 = vunpack.c.l.b16 %v2002
      %v2099 = vunpack.c.l.b16 %v2003
      %v2100 = vunpack.c.l.b16 %v2004
      %v2101 = vunpack.c.l.b16 %v2005
      %v2102 = vunpack.c.l.b16 %v2006
      %v2103 = vunpack.c.l.b16 %v2007
      %v2104 = vunpack.c.l.b16 %v2008
      %v2105 = vunpack.c.l.b16 %v2009
      %v2106 = vunpack.c.l.b16 %v2010
      %v2107 = vunpack.c.l.b16 %v2011
      %v2108 = vunpack.c.l.b16 %v2012
      %v2109 = vunpack.c.l.b16 %v2013
      %v2110 = vunpack.c.l.b16 %v2014
      %v2111 = vunpack.c.l.b16 %v2015
      %v2112 = vunpack.c.l.b16 %v2016
      %v2113 = vunpack.c.l.b16 %v2017
      %v2114 = vunpack.c.l.b16 %v2018
      %v2115 = vunpack.c.l.b16 %v2019
      %v2116 = vunpack.c.l.b16 %v2020
      %v2117 = vunpack.c.l.b16 %v2021
      %v2118 = vunpack.c.l.b16 %v2022
      %v2119 = vunpack.c.l.b16 %v2023
      %v2120 = vunpack.c.l.b16 %v2024
      %v2121 = vunpack.c.l.b16 %v2025
      %v2122 = vunpack.c.l.b16 %v2026
      %v2123 = vunpack.c.l.b16 %v2027
      %v2124 = vunpack.c.l.b16 %v2028
      %v2125 = vunpack.c.l.b16 %v2029
      %v2126 = vunpack.c.l.b16 %v2030
      %v2127 = vunpack.c.l.b16 %v2031
      %v2128 = vunpack.c.l.b16 %v2032
      %v2129 = vunpack.c.l.b16 %v2033
      %v2130 = vunpack.c.l.b16 %v2034
      %v2131 = vunpack.c.l.b16 %v2035
      %v2132 = vunpack.c.l.b16 %v2036
      %v2133 = vunpack.c.l.b16 %v2037
      %v2134 = vunpack.c.l.b16 %v2038
      %v2135 = vunpack.c.l.b16 %v2039
      %v2136 = vunpack.c.l.b16 %v2040
      %v2137 = vunpack.c.l.b16 %v2041
      %v2138 = vunpack.c.l.b16 %v2042
      %v2139 = vunpack.c.l.b16 %v2043
      %v2140 = vunpack.c.l.b16 %v2044
      %v2141 = vunpack.c.l.b16 %v2045
      %v2142 = vpack.c.b16 %v2095, %v2094
      %v2143 = vpack.c.b16 %v2097, %v2096
      %v2144 = vpack.c.b16 %v2099, %v2098
      %v2145 = vpack.c.b16 %v2101, %v2100
      %v2146 = vpack.c.b16 %v2103, %v2102
      %v2147 = vpack.c.b16 %v2105, %v2104
      %v2148 = vpack.c.b16 %v2107, %v2106
      %v2149 = vpack.c.b16 %v2109, %v2108
      %v2150 = vpack.c.b16 %v2111, %v2110
      %v2151 = vpack.c.b16 %v2113, %v2112
      %v2152 = vpack.c.b16 %v2115, %v2114
      %v2153 = vpack.c.b16 %v2117, %v2116
      %v2154 = vpack.c.b16 %v2119, %v2118
      %v2155 = vpack.c.b16 %v2121, %v2120
      %v2156 = vpack.c.b16 %v2123, %v2122
      %v2157 = vpack.c.b16 %v2125, %v2124
      %v2158 = vpack.c.b16 %v2127, %v2126
      %v2159 = vpack.c.b16 %v2129, %v2128
      %v2160 = vpack.c.b16 %v2131, %v2130
      %v2161 = vpack.c.b16 %v2133, %v2132
      %v2162 = vpack.c.b16 %v2135, %v2134
      %v2163 = vpack.c.b16 %v2137, %v2136
      %v2164 = vpack.c.b16 %v2139, %v2138
      %v2165 = vpack.c.b16 %v2141, %v2140
      %2190 = vmatprep.subr.bf16.mxu0 0
      %2191 = vmatpush1.bf16.msra.mxu0 %v2142
      %2192 = vmatprep.subr.bf16.mxu0 0
      %2193 = vmatpush1.bf16.msra.mxu0 %v2143
      %2194 = vmatprep.subr.bf16.mxu0 0
      %2195 = vmatpush1.bf16.msra.mxu0 %v2144
      %2196 = vmatprep.subr.bf16.mxu0 0
      %2197 = vmatpush1.bf16.msra.mxu0 %v2145
      %2198 = vmatprep.subr.bf16.mxu0 0
      %2199 = vmatpush1.bf16.msra.mxu0 %v2146
      %2200 = vmatprep.subr.bf16.mxu0 0
      %2201 = vmatpush1.bf16.msra.mxu0 %v2147
      %2202 = vmatprep.subr.bf16.mxu0 0
      %2203 = vmatpush1.bf16.msra.mxu0 %v2148
      %2204 = vmatprep.subr.bf16.mxu0 0
      %2205 = vmatpush1.bf16.msra.mxu0 %v2149
      %2206 = vmatprep.subr.bf16.mxu0 0
      %2207 = vmatpush1.bf16.msra.mxu0 %v2150
      %2208 = vmatprep.subr.bf16.mxu0 0
      %2209 = vmatpush1.bf16.msra.mxu0 %v2151
      %2210 = vmatprep.subr.bf16.mxu0 0
      %2211 = vmatpush1.bf16.msra.mxu0 %v2152
      %2212 = vmatprep.subr.bf16.mxu0 0
      %2213 = vmatpush1.bf16.msra.mxu0 %v2153
      %2214 = vmatprep.subr.bf16.mxu0 0
      %2215 = vmatpush1.bf16.msra.mxu0 %v2154
      %2216 = vmatprep.subr.bf16.mxu0 0
      %2217 = vmatpush1.bf16.msra.mxu0 %v2155
      %2218 = vmatprep.subr.bf16.mxu0 0
      %2219 = vmatpush1.bf16.msra.mxu0 %v2156
      %2220 = vmatprep.subr.bf16.mxu0 0
      %2221 = vmatpush1.bf16.msra.mxu0 %v2157
      %2222 = vmatprep.mubr.bf16.mxu0 %v1973
      %2223 = vmatmul.mubr.bf16.gmra.mrb[0].mxu0 %v1957
      %v2224 = vpop.f32.mrb[0].mxu0
      %v2225 = vadd.f32 0.0, %v2224
      %v2226 = vpop.f32.mrb[0].mxu0
      %v2227 = vpop.f32.mrb[0].mxu0
      %v2228 = vadd.f32 0.0, %v2227
      %v2229 = vpop.f32.mrb[0].mxu0
      %2230 = vmatprep.mubr.bf16.mxu0 %v1974
      %2231 = vmatmul.mubr.bf16.gmra.mrb[0].mxu0 %v1958
      %v2232 = vpop.f32.mrb[0].mxu0
      %v2233 = vadd.f32 0.0, %v2232
      %v2234 = vpop.f32.mrb[0].mxu0
      %v2235 = vpop.f32.mrb[0].mxu0
      %v2236 = vadd.f32 0.0, %v2235
      %v2237 = vpop.f32.mrb[0].mxu0
      %2238 = vmatprep.mubr.bf16.mxu0 %v1975
      %2239 = vmatmul.mubr.bf16.gmra.mrb[0].mxu0 %v1959
      %v2240 = vpop.f32.mrb[0].mxu0
      %v2241 = vadd.f32 0.0, %v2240
      %v2242 = vpop.f32.mrb[0].mxu0
      %v2243 = vpop.f32.mrb[0].mxu0
      %v2244 = vadd.f32 0.0, %v2243
      %v2245 = vpop.f32.mrb[0].mxu0
      %2246 = vmatprep.mubr.bf16.mxu0 %v1976
      %2247 = vmatmul.mubr.bf16.gmra.mrb[0].mxu0 %v1960
      %v2248 = vpop.f32.mrb[0].mxu0
      %v2249 = vadd.f32 0.0, %v2248
      %v2250 = vpop.f32.mrb[0].mxu0
      %v2251 = vpop.f32.mrb[0].mxu0
      %v2252 = vadd.f32 0.0, %v2251
      %v2253 = vpop.f32.mrb[0].mxu0
      %2254 = vdwg.mxu0
      %2255 = vmatprep.subr.bf16.mxu0 0
      %2256 = vmatpush1.bf16.msra.mxu0 %v2158
      %2257 = vmatprep.subr.bf16.mxu0 0
      %2258 = vmatpush1.bf16.msra.mxu0 %v2159
      %2259 = vmatprep.subr.bf16.mxu0 0
      %2260 = vmatpush1.bf16.msra.mxu0 %v2160
      %2261 = vmatprep.subr.bf16.mxu0 0
      %2262 = vmatpush1.bf16.msra.mxu0 %v2161
      %2263 = vmatprep.subr.bf16.mxu0 0
      %2264 = vmatpush1.bf16.msra.mxu0 %v2162
      %2265 = vmatprep.subr.bf16.mxu0 0
      %2266 = vmatpush1.bf16.msra.mxu0 %v2163
      %2267 = vmatprep.subr.bf16.mxu0 0
      %2268 = vmatpush1.bf16.msra.mxu0 %v2164
      %2269 = vmatprep.subr.bf16.mxu0 0
      %2270 = vmatpush1.bf16.msra.mxu0 %v2165
      %2271 = vmatprep.subr.bf16.mxu0 0
      %2272 = vmatpush1.bf16.msra.mxu0 0
      %2273 = vmatprep.subr.bf16.mxu0 0
      %2274 = vmatpush1.bf16.msra.mxu0 0
      %2275 = vmatprep.subr.bf16.mxu0 0
      %2276 = vmatpush1.bf16.msra.mxu0 0
      %2277 = vmatprep.subr.bf16.mxu0 0
      %2278 = vmatpush1.bf16.msra.mxu0 0
      %2279 = vmatprep.subr.bf16.mxu0 0
      %2280 = vmatpush1.bf16.msra.mxu0 0
      %2281 = vmatprep.subr.bf16.mxu0 0
      %2282 = vmatpush1.bf16.msra.mxu0 0
      %2283 = vmatprep.subr.bf16.mxu0 0
      %2284 = vmatpush1.bf16.msra.mxu0 0
      %2285 = vmatprep.subr.bf16.mxu0 0
      %2286 = vmatpush1.bf16.msra.mxu0 0
      %2287 = vmatprep.mubr.bf16.mxu0 0
      %2288 = vmatmul.mubr.bf16.gmra.mrb[0].mxu0 %v1989
      %v2289 = vpop.f32.mrb[0].mxu0
      %v2290 = vadd.f32 %v2225, %v2289
      %v2291 = vpop.f32.mrb[0].mxu0
      %v2292 = vpop.f32.mrb[0].mxu0
      %v2293 = vadd.f32 %v2228, %v2292
      %v2294 = vpop.f32.mrb[0].mxu0
      %2295 = vmatprep.mubr.bf16.mxu0 0
      %2296 = vmatmul.mubr.bf16.gmra.mrb[0].mxu0 %v1990
      %v2297 = vpop.f32.mrb[0].mxu0
      %v2298 = vadd.f32 %v2233, %v2297
      %v2299 = vpop.f32.mrb[0].mxu0
      %v2300 = vpop.f32.mrb[0].mxu0
      %v2301 = vadd.f32 %v2236, %v2300
      %v2302 = vpop.f32.mrb[0].mxu0
      %2303 = vmatprep.mubr.bf16.mxu0 0
      %2304 = vmatmul.mubr.bf16.gmra.mrb[0].mxu0 %v1991
      %v2305 = vpop.f32.mrb[0].mxu0
      %v2306 = vadd.f32 %v2241, %v2305
      %v2307 = vpop.f32.mrb[0].mxu0
      %v2308 = vpop.f32.mrb[0].mxu0
      %v2309 = vadd.f32 %v2244, %v2308
      %v2310 = vpop.f32.mrb[0].mxu0
      %2311 = vmatprep.mubr.bf16.mxu0 0
      %2312 = vmatmul.mubr.bf16.gmra.mrb[0].mxu0 %v1992
      %v2313 = vpop.f32.mrb[0].mxu0
      %v2314 = vadd.f32 %v2249, %v2313
      %v2315 = vpop.f32.mrb[0].mxu0
      %v2316 = vpop.f32.mrb[0].mxu0
      %v2317 = vadd.f32 %v2252, %v2316
      %v2318 = vpop.f32.mrb[0].mxu0
      %2319 = vdwg.mxu0
      %v2320 = vadd.f32 %v1726, %v2290
      %v2321 = vadd.f32 %v1729, %v2293
      %v2322 = vadd.f32 %v1734, %v2298
      %v2323 = vadd.f32 %v1737, %v2301
      %v2324 = vadd.f32 %v1742, %v2306
      %v2325 = vadd.f32 %v1745, %v2309
      %v2326 = vadd.f32 %v1750, %v2314
      %v2327 = vadd.f32 %v1753, %v2317
      %v2328 = vld [vmem:[%s347] sm:$0xf]
      %v2329 = vld [vmem:[%s347 + $0x4] sm:$0xf]
      %v2330 = vld [vmem:[%s347 + $0x8] sm:$0xf]
      %v2331 = vld [vmem:[%s347 + $0xc] sm:$0xf]
      %v2332 = vld [vmem:[%s347 + $0x10] sm:$0xf]
      %v2333 = vld [vmem:[%s347 + $0x14] sm:$0xf]
      %v2334 = vld [vmem:[%s347 + $0x18] sm:$0xf]
      %v2335 = vld [vmem:[%s347 + $0x1c] sm:$0xf]
      %v2336 = vunpack.c.l.bf16 %v2328
      %v2337 = vunpack.c.l.bf16 %v2329
      %v2338 = vunpack.c.l.bf16 %v2330
      %v2339 = vunpack.c.l.bf16 %v2331
      %v2340 = vunpack.c.l.bf16 %v2332
      %v2341 = vunpack.c.l.bf16 %v2333
      %v2342 = vunpack.c.l.bf16 %v2334
      %v2343 = vunpack.c.l.bf16 %v2335
      %v2344 = vld [vmem:[%s7] sm:$0x1]
      %v2346 = vlaneseq
      %v2347 = vshrl.u32 %v2346, 7
      %v2348 = vsub.s32 0, %v2347
      %v2349 = vrot.slane %v2344, %v2348
      %v2351 = vmul.f32 %v2336, %v2349
      %v2352 = vmul.f32 %v2337, %v2349
      %v2353 = vmul.f32 %v2338, %v2349
      %v2354 = vmul.f32 %v2339, %v2349
      %v2355 = vmul.f32 %v2340, %v2349
      %v2356 = vmul.f32 %v2341, %v2349
      %v2357 = vmul.f32 %v2342, %v2349
      %v2358 = vmul.f32 %v2343, %v2349
      %v2359 = vld [vmem:[%s8] sm:$0x1]
      %v2361 = vlaneseq
      %v2362 = vshrl.u32 %v2361, 7
      %v2363 = vsub.s32 0, %v2362
      %v2364 = vrot.slane %v2359, %v2363
      %v2366 = vadd.f32 %v2351, %v2364
      %v2367 = vadd.f32 %v2352, %v2364
      %v2368 = vadd.f32 %v2353, %v2364
      %v2369 = vadd.f32 %v2354, %v2364
      %v2370 = vadd.f32 %v2355, %v2364
      %v2371 = vadd.f32 %v2356, %v2364
      %v2372 = vadd.f32 %v2357, %v2364
      %v2373 = vadd.f32 %v2358, %v2364
      %v2374 = vadd.f32 %v2320, %v2366
      %v2375 = vadd.f32 %v2321, %v2367
      %v2376 = vadd.f32 %v2322, %v2368
      %v2377 = vadd.f32 %v2323, %v2369
      %v2378 = vadd.f32 %v2324, %v2370
      %v2379 = vadd.f32 %v2325, %v2371
      %v2380 = vadd.f32 %v2326, %v2372
      %v2381 = vadd.f32 %v2327, %v2373
      %v2382 = vmax.f32 %v2374, 0.0
      %v2383 = vmax.f32 %v2375, 0.0
      %v2384 = vmax.f32 %v2376, 0.0
      %v2385 = vmax.f32 %v2377, 0.0
      %v2386 = vmax.f32 %v2378, 0.0
      %v2387 = vmax.f32 %v2379, 0.0
      %v2388 = vmax.f32 %v2380, 0.0
      %v2389 = vmax.f32 %v2381, 0.0
      %v2390 = vpack.c.bf16 %v2383, %v2382
      %v2391 = vpack.c.bf16 %v2385, %v2384
      %v2392 = vpack.c.bf16 %v2387, %v2386
      %v2393 = vpack.c.bf16 %v2389, %v2388
      %v2398 = vunpack.c.l.b16 %v2390
      %v2399 = vunpack.c.h.b16 %v2390
      %v2400 = vunpack.c.l.b16 %v2391
      %v2401 = vunpack.c.h.b16 %v2391
      %v2402 = vunpack.c.l.b16 %v2392
      %v2403 = vunpack.c.h.b16 %v2392
      %v2404 = vunpack.c.l.b16 %v2393
      %v2405 = vunpack.c.h.b16 %v2393
      %v2406 = vpack.c.b16 %v2398, %v2398
      %v2407 = vpack.c.b16 %v2399, %v2399
      %v2408 = vpack.c.b16 %v2400, %v2400
      %v2409 = vpack.c.b16 %v2401, %v2401
      %v2410 = vpack.c.b16 %v2402, %v2402
      %v2411 = vpack.c.b16 %v2403, %v2403
      %v2412 = vpack.c.b16 %v2404, %v2404
      %v2413 = vpack.c.b16 %v2405, %v2405
      %2422 = vst [vmem:[%s352] sm:$0xf] %v2406
      %2423 = vst [vmem:[%s352 + $0x4] sm:$0xf] %v2407
      %2424 = vst [vmem:[%s352 + $0x8] sm:$0xf] %v2408
      %2425 = vst [vmem:[%s352 + $0xc] sm:$0xf] %v2409
      %2426 = vst [vmem:[%s352 + $0x10] sm:$0xf] %v2410
      %2427 = vst [vmem:[%s352 + $0x14] sm:$0xf] %v2411
      %2428 = vst [vmem:[%s352 + $0x18] sm:$0xf] %v2412
      %2429 = vst [vmem:[%s352 + $0x1c] sm:$0xf] %v2413
      %p2430 = scmp.lt.s32.totalorder %s20, 1
      %s2431 = scalar_select %p2430, %s20, 1
      %s2432 = smul.addr %s2431, 8
      %s2433 = smul.addr %s2432, 4
      %s2434 = scalar_lea.vmem %s9, %s2433
      // Predicated region
      $region57: #{basic_block_forward.5} parent=55 // pred_check
        %p2435 = pneg %p237
      $region58: #{basic_block_forward.5} parent=55 // pred_check_branch
        %2437 = sbr.rel (%p2435) target = $region60
      $region59: #{basic_block_forward.5} parent=55 // pred_region
        _
      $region60: #{basic_block_forward.5} parent=55 // pred_fallthru
        _
    $region56: #{basic_block_forward.5} parent=5 // pred_fallthru
      _
    %p2438 = scmp.le.s32.totalorder 2, %s15
    // Predicated region
    $region61: #{basic_block_forward.5} parent=5 // pred_check
      %p2439 = pneg %p2438
    $region62: #{basic_block_forward.5} parent=5 // pred_check_branch
      %2441 = sbr.rel (%p2439) target = $region64
    $region63: #{basic_block_forward.5} parent=5 // pred_region
      %s2442 = ssub.s32 %s15, 2
      // Predicated region
      $region65: #{basic_block_forward.5} parent=63 // pred_check
        %p2443 = pneg %p243
      $region66: #{basic_block_forward.5} parent=63 // pred_check_branch
        %2445 = sbr.rel (%p2443) target = $region68
      $region67: #{basic_block_forward.5} parent=63 // pred_region
        %p2446 = scmp.lt.s32.totalorder %s21, 1
        %s2447 = scalar_select %p2446, %s21, 1
        %s2448 = smul.addr %s2447, 8
        %s2449 = smul.addr %s2448, 4
        %s2450 = scalar_lea.vmem %s9, %s2449
      $region68: #{basic_block_forward.5} parent=63 // pred_fallthru
        _
    $region64: #{basic_block_forward.5} parent=5 // pred_fallthru
      _
  $region6: #{basic_block_forward.5} parent=0 // loop_footer
    %s19 = sadd.s32 1, %s15
  $region7: #{basic_block_forward.5} parent=0 // loop_footer_branch
    %14 = sbr.rel target = $region3
  $region8: #{basic_block_forward.5} parent=0 // loop_exit
    _

</llo_original>
